<compile_context>
chip_gen: v7x
topology: tpu7x:2x2x1
jax: 0.10.0
libtpu: 0.0.40
codegen_flags: <defaults>
</compile_context>

<pallas_src>
import jax
import jax.numpy as jnp
import numpy as np
from jax.experimental import pallas as pl
from jax.experimental.pallas import tpu as pltpu

BN_EPS = 1e-5
_PAD_MAX = 4            # (max(filter_length) - 1) // 2 for filter_length = [3, 9]


# ----------------------------------------------------------------------------
# Generation-aware VMEM budgeting + tile pickers
# ----------------------------------------------------------------------------
def _vmem_capacity_bytes():
    try:
        return int(pltpu.get_tpu_info().vmem_capacity_bytes)
    except Exception:
        return 64 * 2**20          # conservative (v7x per-TensorCore)


_VMEM_CAP = _vmem_capacity_bytes()
_BLOCK_BUDGET = _VMEM_CAP // 6     # per-step working-set budget (leaves room for 2x buffering)


def _vmem_limit(io_block_bytes, temp_bytes=0):
    """Scoped-VMEM limit: double-buffered IO blocks + in-kernel temps + compiler scratch."""
    want = 2 * io_block_bytes + temp_bytes + (4 << 20)
    return int(min(max(want, 16 << 20), (_VMEM_CAP * 3) // 4))


def _pick_batch_tile(n, bytes_per_unit, budget=None):
    """Tile for a leading/batch dim that also appears as the sublane dim of a 2-D block
    (must be a multiple of 8 or equal n).  Prefers the largest tile that fits the budget;
    if nothing fits, degrades to the smallest legal tile instead of going monolithic."""
    if budget is None:
        budget = _BLOCK_BUDGET
    limit = max(1, budget // max(bytes_per_unit, 1))
    if n <= limit:
        return n
    cands = [t for t in range(8, n, 8) if n % t == 0]
    fitting = [t for t in cands if t <= limit]
    if fitting:
        return max(fitting)
    if cands:
        return min(cands)          # over budget, but bounded and layout-legal
    return n                       # n itself not a multiple of 8: full dim is the only legal block


def _pick_lane_tile(n, bytes_per_unit, budget=None):
    """Tile for a dim that appears as the lane (last) dim of a block: multiple of 128 or == n."""
    if budget is None:
        budget = _BLOCK_BUDGET
    limit = max(1, budget // max(bytes_per_unit, 1))
    if n <= limit:
        return n
    cands = [t for t in range(128, n, 128) if n % t == 0]
    fitting = [t for t in cands if t <= limit]
    if fitting:
        return max(fitting)
    if cands:
        return min(cands)
    return n


# ----------------------------------------------------------------------------
# Kernel A: proj (Linear d_k -> 1, no bias), streamed over b*h tiles.
# ----------------------------------------------------------------------------
def _proj_kernel(x_ref, wp_ref, o_ref):
    x = x_ref[...].astype(jnp.float32)                          # (tb, L, d_k)
    w = wp_ref[...].astype(jnp.float32)                         # (1, d_k)
    o_ref[...] = jnp.sum(x * w, axis=-1).astype(o_ref.dtype)    # (tb, L), L on lanes


def project_dk(x, wp):
    """(b, h, L, d_k) . Linear(d_k,1).weight -> (b, h, L) channels-first."""
    b, h, L, d = x.shape
    bh = b * h
    xr = x.reshape(bh, L, d)
    row_bytes = (L * d + L) * 4                                  # input row + output row (f32)
    tb = _pick_batch_tile(bh, row_bytes)
    io_bytes = tb * row_bytes + d * 4
    out = pl.pallas_call(
        _proj_kernel,
        out_shape=jax.ShapeDtypeStruct((bh, L), jnp.float32),
        grid=(bh // tb,),
        in_specs=[pl.BlockSpec((tb, L, d), lambda i: (i, 0, 0)),
                  pl.BlockSpec((1, d), lambda i: (0, 0))],
        out_specs=pl.BlockSpec((tb, L), lambda i: (i, 0)),
        compiler_params=pltpu.CompilerParams(
            dimension_semantics=("parallel",),
            vmem_limit_bytes=_vmem_limit(io_bytes, temp_bytes=tb * L * d * 4)),
    )(xr, wp)
    return out.reshape(b, h, L)


# ----------------------------------------------------------------------------
# Kernel B: Conv1d + BatchNorm1d + Softmax(L) for both filter lengths.
#   Layout (B, channels, L) with L on lanes.  Grid over output-channel tiles.
#   Conv = tap x input-channel accumulation over static lane-offset windows of the
#   once-padded input (no im2col copies, no per-batch weight broadcast).
# ----------------------------------------------------------------------------
def _conv_bn_softmax_kernel(xp_ref, w3_ref, b3_ref, g3_ref, be3_ref,
                            w9_ref, b9_ref, g9_ref, be9_ref, y3_ref, y9_ref):
    xp = xp_ref[...].astype(jnp.float32)                         # (B, H_in, L + 2*_PAD_MAX)
    B, H_in, _ = xp.shape

    def branch(w_ref, b_ref, g_ref, be_ref, out_ref):
        f = w_ref.shape[0]
        _, th, L = out_ref.shape
        pad = (f - 1) // 2
        base = _PAD_MAX - pad
        w = w_ref[...].astype(jnp.float32)                       # (f, H_in, th, 1)
        acc = jnp.zeros((B, th, L), jnp.float32)
        for k in range(f):
            xk = xp[:, :, base + k: base + k + L]                # (B, H_in, L) static window
            for i in range(H_in):
                # (1, th, 1) * (B, 1, L) broadcast FMA on the VPU.
                acc = acc + w[k, i][None, :, :] * xk[:, i:i + 1, :]
        acc = acc + b_ref[...].astype(jnp.float32)[None, :, :]
        # BatchNorm1d (train-mode stats: per output channel over batch & length -> exact
        # within a channel tile).
        mean = jnp.mean(acc, axis=(0, 2), keepdims=True)
        var = jnp.mean(jnp.square(acc - mean), axis=(0, 2), keepdims=True)
        y = (acc - mean) * jax.lax.rsqrt(var + BN_EPS)
        y = (y * g_ref[...].astype(jnp.float32)[None, :, :]
             + be_ref[...].astype(jnp.float32)[None, :, :])
        # Softmax over L (lane axis); exact divide so rows sum to 1.
        m = jnp.max(y, axis=-1, keepdims=True)
        e = jnp.exp(y - m)
        out_ref[...] = (e / jnp.sum(e, axis=-1, keepdims=True)).astype(out_ref.dtype)

    branch(w3_ref, b3_ref, g3_ref, be3_ref, y3_ref)
    branch(w9_ref, b9_ref, g9_ref, be9_ref, y9_ref)


def conv_bn_softmax(xt, p3, p9):
    """xt: (b, h, L) projected scalars.  Returns (y3, y9), each (b, h, L)."""
    b, h, L = xt.shape
    Lp = L + 2 * _PAD_MAX
    # Zero-pad the length axis once in the wrapper; the kernel only takes static
    # lane-offset windows of it.
    xp = jnp.pad(xt, ((0, 0), (0, 0), (_PAD_MAX, _PAD_MAX)))

    def fold_w(p):
        # (f, h_out, h_in) -> (f, h_in, h_out, 1): [k, i, o, 0] = w[k, o, i]
        return jnp.transpose(p['w'], (0, 2, 1))[..., None].astype(jnp.float32)

    def col(v):
        return v.reshape(h, 1).astype(jnp.float32)

    # Output-channel tile: per-channel temporaries (acc/y/e...) dominate.
    th = _pick_batch_tile(h, bytes_per_unit=5 * b * L * 4)
    xp_bytes = b * h * Lp * 4
    io_bytes = xp_bytes + 2 * b * th * L * 4 + (3 + 9) * h * th * 4 + 6 * th * 4
    temp_bytes = 6 * b * th * L * 4

    y3, y9 = pl.pallas_call(
        _conv_bn_softmax_kernel,
        out_shape=(jax.ShapeDtypeStruct((b, h, L), jnp.float32),
                   jax.ShapeDtypeStruct((b, h, L), jnp.float32)),
        grid=(h // th,),
        in_specs=[
            pl.BlockSpec((b, h, Lp), lambda j: (0, 0, 0)),       # full padded input (resident)
            pl.BlockSpec((3, h, th, 1), lambda j: (0, 0, j, 0)),
            pl.BlockSpec((th, 1), lambda j: (j, 0)),
            pl.BlockSpec((th, 1), lambda j: (j, 0)),
            pl.BlockSpec((th, 1), lambda j: (j, 0)),
            pl.BlockSpec((9, h, th, 1), lambda j: (0, 0, j, 0)),
            pl.BlockSpec((th, 1), lambda j: (j, 0)),
            pl.BlockSpec((th, 1), lambda j: (j, 0)),
            pl.BlockSpec((th, 1), lambda j: (j, 0)),
        ],
        out_specs=(pl.BlockSpec((b, th, L), lambda j: (0, j, 0)),
                   pl.BlockSpec((b, th, L), lambda j: (0, j, 0))),
        compiler_params=pltpu.CompilerParams(
            dimension_semantics=("parallel",),
            vmem_limit_bytes=_vmem_limit(io_bytes, temp_bytes)),
    )(xp, fold_w(p3), col(p3['b']), col(p3['gamma']), col(p3['beta']),
      fold_w(p9), col(p9['b']), col(p9['gamma']), col(p9['beta']))
    return y3, y9


# ----------------------------------------------------------------------------
# Kernel C: rank-1 scores + softmax + attn @ V, tiled over (b*h) and the query length.
# ----------------------------------------------------------------------------
def _attn_kernel(c_ref, qm_ref, km_ref, v_ref, ctx_ref, attn_ref):
    c = c_ref[0]                                   # scalar in SMEM: wq.wk / sqrt(d_k)
    qm = qm_ref[...].astype(jnp.float32)           # (tb, tl)
    km = km_ref[...].astype(jnp.float32)           # (tb, l_k)
    s = (c * qm)[:, :, None] * km[:, None, :]      # (tb, tl, l_k) VPU outer product
    m = jnp.max(s, axis=-1, keepdims=True)
    e = jnp.exp(s - m)
    p = e / jnp.sum(e, axis=-1, keepdims=True)     # exact softmax (rows sum to 1)
    attn_ref[...] = p.astype(attn_ref.dtype)
    # Only MXU matmul: attn @ V in bf16 with f32 accumulation (2-4x MXU rate vs f32).
    ctx = jax.lax.dot_general(
        p.astype(jnp.bfloat16), v_ref[...].astype(jnp.bfloat16),
        dimension_numbers=(((2,), (1,)), ((0,), (0,))),
        preferred_element_type=jnp.float32)        # (tb, tl, d)
    ctx_ref[...] = ctx.astype(ctx_ref.dtype)


def projback_attention(qmax, kmax, v, wq_back, wk_back, d_k):
    b, h, l = qmax.shape
    l_k = kmax.shape[-1]
    d = v.shape[-1]
    bh = b * h
    qm = qmax.reshape(bh, l)
    km = kmax.reshape(bh, l_k)
    vr = v.reshape(bh, l_k, d)
    # Rank-1 structure of proj_back: scores = (wq.wk / sqrt(d_k)) * outer(qmax, kmax).
    c = (jnp.dot(wq_back[0], wk_back[0]) / np.sqrt(d_k)).astype(jnp.float32).reshape(1)

    # Tile the query length first (bounds the l*l_k score/softmax working set), then batch.
    tb_min = bh if bh < 8 else 8
    tl = _pick_lane_tile(l, bytes_per_unit=tb_min * (4 * l_k + d + 1) * 4)
    row_bytes = (tl + l_k + l_k * d + tl * d + 4 * tl * l_k) * 4
    tb = _pick_batch_tile(bh, row_bytes)
    io_bytes = tb * (tl + l_k + l_k * d + tl * d + tl * l_k) * 4
    temp_bytes = tb * 3 * tl * l_k * 4

    # TODO(synk): if the attn writeback DMA is still exposed after l-tiling, deepen its
    # pipeline (pipeline_mode=pl.Buffered(3)) and/or emit attn in bf16.
    ctx, attn = pl.pallas_call(
        _attn_kernel,
        out_shape=(jax.ShapeDtypeStruct((bh, l, d), jnp.float32),
                   jax.ShapeDtypeStruct((bh, l, l_k), jnp.float32)),
        grid=(bh // tb, l // tl),
        in_specs=[
            pl.BlockSpec(memory_space=pltpu.MemorySpace.SMEM),   # scalar c
            pl.BlockSpec((tb, tl), lambda i, j: (i, j)),
            pl.BlockSpec((tb, l_k), lambda i, j: (i, 0)),
            pl.BlockSpec((tb, l_k, d), lambda i, j: (i, 0, 0)),
        ],
        out_specs=(
            pl.BlockSpec((tb, tl, d), lambda i, j: (i, j, 0)),
            pl.BlockSpec((tb, tl, l_k), lambda i, j: (i, j, 0)),
        ),
        compiler_params=pltpu.CompilerParams(
            dimension_semantics=("parallel", "parallel"),
            vmem_limit_bytes=_vmem_limit(io_bytes, temp_bytes)),
    )(c, qm, km, vr)
    return ctx.reshape(b, h, l, d), attn.reshape(b, h, l, l_k)


# ----------------------------------------------------------------------------
# Full forward (glue = reshape / pad / cat / max plumbing only)
# ----------------------------------------------------------------------------
def kittycat_forward(params, Q, K, V, attn_mask=None):
    # attn_mask is accepted but unused, exactly as in the reference forward.
    b, h, l, d_k = Q.shape
    l_k = K.shape[2]
    qs = project_dk(Q, params['proj_q'])
    ks = project_dk(K, params['proj_k'])
    q3, q9 = conv_bn_softmax(qs, params['conv_q3'], params['conv_q9'])
    k3, k9 = conv_bn_softmax(ks, params['conv_k3'], params['conv_k9'])
    # Reproduce torch.cat(dim=0) -> reshape(b,h,2l,1) -> reshape(b,h,l,2) -> max(-1)
    qmax = jnp.max(jnp.concatenate([q3, q9], axis=0).reshape(b, h, l, 2), axis=-1)
    kmax = jnp.max(jnp.concatenate([k3, k9], axis=0).reshape(b, h, l_k, 2), axis=-1)
    return projback_attention(qmax, kmax, V, params['proj_back_q'], params['proj_back_k'], d_k)


# ----------------------------------------------------------------------------
# Deterministic parameter initialization (shapes from KittyCatConv.__init__)
# ----------------------------------------------------------------------------
def init_params(key, d_k, h):
    ks = jax.random.split(key, 8)

    def nrm(k, shape, scale=0.1):
        return scale * jax.random.normal(k, shape, jnp.float32)

    def conv_params(k, f):
        k1, k2 = jax.random.split(k)
        return {'w': nrm(k1, (f, h, h)),                  # (tap, out_ch, in_ch)
                'b': nrm(k2, (1, h)),
                'gamma': jnp.ones((1, h), jnp.float32),   # BatchNorm1d weight init
                'beta': jnp.zeros((1, h), jnp.float32)}   # BatchNorm1d bias init

    return {
        'proj_q': nrm(ks[0], (1, d_k)),        # Linear(d_k, 1, bias=False).weight
        'proj_k': nrm(ks[1], (1, d_k)),
        'conv_q3': conv_params(ks[2], 3),
        'conv_q9': conv_params(ks[3], 9),
        'conv_k3': conv_params(ks[4], 3),
        'conv_k9': conv_params(ks[5], 9),
        'proj_back_q': nrm(ks[6], (1, d_k)),   # Linear(1, d_k, bias=False).weight[:, 0]
        'proj_back_k': nrm(ks[7], (1, d_k)),
    }


# ----------------------------------------------------------------------------
# Pure-JAX reference (same math, full un-simplified attention) for a sanity check.
# ----------------------------------------------------------------------------
def _reference_branch(xs, p):
    b, h, L = xs.shape
    w, bias, gamma, beta = p['w'], p['b'], p['gamma'], p['beta']
    f = w.shape[0]
    pad = (f - 1) // 2
    xp = jnp.pad(xs, ((0, 0), (0, 0), (pad, pad)))
    acc = jnp.zeros((b, h, L), jnp.float32) + bias.reshape(1, h, 1)
    for k in range(f):
        acc = acc + jnp.einsum('oi,bil->bol', w[k], xp[:, :, k:k + L])
    mean = jnp.mean(acc, axis=(0, 2), keepdims=True)
    var = jnp.mean((acc - mean) ** 2, axis=(0, 2), keepdims=True)
    y = (acc - mean) * jax.lax.rsqrt(var + BN_EPS)
    y = y * gamma.reshape(1, h, 1) + beta.reshape(1, h, 1)
    return jax.nn.softmax(y, axis=-1)


def reference_forward(params, Q, K, V):
    b, h, l, d_k = Q.shape
    l_k = K.shape[2]
    qs = jnp.einsum('bhld,d->bhl', Q, params['proj_q'][0])
    ks = jnp.einsum('bhld,d->bhl', K, params['proj_k'][0])
    q_l = [_reference_branch(qs, params['conv_q3']), _reference_branch(qs, params['conv_q9'])]
    k_l = [_reference_branch(ks, params['conv_k3']), _reference_branch(ks, params['conv_k9'])]
    qmax = jnp.max(jnp.concatenate(q_l, axis=0).reshape(b, h, l, 2), axis=-1)
    kmax = jnp.max(jnp.concatenate(k_l, axis=0).reshape(b, h, l_k, 2), axis=-1)
    Qp = qmax[..., None] * params['proj_back_q'][0]
    Kp = kmax[..., None] * params['proj_back_k'][0]
    scores = jnp.einsum('bhqd,bhkd->bhqk', Qp, Kp) / np.sqrt(d_k)
    attn = jax.nn.softmax(scores, axis=-1)
    ctx = jnp.einsum('bhqk,bhkd->bhqd', attn, V)
    return ctx, attn


if __name__ == "__main__":
    b, h, l, l_k, d_k = 2, 4, 8, 16, 32
    key = jax.random.PRNGKey(0)
    kp, kq, kk, kv = jax.random.split(key, 4)
    params = init_params(kp, d_k, h)
    Q = jax.random.normal(kq, (b, h, l, d_k), jnp.float32)
    K = jax.random.normal(kk, (b, h, l_k, d_k), jnp.float32)
    V = jax.random.normal(kv, (b, h, l_k, d_k), jnp.float32)

    ctx, attn = jax.jit(kittycat_forward)(params, Q, K, V)
    jax.block_until_ready((ctx, attn))

    # Sanity check against a pure-JAX reference of the same math.  attn is f32 with an
    # exact softmax divide (tight tolerance); ctx goes through the bf16 attn@V matmul,
    # so its tolerance is bounded by bf16 rounding (~2^-9 per operand).
    with jax.default_matmul_precision("highest"):
        ctx_ref, attn_ref = reference_forward(params, Q, K, V)
    np.testing.assert_allclose(np.asarray(attn), np.asarray(attn_ref), rtol=2e-3, atol=2e-3)
    np.testing.assert_allclose(np.asarray(ctx), np.asarray(ctx_ref), rtol=1e-2, atol=1e-2)

    assert ctx.shape == (b, h, l, d_k) and attn.shape == (b, h, l, l_k)
    print("KERNEL_OK")
</pallas_src>

<mosaic_0001>
module attributes {stable_mosaic.version = 11 : i64} {
  func.func @_proj_kernel(%arg0: i32, %arg1: memref<8x16x32xf32, #tpu.memory_space<vmem>>, %arg2: memref<1x32xf32, #tpu.memory_space<vmem>>, %arg3: memref<8x16xf32, #tpu.memory_space<vmem>>) attributes {dimension_semantics = [#tpu.dimension_semantics<parallel>], iteration_bounds = array<i64: 1>, scalar_prefetch = 0 : i64, scratch_operands = 0 : i64, tpu.core_type = #tpu.core_type<tc>, window_params = [{transform_indices = @transform_0, window_bounds = array<i64: 8, 16, 32>}, {pipeline_mode = #tpu.pipeline_mode<synchronous>, transform_indices = @transform_1, window_bounds = array<i64: 1, 32>}, {transform_indices = @transform_2, window_bounds = array<i64: 8, 16>}]} {
    %c0 = arith.constant 0 : index
    %c0_0 = arith.constant 0 : index
    %c0_1 = arith.constant 0 : index
    %0 = vector.load %arg1[%c0, %c0_0, %c0_1] : memref<8x16x32xf32, #tpu.memory_space<vmem>>, vector<8x16x32xf32>
    %c0_2 = arith.constant 0 : index
    %c0_3 = arith.constant 0 : index
    %1 = vector.load %arg2[%c0_2, %c0_3] : memref<1x32xf32, #tpu.memory_space<vmem>>, vector<1x32xf32>
    %2 = vector.shape_cast %1 : vector<1x32xf32> to vector<1x1x32xf32>
    %3 = vector.broadcast %2 : vector<1x1x32xf32> to vector<8x16x32xf32>
    %4 = arith.mulf %0, %3 : vector<8x16x32xf32>
    %cst = arith.constant dense<0.000000e+00> : vector<8x16xf32>
    %5 = vector.multi_reduction <add>, %4, %cst [2] : vector<8x16x32xf32> to vector<8x16xf32>
    %c0_4 = arith.constant 0 : index
    %c0_5 = arith.constant 0 : index
    %6 = vector.load %arg3[%c0_4, %c0_5] : memref<8x16xf32, #tpu.memory_space<vmem>>, vector<8x16xf32>
    tpu.vector_store %arg3[%c0_4, %c0_5], %5 {strides = array<i32>} : memref<8x16xf32, #tpu.memory_space<vmem>>, vector<8x16xf32>,
    return
  }
  func.func @transform_0(%arg0: i32) -> (i32, i32, i32) {
    %c0_i32 = arith.constant 0 : i32
    %c0_i32_0 = arith.constant 0 : i32
    %c0_i32_1 = arith.constant 0 : i32
    return %arg0, %c0_i32, %c0_i32_0 : i32, i32, i32
  }
  func.func @transform_1(%arg0: i32) -> (i32, i32) {
    %c0_i32 = arith.constant 0 : i32
    %c0_i32_0 = arith.constant 0 : i32
    %c0_i32_1 = arith.constant 0 : i32
    return %c0_i32, %c0_i32_0 : i32, i32
  }
  func.func @transform_2(%arg0: i32) -> (i32, i32) {
    %c0_i32 = arith.constant 0 : i32
    %c0_i32_0 = arith.constant 0 : i32
    return %arg0, %c0_i32 : i32, i32
  }
}

module attributes {stable_mosaic.version = 11 : i64} {
  func.func @_conv_bn_softmax_kernel(%arg0: i32, %arg1: memref<2x4x24xf32, #tpu.memory_space<vmem>>, %arg2: memref<3x4x4x1xf32, #tpu.memory_space<vmem>>, %arg3: memref<4x1xf32, #tpu.memory_space<vmem>>, %arg4: memref<4x1xf32, #tpu.memory_space<vmem>>, %arg5: memref<4x1xf32, #tpu.memory_space<vmem>>, %arg6: memref<9x4x4x1xf32, #tpu.memory_space<vmem>>, %arg7: memref<4x1xf32, #tpu.memory_space<vmem>>, %arg8: memref<4x1xf32, #tpu.memory_space<vmem>>, %arg9: memref<4x1xf32, #tpu.memory_space<vmem>>, %arg10: memref<2x4x16xf32, #tpu.memory_space<vmem>>, %arg11: memref<2x4x16xf32, #tpu.memory_space<vmem>>) attributes {dimension_semantics = [#tpu.dimension_semantics<parallel>], iteration_bounds = array<i64: 1>, scalar_prefetch = 0 : i64, scratch_operands = 0 : i64, tpu.core_type = #tpu.core_type<tc>, window_params = [{pipeline_mode = #tpu.pipeline_mode<synchronous>, transform_indices = @transform_0, window_bounds = array<i64: 2, 4, 24>}, {transform_indices = @transform_1, window_bounds = array<i64: 3, 4, 4, 1>}, {transform_indices = @transform_2, window_bounds = array<i64: 4, 1>}, {transform_indices = @transform_3, window_bounds = array<i64: 4, 1>}, {transform_indices = @transform_4, window_bounds = array<i64: 4, 1>}, {transform_indices = @transform_5, window_bounds = array<i64: 9, 4, 4, 1>}, {transform_indices = @transform_6, window_bounds = array<i64: 4, 1>}, {transform_indices = @transform_7, window_bounds = array<i64: 4, 1>}, {transform_indices = @transform_8, window_bounds = array<i64: 4, 1>}, {transform_indices = @transform_9, window_bounds = array<i64: 2, 4, 16>}, {transform_indices = @transform_10, window_bounds = array<i64: 2, 4, 16>}]} {
    %c0 = arith.constant 0 : index
    %c0_0 = arith.constant 0 : index
    %c0_1 = arith.constant 0 : index
    %0 = vector.load %arg1[%c0, %c0_0, %c0_1] : memref<2x4x24xf32, #tpu.memory_space<vmem>>, vector<2x4x24xf32>
    %c0_2 = arith.constant 0 : index
    %c0_3 = arith.constant 0 : index
    %c0_4 = arith.constant 0 : index
    %c0_5 = arith.constant 0 : index
    %1 = vector.load %arg2[%c0_2, %c0_3, %c0_4, %c0_5] : memref<3x4x4x1xf32, #tpu.memory_space<vmem>>, vector<3x4x4x1xf32>
    %cst = arith.constant 0.000000e+00 : f32
    %2 = vector.broadcast %cst : f32 to vector<2x4x16xf32>
    %3 = vector.extract_strided_slice %0 {offsets = [0, 0, 3], sizes = [2, 4, 16], strides = [1, 1, 1]} : vector<2x4x24xf32> to vector<2x4x16xf32>
    %4 = vector.extract_strided_slice %1 {offsets = [0, 0, 0, 0], sizes = [1, 1, 4, 1], strides = [1, 1, 1, 1]} : vector<3x4x4x1xf32> to vector<1x1x4x1xf32>
    %5 = vector.shape_cast %4 : vector<1x1x4x1xf32> to vector<4x1xf32>
    %6 = vector.shape_cast %5 : vector<4x1xf32> to vector<1x4x1xf32>
    %7 = vector.extract_strided_slice %3 {offsets = [0, 0, 0], sizes = [2, 1, 16], strides = [1, 1, 1]} : vector<2x4x16xf32> to vector<2x1x16xf32>
    %8 = vector.broadcast %6 : vector<1x4x1xf32> to vector<2x4x16xf32>
    %9 = vector.broadcast %7 : vector<2x1x16xf32> to vector<2x4x16xf32>
    %10 = arith.mulf %8, %9 : vector<2x4x16xf32>
    %11 = arith.addf %2, %10 : vector<2x4x16xf32>
    %12 = vector.extract_strided_slice %1 {offsets = [0, 1, 0, 0], sizes = [1, 1, 4, 1], strides = [1, 1, 1, 1]} : vector<3x4x4x1xf32> to vector<1x1x4x1xf32>
    %13 = vector.shape_cast %12 : vector<1x1x4x1xf32> to vector<4x1xf32>
    %14 = vector.shape_cast %13 : vector<4x1xf32> to vector<1x4x1xf32>
    %15 = vector.extract_strided_slice %3 {offsets = [0, 1, 0], sizes = [2, 1, 16], strides = [1, 1, 1]} : vector<2x4x16xf32> to vector<2x1x16xf32>
    %16 = vector.broadcast %14 : vector<1x4x1xf32> to vector<2x4x16xf32>
    %17 = vector.broadcast %15 : vector<2x1x16xf32> to vector<2x4x16xf32>
    %18 = arith.mulf %16, %17 : vector<2x4x16xf32>
    %19 = arith.addf %11, %18 : vector<2x4x16xf32>
    %20 = vector.extract_strided_slice %1 {offsets = [0, 2, 0, 0], sizes = [1, 1, 4, 1], strides = [1, 1, 1, 1]} : vector<3x4x4x1xf32> to vector<1x1x4x1xf32>
    %21 = vector.shape_cast %20 : vector<1x1x4x1xf32> to vector<4x1xf32>
    %22 = vector.shape_cast %21 : vector<4x1xf32> to vector<1x4x1xf32>
    %23 = vector.extract_strided_slice %3 {offsets = [0, 2, 0], sizes = [2, 1, 16], strides = [1, 1, 1]} : vector<2x4x16xf32> to vector<2x1x16xf32>
    %24 = vector.broadcast %22 : vector<1x4x1xf32> to vector<2x4x16xf32>
    %25 = vector.broadcast %23 : vector<2x1x16xf32> to vector<2x4x16xf32>
    %26 = arith.mulf %24, %25 : vector<2x4x16xf32>
    %27 = arith.addf %19, %26 : vector<2x4x16xf32>
    %28 = vector.extract_strided_slice %1 {offsets = [0, 3, 0, 0], sizes = [1, 1, 4, 1], strides = [1, 1, 1, 1]} : vector<3x4x4x1xf32> to vector<1x1x4x1xf32>
    %29 = vector.shape_cast %28 : vector<1x1x4x1xf32> to vector<4x1xf32>
    %30 = vector.shape_cast %29 : vector<4x1xf32> to vector<1x4x1xf32>
    %31 = vector.extract_strided_slice %3 {offsets = [0, 3, 0], sizes = [2, 1, 16], strides = [1, 1, 1]} : vector<2x4x16xf32> to vector<2x1x16xf32>
    %32 = vector.broadcast %30 : vector<1x4x1xf32> to vector<2x4x16xf32>
    %33 = vector.broadcast %31 : vector<2x1x16xf32> to vector<2x4x16xf32>
    %34 = arith.mulf %32, %33 : vector<2x4x16xf32>
    %35 = arith.addf %27, %34 : vector<2x4x16xf32>
    %36 = vector.extract_strided_slice %0 {offsets = [0, 0, 4], sizes = [2, 4, 16], strides = [1, 1, 1]} : vector<2x4x24xf32> to vector<2x4x16xf32>
    %37 = vector.extract_strided_slice %1 {offsets = [1, 0, 0, 0], sizes = [1, 1, 4, 1], strides = [1, 1, 1, 1]} : vector<3x4x4x1xf32> to vector<1x1x4x1xf32>
    %38 = vector.shape_cast %37 : vector<1x1x4x1xf32> to vector<4x1xf32>
    %39 = vector.shape_cast %38 : vector<4x1xf32> to vector<1x4x1xf32>
    %40 = vector.extract_strided_slice %36 {offsets = [0, 0, 0], sizes = [2, 1, 16], strides = [1, 1, 1]} : vector<2x4x16xf32> to vector<2x1x16xf32>
    %41 = vector.broadcast %39 : vector<1x4x1xf32> to vector<2x4x16xf32>
    %42 = vector.broadcast %40 : vector<2x1x16xf32> to vector<2x4x16xf32>
    %43 = arith.mulf %41, %42 : vector<2x4x16xf32>
    %44 = arith.addf %35, %43 : vector<2x4x16xf32>
    %45 = vector.extract_strided_slice %1 {offsets = [1, 1, 0, 0], sizes = [1, 1, 4, 1], strides = [1, 1, 1, 1]} : vector<3x4x4x1xf32> to vector<1x1x4x1xf32>
    %46 = vector.shape_cast %45 : vector<1x1x4x1xf32> to vector<4x1xf32>
    %47 = vector.shape_cast %46 : vector<4x1xf32> to vector<1x4x1xf32>
    %48 = vector.extract_strided_slice %36 {offsets = [0, 1, 0], sizes = [2, 1, 16], strides = [1, 1, 1]} : vector<2x4x16xf32> to vector<2x1x16xf32>
    %49 = vector.broadcast %47 : vector<1x4x1xf32> to vector<2x4x16xf32>
    %50 = vector.broadcast %48 : vector<2x1x16xf32> to vector<2x4x16xf32>
    %51 = arith.mulf %49, %50 : vector<2x4x16xf32>
    %52 = arith.addf %44, %51 : vector<2x4x16xf32>
    %53 = vector.extract_strided_slice %1 {offsets = [1, 2, 0, 0], sizes = [1, 1, 4, 1], strides = [1, 1, 1, 1]} : vector<3x4x4x1xf32> to vector<1x1x4x1xf32>
    %54 = vector.shape_cast %53 : vector<1x1x4x1xf32> to vector<4x1xf32>
    %55 = vector.shape_cast %54 : vector<4x1xf32> to vector<1x4x1xf32>
    %56 = vector.extract_strided_slice %36 {offsets = [0, 2, 0], sizes = [2, 1, 16], strides = [1, 1, 1]} : vector<2x4x16xf32> to vector<2x1x16xf32>
    %57 = vector.broadcast %55 : vector<1x4x1xf32> to vector<2x4x16xf32>
    %58 = vector.broadcast %56 : vector<2x1x16xf32> to vector<2x4x16xf32>
    %59 = arith.mulf %57, %58 : vector<2x4x16xf32>
    %60 = arith.addf %52, %59 : vector<2x4x16xf32>
    %61 = vector.extract_strided_slice %1 {offsets = [1, 3, 0, 0], sizes = [1, 1, 4, 1], strides = [1, 1, 1, 1]} : vector<3x4x4x1xf32> to vector<1x1x4x1xf32>
    %62 = vector.shape_cast %61 : vector<1x1x4x1xf32> to vector<4x1xf32>
    %63 = vector.shape_cast %62 : vector<4x1xf32> to vector<1x4x1xf32>
    %64 = vector.extract_strided_slice %36 {offsets = [0, 3, 0], sizes = [2, 1, 16], strides = [1, 1, 1]} : vector<2x4x16xf32> to vector<2x1x16xf32>
    %65 = vector.broadcast %63 : vector<1x4x1xf32> to vector<2x4x16xf32>
    %66 = vector.broadcast %64 : vector<2x1x16xf32> to vector<2x4x16xf32>
    %67 = arith.mulf %65, %66 : vector<2x4x16xf32>
    %68 = arith.addf %60, %67 : vector<2x4x16xf32>
    %69 = vector.extract_strided_slice %0 {offsets = [0, 0, 5], sizes = [2, 4, 16], strides = [1, 1, 1]} : vector<2x4x24xf32> to vector<2x4x16xf32>
    %70 = vector.extract_strided_slice %1 {offsets = [2, 0, 0, 0], sizes = [1, 1, 4, 1], strides = [1, 1, 1, 1]} : vector<3x4x4x1xf32> to vector<1x1x4x1xf32>
    %71 = vector.shape_cast %70 : vector<1x1x4x1xf32> to vector<4x1xf32>
    %72 = vector.shape_cast %71 : vector<4x1xf32> to vector<1x4x1xf32>
    %73 = vector.extract_strided_slice %69 {offsets = [0, 0, 0], sizes = [2, 1, 16], strides = [1, 1, 1]} : vector<2x4x16xf32> to vector<2x1x16xf32>
    %74 = vector.broadcast %72 : vector<1x4x1xf32> to vector<2x4x16xf32>
    %75 = vector.broadcast %73 : vector<2x1x16xf32> to vector<2x4x16xf32>
    %76 = arith.mulf %74, %75 : vector<2x4x16xf32>
    %77 = arith.addf %68, %76 : vector<2x4x16xf32>
    %78 = vector.extract_strided_slice %1 {offsets = [2, 1, 0, 0], sizes = [1, 1, 4, 1], strides = [1, 1, 1, 1]} : vector<3x4x4x1xf32> to vector<1x1x4x1xf32>
    %79 = vector.shape_cast %78 : vector<1x1x4x1xf32> to vector<4x1xf32>
    %80 = vector.shape_cast %79 : vector<4x1xf32> to vector<1x4x1xf32>
    %81 = vector.extract_strided_slice %69 {offsets = [0, 1, 0], sizes = [2, 1, 16], strides = [1, 1, 1]} : vector<2x4x16xf32> to vector<2x1x16xf32>
    %82 = vector.broadcast %80 : vector<1x4x1xf32> to vector<2x4x16xf32>
    %83 = vector.broadcast %81 : vector<2x1x16xf32> to vector<2x4x16xf32>
    %84 = arith.mulf %82, %83 : vector<2x4x16xf32>
    %85 = arith.addf %77, %84 : vector<2x4x16xf32>
    %86 = vector.extract_strided_slice %1 {offsets = [2, 2, 0, 0], sizes = [1, 1, 4, 1], strides = [1, 1, 1, 1]} : vector<3x4x4x1xf32> to vector<1x1x4x1xf32>
    %87 = vector.shape_cast %86 : vector<1x1x4x1xf32> to vector<4x1xf32>
    %88 = vector.shape_cast %87 : vector<4x1xf32> to vector<1x4x1xf32>
    %89 = vector.extract_strided_slice %69 {offsets = [0, 2, 0], sizes = [2, 1, 16], strides = [1, 1, 1]} : vector<2x4x16xf32> to vector<2x1x16xf32>
    %90 = vector.broadcast %88 : vector<1x4x1xf32> to vector<2x4x16xf32>
    %91 = vector.broadcast %89 : vector<2x1x16xf32> to vector<2x4x16xf32>
    %92 = arith.mulf %90, %91 : vector<2x4x16xf32>
    %93 = arith.addf %85, %92 : vector<2x4x16xf32>
    %94 = vector.extract_strided_slice %1 {offsets = [2, 3, 0, 0], sizes = [1, 1, 4, 1], strides = [1, 1, 1, 1]} : vector<3x4x4x1xf32> to vector<1x1x4x1xf32>
    %95 = vector.shape_cast %94 : vector<1x1x4x1xf32> to vector<4x1xf32>
    %96 = vector.shape_cast %95 : vector<4x1xf32> to vector<1x4x1xf32>
    %97 = vector.extract_strided_slice %69 {offsets = [0, 3, 0], sizes = [2, 1, 16], strides = [1, 1, 1]} : vector<2x4x16xf32> to vector<2x1x16xf32>
    %98 = vector.broadcast %96 : vector<1x4x1xf32> to vector<2x4x16xf32>
    %99 = vector.broadcast %97 : vector<2x1x16xf32> to vector<2x4x16xf32>
    %100 = arith.mulf %98, %99 : vector<2x4x16xf32>
    %101 = arith.addf %93, %100 : vector<2x4x16xf32>
    %c0_6 = arith.constant 0 : index
    %c0_7 = arith.constant 0 : index
    %102 = vector.load %arg3[%c0_6, %c0_7] : memref<4x1xf32, #tpu.memory_space<vmem>>, vector<4x1xf32>
    %103 = vector.shape_cast %102 : vector<4x1xf32> to vector<1x4x1xf32>
    %104 = vector.broadcast %103 : vector<1x4x1xf32> to vector<2x4x16xf32>
    %105 = arith.addf %101, %104 : vector<2x4x16xf32>
    %cst_8 = arith.constant dense<0.000000e+00> : vector<4xf32>
    %106 = vector.multi_reduction <add>, %105, %cst_8 [0, 2] : vector<2x4x16xf32> to vector<4xf32>
    %107 = vector.shape_cast %106 : vector<4xf32> to vector<1x4x1xf32>
    %cst_9 = arith.constant 3.200000e+01 : f32
    %108 = vector.broadcast %cst_9 : f32 to vector<1x4x1xf32>
    %109 = arith.divf %107, %108 : vector<1x4x1xf32>
    %110 = vector.broadcast %109 : vector<1x4x1xf32> to vector<2x4x16xf32>
    %111 = arith.subf %105, %110 : vector<2x4x16xf32>
    %112 = arith.mulf %111, %111 : vector<2x4x16xf32>
    %cst_10 = arith.constant dense<0.000000e+00> : vector<4xf32>
    %113 = vector.multi_reduction <add>, %112, %cst_10 [0, 2] : vector<2x4x16xf32> to vector<4xf32>
    %114 = vector.shape_cast %113 : vector<4xf32> to vector<1x4x1xf32>
    %cst_11 = arith.constant 3.200000e+01 : f32
    %115 = vector.broadcast %cst_11 : f32 to vector<1x4x1xf32>
    %116 = arith.divf %114, %115 : vector<1x4x1xf32>
    %117 = vector.broadcast %109 : vector<1x4x1xf32> to vector<2x4x16xf32>
    %118 = arith.subf %105, %117 : vector<2x4x16xf32>
    %cst_12 = arith.constant 9.99999974E-6 : f32
    %119 = vector.broadcast %cst_12 : f32 to vector<1x4x1xf32>
    %120 = arith.addf %116, %119 : vector<1x4x1xf32>
    %121 = math.rsqrt %120 : vector<1x4x1xf32>
    %122 = vector.broadcast %121 : vector<1x4x1xf32> to vector<2x4x16xf32>
    %123 = arith.mulf %118, %122 : vector<2x4x16xf32>
    %c0_13 = arith.constant 0 : index
    %c0_14 = arith.constant 0 : index
    %124 = vector.load %arg4[%c0_13, %c0_14] : memref<4x1xf32, #tpu.memory_space<vmem>>, vector<4x1xf32>
    %125 = vector.shape_cast %124 : vector<4x1xf32> to vector<1x4x1xf32>
    %126 = vector.broadcast %125 : vector<1x4x1xf32> to vector<2x4x16xf32>
    %127 = arith.mulf %123, %126 : vector<2x4x16xf32>
    %c0_15 = arith.constant 0 : index
    %c0_16 = arith.constant 0 : index
    %128 = vector.load %arg5[%c0_15, %c0_16] : memref<4x1xf32, #tpu.memory_space<vmem>>, vector<4x1xf32>
    %129 = vector.shape_cast %128 : vector<4x1xf32> to vector<1x4x1xf32>
    %130 = vector.broadcast %129 : vector<1x4x1xf32> to vector<2x4x16xf32>
    %131 = arith.addf %127, %130 : vector<2x4x16xf32>
    %cst_17 = arith.constant dense<0xFF800000> : vector<2x4xf32>
    %132 = vector.multi_reduction <maximumf>, %131, %cst_17 [2] : vector<2x4x16xf32> to vector<2x4xf32>
    %133 = vector.shape_cast %132 : vector<2x4xf32> to vector<2x4x1xf32>
    %134 = vector.broadcast %133 : vector<2x4x1xf32> to vector<2x4x16xf32>
    %135 = arith.subf %131, %134 : vector<2x4x16xf32>
    %136 = math.exp %135 : vector<2x4x16xf32>
    %cst_18 = arith.constant dense<0.000000e+00> : vector<2x4xf32>
    %137 = vector.multi_reduction <add>, %136, %cst_18 [2] : vector<2x4x16xf32> to vector<2x4xf32>
    %138 = vector.shape_cast %137 : vector<2x4xf32> to vector<2x4x1xf32>
    %139 = vector.broadcast %138 : vector<2x4x1xf32> to vector<2x4x16xf32>
    %140 = arith.divf %136, %139 : vector<2x4x16xf32>
    %c0_19 = arith.constant 0 : index
    %c0_20 = arith.constant 0 : index
    %c0_21 = arith.constant 0 : index
    %141 = vector.load %arg10[%c0_19, %c0_20, %c0_21] : memref<2x4x16xf32, #tpu.memory_space<vmem>>, vector<2x4x16xf32>
    tpu.vector_store %arg10[%c0_19, %c0_20, %c0_21], %140 {strides = array<i32>} : memref<2x4x16xf32, #tpu.memory_space<vmem>>, vector<2x4x16xf32>,
    %c0_22 = arith.constant 0 : index
    %c0_23 = arith.constant 0 : index
    %c0_24 = arith.constant 0 : index
    %c0_25 = arith.constant 0 : index
    %142 = vector.load %arg6[%c0_22, %c0_23, %c0_24, %c0_25] : memref<9x4x4x1xf32, #tpu.memory_space<vmem>>, vector<9x4x4x1xf32>
    %cst_26 = arith.constant 0.000000e+00 : f32
    %143 = vector.broadcast %cst_26 : f32 to vector<2x4x16xf32>
    %144 = vector.extract_strided_slice %0 {offsets = [0, 0, 0], sizes = [2, 4, 16], strides = [1, 1, 1]} : vector<2x4x24xf32> to vector<2x4x16xf32>
    %145 = vector.extract_strided_slice %142 {offsets = [0, 0, 0, 0], sizes = [1, 1, 4, 1], strides = [1, 1, 1, 1]} : vector<9x4x4x1xf32> to vector<1x1x4x1xf32>
    %146 = vector.shape_cast %145 : vector<1x1x4x1xf32> to vector<4x1xf32>
    %147 = vector.shape_cast %146 : vector<4x1xf32> to vector<1x4x1xf32>
    %148 = vector.extract_strided_slice %144 {offsets = [0, 0, 0], sizes = [2, 1, 16], strides = [1, 1, 1]} : vector<2x4x16xf32> to vector<2x1x16xf32>
    %149 = vector.broadcast %147 : vector<1x4x1xf32> to vector<2x4x16xf32>
    %150 = vector.broadcast %148 : vector<2x1x16xf32> to vector<2x4x16xf32>
    %151 = arith.mulf %149, %150 : vector<2x4x16xf32>
    %152 = arith.addf %143, %151 : vector<2x4x16xf32>
    %153 = vector.extract_strided_slice %142 {offsets = [0, 1, 0, 0], sizes = [1, 1, 4, 1], strides = [1, 1, 1, 1]} : vector<9x4x4x1xf32> to vector<1x1x4x1xf32>
    %154 = vector.shape_cast %153 : vector<1x1x4x1xf32> to vector<4x1xf32>
    %155 = vector.shape_cast %154 : vector<4x1xf32> to vector<1x4x1xf32>
    %156 = vector.extract_strided_slice %144 {offsets = [0, 1, 0], sizes = [2, 1, 16], strides = [1, 1, 1]} : vector<2x4x16xf32> to vector<2x1x16xf32>
    %157 = vector.broadcast %155 : vector<1x4x1xf32> to vector<2x4x16xf32>
    %158 = vector.broadcast %156 : vector<2x1x16xf32> to vector<2x4x16xf32>
    %159 = arith.mulf %157, %158 : vector<2x4x16xf32>
    %160 = arith.addf %152, %159 : vector<2x4x16xf32>
    %161 = vector.extract_strided_slice %142 {offsets = [0, 2, 0, 0], sizes = [1, 1, 4, 1], strides = [1, 1, 1, 1]} : vector<9x4x4x1xf32> to vector<1x1x4x1xf32>
    %162 = vector.shape_cast %161 : vector<1x1x4x1xf32> to vector<4x1xf32>
    %163 = vector.shape_cast %162 : vector<4x1xf32> to vector<1x4x1xf32>
    %164 = vector.extract_strided_slice %144 {offsets = [0, 2, 0], sizes = [2, 1, 16], strides = [1, 1, 1]} : vector<2x4x16xf32> to vector<2x1x16xf32>
    %165 = vector.broadcast %163 : vector<1x4x1xf32> to vector<2x4x16xf32>
    %166 = vector.broadcast %164 : vector<2x1x16xf32> to vector<2x4x16xf32>
    %167 = arith.mulf %165, %166 : vector<2x4x16xf32>
    %168 = arith.addf %160, %167 : vector<2x4x16xf32>
    %169 = vector.extract_strided_slice %142 {offsets = [0, 3, 0, 0], sizes = [1, 1, 4, 1], strides = [1, 1, 1, 1]} : vector<9x4x4x1xf32> to vector<1x1x4x1xf32>
    %170 = vector.shape_cast %169 : vector<1x1x4x1xf32> to vector<4x1xf32>
    %171 = vector.shape_cast %170 : vector<4x1xf32> to vector<1x4x1xf32>
    %172 = vector.extract_strided_slice %144 {offsets = [0, 3, 0], sizes = [2, 1, 16], strides = [1, 1, 1]} : vector<2x4x16xf32> to vector<2x1x16xf32>
    %173 = vector.broadcast %171 : vector<1x4x1xf32> to vector<2x4x16xf32>
    %174 = vector.broadcast %172 : vector<2x1x16xf32> to vector<2x4x16xf32>
    %175 = arith.mulf %173, %174 : vector<2x4x16xf32>
    %176 = arith.addf %168, %175 : vector<2x4x16xf32>
    %177 = vector.extract_strided_slice %0 {offsets = [0, 0, 1], sizes = [2, 4, 16], strides = [1, 1, 1]} : vector<2x4x24xf32> to vector<2x4x16xf32>
    %178 = vector.extract_strided_slice %142 {offsets = [1, 0, 0, 0], sizes = [1, 1, 4, 1], strides = [1, 1, 1, 1]} : vector<9x4x4x1xf32> to vector<1x1x4x1xf32>
    %179 = vector.shape_cast %178 : vector<1x1x4x1xf32> to vector<4x1xf32>
    %180 = vector.shape_cast %179 : vector<4x1xf32> to vector<1x4x1xf32>
    %181 = vector.extract_strided_slice %177 {offsets = [0, 0, 0], sizes = [2, 1, 16], strides = [1, 1, 1]} : vector<2x4x16xf32> to vector<2x1x16xf32>
    %182 = vector.broadcast %180 : vector<1x4x1xf32> to vector<2x4x16xf32>
    %183 = vector.broadcast %181 : vector<2x1x16xf32> to vector<2x4x16xf32>
    %184 = arith.mulf %182, %183 : vector<2x4x16xf32>
    %185 = arith.addf %176, %184 : vector<2x4x16xf32>
    %186 = vector.extract_strided_slice %142 {offsets = [1, 1, 0, 0], sizes = [1, 1, 4, 1], strides = [1, 1, 1, 1]} : vector<9x4x4x1xf32> to vector<1x1x4x1xf32>
    %187 = vector.shape_cast %186 : vector<1x1x4x1xf32> to vector<4x1xf32>
    %188 = vector.shape_cast %187 : vector<4x1xf32> to vector<1x4x1xf32>
    %189 = vector.extract_strided_slice %177 {offsets = [0, 1, 0], sizes = [2, 1, 16], strides = [1, 1, 1]} : vector<2x4x16xf32> to vector<2x1x16xf32>
    %190 = vector.broadcast %188 : vector<1x4x1xf32> to vector<2x4x16xf32>
    %191 = vector.broadcast %189 : vector<2x1x16xf32> to vector<2x4x16xf32>
    %192 = arith.mulf %190, %191 : vector<2x4x16xf32>
    %193 = arith.addf %185, %192 : vector<2x4x16xf32>
    %194 = vector.extract_strided_slice %142 {offsets = [1, 2, 0, 0], sizes = [1, 1, 4, 1], strides = [1, 1, 1, 1]} : vector<9x4x4x1xf32> to vector<1x1x4x1xf32>
    %195 = vector.shape_cast %194 : vector<1x1x4x1xf32> to vector<4x1xf32>
    %196 = vector.shape_cast %195 : vector<4x1xf32> to vector<1x4x1xf32>
    %197 = vector.extract_strided_slice %177 {offsets = [0, 2, 0], sizes = [2, 1, 16], strides = [1, 1, 1]} : vector<2x4x16xf32> to vector<2x1x16xf32>
    %198 = vector.broadcast %196 : vector<1x4x1xf32> to vector<2x4x16xf32>
    %199 = vector.broadcast %197 : vector<2x1x16xf32> to vector<2x4x16xf32>
    %200 = arith.mulf %198, %199 : vector<2x4x16xf32>
    %201 = arith.addf %193, %200 : vector<2x4x16xf32>
    %202 = vector.extract_strided_slice %142 {offsets = [1, 3, 0, 0], sizes = [1, 1, 4, 1], strides = [1, 1, 1, 1]} : vector<9x4x4x1xf32> to vector<1x1x4x1xf32>
    %203 = vector.shape_cast %202 : vector<1x1x4x1xf32> to vector<4x1xf32>
    %204 = vector.shape_cast %203 : vector<4x1xf32> to vector<1x4x1xf32>
    %205 = vector.extract_strided_slice %177 {offsets = [0, 3, 0], sizes = [2, 1, 16], strides = [1, 1, 1]} : vector<2x4x16xf32> to vector<2x1x16xf32>
    %206 = vector.broadcast %204 : vector<1x4x1xf32> to vector<2x4x16xf32>
    %207 = vector.broadcast %205 : vector<2x1x16xf32> to vector<2x4x16xf32>
    %208 = arith.mulf %206, %207 : vector<2x4x16xf32>
    %209 = arith.addf %201, %208 : vector<2x4x16xf32>
    %210 = vector.extract_strided_slice %0 {offsets = [0, 0, 2], sizes = [2, 4, 16], strides = [1, 1, 1]} : vector<2x4x24xf32> to vector<2x4x16xf32>
    %211 = vector.extract_strided_slice %142 {offsets = [2, 0, 0, 0], sizes = [1, 1, 4, 1], strides = [1, 1, 1, 1]} : vector<9x4x4x1xf32> to vector<1x1x4x1xf32>
    %212 = vector.shape_cast %211 : vector<1x1x4x1xf32> to vector<4x1xf32>
    %213 = vector.shape_cast %212 : vector<4x1xf32> to vector<1x4x1xf32>
    %214 = vector.extract_strided_slice %210 {offsets = [0, 0, 0], sizes = [2, 1, 16], strides = [1, 1, 1]} : vector<2x4x16xf32> to vector<2x1x16xf32>
    %215 = vector.broadcast %213 : vector<1x4x1xf32> to vector<2x4x16xf32>
    %216 = vector.broadcast %214 : vector<2x1x16xf32> to vector<2x4x16xf32>
    %217 = arith.mulf %215, %216 : vector<2x4x16xf32>
    %218 = arith.addf %209, %217 : vector<2x4x16xf32>
    %219 = vector.extract_strided_slice %142 {offsets = [2, 1, 0, 0], sizes = [1, 1, 4, 1], strides = [1, 1, 1, 1]} : vector<9x4x4x1xf32> to vector<1x1x4x1xf32>
    %220 = vector.shape_cast %219 : vector<1x1x4x1xf32> to vector<4x1xf32>
    %221 = vector.shape_cast %220 : vector<4x1xf32> to vector<1x4x1xf32>
    %222 = vector.extract_strided_slice %210 {offsets = [0, 1, 0], sizes = [2, 1, 16], strides = [1, 1, 1]} : vector<2x4x16xf32> to vector<2x1x16xf32>
    %223 = vector.broadcast %221 : vector<1x4x1xf32> to vector<2x4x16xf32>
    %224 = vector.broadcast %222 : vector<2x1x16xf32> to vector<2x4x16xf32>
    %225 = arith.mulf %223, %224 : vector<2x4x16xf32>
    %226 = arith.addf %218, %225 : vector<2x4x16xf32>
    %227 = vector.extract_strided_slice %142 {offsets = [2, 2, 0, 0], sizes = [1, 1, 4, 1], strides = [1, 1, 1, 1]} : vector<9x4x4x1xf32> to vector<1x1x4x1xf32>
    %228 = vector.shape_cast %227 : vector<1x1x4x1xf32> to vector<4x1xf32>
    %229 = vector.shape_cast %228 : vector<4x1xf32> to vector<1x4x1xf32>
    %230 = vector.extract_strided_slice %210 {offsets = [0, 2, 0], sizes = [2, 1, 16], strides = [1, 1, 1]} : vector<2x4x16xf32> to vector<2x1x16xf32>
    %231 = vector.broadcast %229 : vector<1x4x1xf32> to vector<2x4x16xf32>
    %232 = vector.broadcast %230 : vector<2x1x16xf32> to vector<2x4x16xf32>
    %233 = arith.mulf %231, %232 : vector<2x4x16xf32>
    %234 = arith.addf %226, %233 : vector<2x4x16xf32>
    %235 = vector.extract_strided_slice %142 {offsets = [2, 3, 0, 0], sizes = [1, 1, 4, 1], strides = [1, 1, 1, 1]} : vector<9x4x4x1xf32> to vector<1x1x4x1xf32>
    %236 = vector.shape_cast %235 : vector<1x1x4x1xf32> to vector<4x1xf32>
    %237 = vector.shape_cast %236 : vector<4x1xf32> to vector<1x4x1xf32>
    %238 = vector.extract_strided_slice %210 {offsets = [0, 3, 0], sizes = [2, 1, 16], strides = [1, 1, 1]} : vector<2x4x16xf32> to vector<2x1x16xf32>
    %239 = vector.broadcast %237 : vector<1x4x1xf32> to vector<2x4x16xf32>
    %240 = vector.broadcast %238 : vector<2x1x16xf32> to vector<2x4x16xf32>
    %241 = arith.mulf %239, %240 : vector<2x4x16xf32>
    %242 = arith.addf %234, %241 : vector<2x4x16xf32>
    %243 = vector.extract_strided_slice %0 {offsets = [0, 0, 3], sizes = [2, 4, 16], strides = [1, 1, 1]} : vector<2x4x24xf32> to vector<2x4x16xf32>
    %244 = vector.extract_strided_slice %142 {offsets = [3, 0, 0, 0], sizes = [1, 1, 4, 1], strides = [1, 1, 1, 1]} : vector<9x4x4x1xf32> to vector<1x1x4x1xf32>
    %245 = vector.shape_cast %244 : vector<1x1x4x1xf32> to vector<4x1xf32>
    %246 = vector.shape_cast %245 : vector<4x1xf32> to vector<1x4x1xf32>
    %247 = vector.extract_strided_slice %243 {offsets = [0, 0, 0], sizes = [2, 1, 16], strides = [1, 1, 1]} : vector<2x4x16xf32> to vector<2x1x16xf32>
    %248 = vector.broadcast %246 : vector<1x4x1xf32> to vector<2x4x16xf32>
    %249 = vector.broadcast %247 : vector<2x1x16xf32> to vector<2x4x16xf32>
    %250 = arith.mulf %248, %249 : vector<2x4x16xf32>
    %251 = arith.addf %242, %250 : vector<2x4x16xf32>
    %252 = vector.extract_strided_slice %142 {offsets = [3, 1, 0, 0], sizes = [1, 1, 4, 1], strides = [1, 1, 1, 1]} : vector<9x4x4x1xf32> to vector<1x1x4x1xf32>
    %253 = vector.shape_cast %252 : vector<1x1x4x1xf32> to vector<4x1xf32>
    %254 = vector.shape_cast %253 : vector<4x1xf32> to vector<1x4x1xf32>
    %255 = vector.extract_strided_slice %243 {offsets = [0, 1, 0], sizes = [2, 1, 16], strides = [1, 1, 1]} : vector<2x4x16xf32> to vector<2x1x16xf32>
    %256 = vector.broadcast %254 : vector<1x4x1xf32> to vector<2x4x16xf32>
    %257 = vector.broadcast %255 : vector<2x1x16xf32> to vector<2x4x16xf32>
    %258 = arith.mulf %256, %257 : vector<2x4x16xf32>
    %259 = arith.addf %251, %258 : vector<2x4x16xf32>
    %260 = vector.extract_strided_slice %142 {offsets = [3, 2, 0, 0], sizes = [1, 1, 4, 1], strides = [1, 1, 1, 1]} : vector<9x4x4x1xf32> to vector<1x1x4x1xf32>
    %261 = vector.shape_cast %260 : vector<1x1x4x1xf32> to vector<4x1xf32>
    %262 = vector.shape_cast %261 : vector<4x1xf32> to vector<1x4x1xf32>
    %263 = vector.extract_strided_slice %243 {offsets = [0, 2, 0], sizes = [2, 1, 16], strides = [1, 1, 1]} : vector<2x4x16xf32> to vector<2x1x16xf32>
    %264 = vector.broadcast %262 : vector<1x4x1xf32> to vector<2x4x16xf32>
    %265 = vector.broadcast %263 : vector<2x1x16xf32> to vector<2x4x16xf32>
    %266 = arith.mulf %264, %265 : vector<2x4x16xf32>
    %267 = arith.addf %259, %266 : vector<2x4x16xf32>
    %268 = vector.extract_strided_slice %142 {offsets = [3, 3, 0, 0], sizes = [1, 1, 4, 1], strides = [1, 1, 1, 1]} : vector<9x4x4x1xf32> to vector<1x1x4x1xf32>
    %269 = vector.shape_cast %268 : vector<1x1x4x1xf32> to vector<4x1xf32>
    %270 = vector.shape_cast %269 : vector<4x1xf32> to vector<1x4x1xf32>
    %271 = vector.extract_strided_slice %243 {offsets = [0, 3, 0], sizes = [2, 1, 16], strides = [1, 1, 1]} : vector<2x4x16xf32> to vector<2x1x16xf32>
    %272 = vector.broadcast %270 : vector<1x4x1xf32> to vector<2x4x16xf32>
    %273 = vector.broadcast %271 : vector<2x1x16xf32> to vector<2x4x16xf32>
    %274 = arith.mulf %272, %273 : vector<2x4x16xf32>
    %275 = arith.addf %267, %274 : vector<2x4x16xf32>
    %276 = vector.extract_strided_slice %0 {offsets = [0, 0, 4], sizes = [2, 4, 16], strides = [1, 1, 1]} : vector<2x4x24xf32> to vector<2x4x16xf32>
    %277 = vector.extract_strided_slice %142 {offsets = [4, 0, 0, 0], sizes = [1, 1, 4, 1], strides = [1, 1, 1, 1]} : vector<9x4x4x1xf32> to vector<1x1x4x1xf32>
    %278 = vector.shape_cast %277 : vector<1x1x4x1xf32> to vector<4x1xf32>
    %279 = vector.shape_cast %278 : vector<4x1xf32> to vector<1x4x1xf32>
    %280 = vector.extract_strided_slice %276 {offsets = [0, 0, 0], sizes = [2, 1, 16], strides = [1, 1, 1]} : vector<2x4x16xf32> to vector<2x1x16xf32>
    %281 = vector.broadcast %279 : vector<1x4x1xf32> to vector<2x4x16xf32>
    %282 = vector.broadcast %280 : vector<2x1x16xf32> to vector<2x4x16xf32>
    %283 = arith.mulf %281, %282 : vector<2x4x16xf32>
    %284 = arith.addf %275, %283 : vector<2x4x16xf32>
    %285 = vector.extract_strided_slice %142 {offsets = [4, 1, 0, 0], sizes = [1, 1, 4, 1], strides = [1, 1, 1, 1]} : vector<9x4x4x1xf32> to vector<1x1x4x1xf32>
    %286 = vector.shape_cast %285 : vector<1x1x4x1xf32> to vector<4x1xf32>
    %287 = vector.shape_cast %286 : vector<4x1xf32> to vector<1x4x1xf32>
    %288 = vector.extract_strided_slice %276 {offsets = [0, 1, 0], sizes = [2, 1, 16], strides = [1, 1, 1]} : vector<2x4x16xf32> to vector<2x1x16xf32>
    %289 = vector.broadcast %287 : vector<1x4x1xf32> to vector<2x4x16xf32>
    %290 = vector.broadcast %288 : vector<2x1x16xf32> to vector<2x4x16xf32>
    %291 = arith.mulf %289, %290 : vector<2x4x16xf32>
    %292 = arith.addf %284, %291 : vector<2x4x16xf32>
    %293 = vector.extract_strided_slice %142 {offsets = [4, 2, 0, 0], sizes = [1, 1, 4, 1], strides = [1, 1, 1, 1]} : vector<9x4x4x1xf32> to vector<1x1x4x1xf32>
    %294 = vector.shape_cast %293 : vector<1x1x4x1xf32> to vector<4x1xf32>
    %295 = vector.shape_cast %294 : vector<4x1xf32> to vector<1x4x1xf32>
    %296 = vector.extract_strided_slice %276 {offsets = [0, 2, 0], sizes = [2, 1, 16], strides = [1, 1, 1]} : vector<2x4x16xf32> to vector<2x1x16xf32>
    %297 = vector.broadcast %295 : vector<1x4x1xf32> to vector<2x4x16xf32>
    %298 = vector.broadcast %296 : vector<2x1x16xf32> to vector<2x4x16xf32>
    %299 = arith.mulf %297, %298 : vector<2x4x16xf32>
    %300 = arith.addf %292, %299 : vector<2x4x16xf32>
    %301 = vector.extract_strided_slice %142 {offsets = [4, 3, 0, 0], sizes = [1, 1, 4, 1], strides = [1, 1, 1, 1]} : vector<9x4x4x1xf32> to vector<1x1x4x1xf32>
    %302 = vector.shape_cast %301 : vector<1x1x4x1xf32> to vector<4x1xf32>
    %303 = vector.shape_cast %302 : vector<4x1xf32> to vector<1x4x1xf32>
    %304 = vector.extract_strided_slice %276 {offsets = [0, 3, 0], sizes = [2, 1, 16], strides = [1, 1, 1]} : vector<2x4x16xf32> to vector<2x1x16xf32>
    %305 = vector.broadcast %303 : vector<1x4x1xf32> to vector<2x4x16xf32>
    %306 = vector.broadcast %304 : vector<2x1x16xf32> to vector<2x4x16xf32>
    %307 = arith.mulf %305, %306 : vector<2x4x16xf32>
    %308 = arith.addf %300, %307 : vector<2x4x16xf32>
    %309 = vector.extract_strided_slice %0 {offsets = [0, 0, 5], sizes = [2, 4, 16], strides = [1, 1, 1]} : vector<2x4x24xf32> to vector<2x4x16xf32>
    %310 = vector.extract_strided_slice %142 {offsets = [5, 0, 0, 0], sizes = [1, 1, 4, 1], strides = [1, 1, 1, 1]} : vector<9x4x4x1xf32> to vector<1x1x4x1xf32>
    %311 = vector.shape_cast %310 : vector<1x1x4x1xf32> to vector<4x1xf32>
    %312 = vector.shape_cast %311 : vector<4x1xf32> to vector<1x4x1xf32>
    %313 = vector.extract_strided_slice %309 {offsets = [0, 0, 0], sizes = [2, 1, 16], strides = [1, 1, 1]} : vector<2x4x16xf32> to vector<2x1x16xf32>
    %314 = vector.broadcast %312 : vector<1x4x1xf32> to vector<2x4x16xf32>
    %315 = vector.broadcast %313 : vector<2x1x16xf32> to vector<2x4x16xf32>
    %316 = arith.mulf %314, %315 : vector<2x4x16xf32>
    %317 = arith.addf %308, %316 : vector<2x4x16xf32>
    %318 = vector.extract_strided_slice %142 {offsets = [5, 1, 0, 0], sizes = [1, 1, 4, 1], strides = [1, 1, 1, 1]} : vector<9x4x4x1xf32> to vector<1x1x4x1xf32>
    %319 = vector.shape_cast %318 : vector<1x1x4x1xf32> to vector<4x1xf32>
    %320 = vector.shape_cast %319 : vector<4x1xf32> to vector<1x4x1xf32>
    %321 = vector.extract_strided_slice %309 {offsets = [0, 1, 0], sizes = [2, 1, 16], strides = [1, 1, 1]} : vector<2x4x16xf32> to vector<2x1x16xf32>
    %322 = vector.broadcast %320 : vector<1x4x1xf32> to vector<2x4x16xf32>
    %323 = vector.broadcast %321 : vector<2x1x16xf32> to vector<2x4x16xf32>
    %324 = arith.mulf %322, %323 : vector<2x4x16xf32>
    %325 = arith.addf %317, %324 : vector<2x4x16xf32>
    %326 = vector.extract_strided_slice %142 {offsets = [5, 2, 0, 0], sizes = [1, 1, 4, 1], strides = [1, 1, 1, 1]} : vector<9x4x4x1xf32> to vector<1x1x4x1xf32>
    %327 = vector.shape_cast %326 : vector<1x1x4x1xf32> to vector<4x1xf32>
    %328 = vector.shape_cast %327 : vector<4x1xf32> to vector<1x4x1xf32>
    %329 = vector.extract_strided_slice %309 {offsets = [0, 2, 0], sizes = [2, 1, 16], strides = [1, 1, 1]} : vector<2x4x16xf32> to vector<2x1x16xf32>
    %330 = vector.broadcast %328 : vector<1x4x1xf32> to vector<2x4x16xf32>
    %331 = vector.broadcast %329 : vector<2x1x16xf32> to vector<2x4x16xf32>
    %332 = arith.mulf %330, %331 : vector<2x4x16xf32>
    %333 = arith.addf %325, %332 : vector<2x4x16xf32>
    %334 = vector.extract_strided_slice %142 {offsets = [5, 3, 0, 0], sizes = [1, 1, 4, 1], strides = [1, 1, 1, 1]} : vector<9x4x4x1xf32> to vector<1x1x4x1xf32>
    %335 = vector.shape_cast %334 : vector<1x1x4x1xf32> to vector<4x1xf32>
    %336 = vector.shape_cast %335 : vector<4x1xf32> to vector<1x4x1xf32>
    %337 = vector.extract_strided_slice %309 {offsets = [0, 3, 0], sizes = [2, 1, 16], strides = [1, 1, 1]} : vector<2x4x16xf32> to vector<2x1x16xf32>
    %338 = vector.broadcast %336 : vector<1x4x1xf32> to vector<2x4x16xf32>
    %339 = vector.broadcast %337 : vector<2x1x16xf32> to vector<2x4x16xf32>
    %340 = arith.mulf %338, %339 : vector<2x4x16xf32>
    %341 = arith.addf %333, %340 : vector<2x4x16xf32>
    %342 = vector.extract_strided_slice %0 {offsets = [0, 0, 6], sizes = [2, 4, 16], strides = [1, 1, 1]} : vector<2x4x24xf32> to vector<2x4x16xf32>
    %343 = vector.extract_strided_slice %142 {offsets = [6, 0, 0, 0], sizes = [1, 1, 4, 1], strides = [1, 1, 1, 1]} : vector<9x4x4x1xf32> to vector<1x1x4x1xf32>
    %344 = vector.shape_cast %343 : vector<1x1x4x1xf32> to vector<4x1xf32>
    %345 = vector.shape_cast %344 : vector<4x1xf32> to vector<1x4x1xf32>
    %346 = vector.extract_strided_slice %342 {offsets = [0, 0, 0], sizes = [2, 1, 16], strides = [1, 1, 1]} : vector<2x4x16xf32> to vector<2x1x16xf32>
    %347 = vector.broadcast %345 : vector<1x4x1xf32> to vector<2x4x16xf32>
    %348 = vector.broadcast %346 : vector<2x1x16xf32> to vector<2x4x16xf32>
    %349 = arith.mulf %347, %348 : vector<2x4x16xf32>
    %350 = arith.addf %341, %349 : vector<2x4x16xf32>
    %351 = vector.extract_strided_slice %142 {offsets = [6, 1, 0, 0], sizes = [1, 1, 4, 1], strides = [1, 1, 1, 1]} : vector<9x4x4x1xf32> to vector<1x1x4x1xf32>
    %352 = vector.shape_cast %351 : vector<1x1x4x1xf32> to vector<4x1xf32>
    %353 = vector.shape_cast %352 : vector<4x1xf32> to vector<1x4x1xf32>
    %354 = vector.extract_strided_slice %342 {offsets = [0, 1, 0], sizes = [2, 1, 16], strides = [1, 1, 1]} : vector<2x4x16xf32> to vector<2x1x16xf32>
    %355 = vector.broadcast %353 : vector<1x4x1xf32> to vector<2x4x16xf32>
    %356 = vector.broadcast %354 : vector<2x1x16xf32> to vector<2x4x16xf32>
    %357 = arith.mulf %355, %356 : vector<2x4x16xf32>
    %358 = arith.addf %350, %357 : vector<2x4x16xf32>
    %359 = vector.extract_strided_slice %142 {offsets = [6, 2, 0, 0], sizes = [1, 1, 4, 1], strides = [1, 1, 1, 1]} : vector<9x4x4x1xf32> to vector<1x1x4x1xf32>
    %360 = vector.shape_cast %359 : vector<1x1x4x1xf32> to vector<4x1xf32>
    %361 = vector.shape_cast %360 : vector<4x1xf32> to vector<1x4x1xf32>
    %362 = vector.extract_strided_slice %342 {offsets = [0, 2, 0], sizes = [2, 1, 16], strides = [1, 1, 1]} : vector<2x4x16xf32> to vector<2x1x16xf32>
    %363 = vector.broadcast %361 : vector<1x4x1xf32> to vector<2x4x16xf32>
    %364 = vector.broadcast %362 : vector<2x1x16xf32> to vector<2x4x16xf32>
    %365 = arith.mulf %363, %364 : vector<2x4x16xf32>
    %366 = arith.addf %358, %365 : vector<2x4x16xf32>
    %367 = vector.extract_strided_slice %142 {offsets = [6, 3, 0, 0], sizes = [1, 1, 4, 1], strides = [1, 1, 1, 1]} : vector<9x4x4x1xf32> to vector<1x1x4x1xf32>
    %368 = vector.shape_cast %367 : vector<1x1x4x1xf32> to vector<4x1xf32>
    %369 = vector.shape_cast %368 : vector<4x1xf32> to vector<1x4x1xf32>
    %370 = vector.extract_strided_slice %342 {offsets = [0, 3, 0], sizes = [2, 1, 16], strides = [1, 1, 1]} : vector<2x4x16xf32> to vector<2x1x16xf32>
    %371 = vector.broadcast %369 : vector<1x4x1xf32> to vector<2x4x16xf32>
    %372 = vector.broadcast %370 : vector<2x1x16xf32> to vector<2x4x16xf32>
    %373 = arith.mulf %371, %372 : vector<2x4x16xf32>
    %374 = arith.addf %366, %373 : vector<2x4x16xf32>
    %375 = vector.extract_strided_slice %0 {offsets = [0, 0, 7], sizes = [2, 4, 16], strides = [1, 1, 1]} : vector<2x4x24xf32> to vector<2x4x16xf32>
    %376 = vector.extract_strided_slice %142 {offsets = [7, 0, 0, 0], sizes = [1, 1, 4, 1], strides = [1, 1, 1, 1]} : vector<9x4x4x1xf32> to vector<1x1x4x1xf32>
    %377 = vector.shape_cast %376 : vector<1x1x4x1xf32> to vector<4x1xf32>
    %378 = vector.shape_cast %377 : vector<4x1xf32> to vector<1x4x1xf32>
    %379 = vector.extract_strided_slice %375 {offsets = [0, 0, 0], sizes = [2, 1, 16], strides = [1, 1, 1]} : vector<2x4x16xf32> to vector<2x1x16xf32>
    %380 = vector.broadcast %378 : vector<1x4x1xf32> to vector<2x4x16xf32>
    %381 = vector.broadcast %379 : vector<2x1x16xf32> to vector<2x4x16xf32>
    %382 = arith.mulf %380, %381 : vector<2x4x16xf32>
    %383 = arith.addf %374, %382 : vector<2x4x16xf32>
    %384 = vector.extract_strided_slice %142 {offsets = [7, 1, 0, 0], sizes = [1, 1, 4, 1], strides = [1, 1, 1, 1]} : vector<9x4x4x1xf32> to vector<1x1x4x1xf32>
    %385 = vector.shape_cast %384 : vector<1x1x4x1xf32> to vector<4x1xf32>
    %386 = vector.shape_cast %385 : vector<4x1xf32> to vector<1x4x1xf32>
    %387 = vector.extract_strided_slice %375 {offsets = [0, 1, 0], sizes = [2, 1, 16], strides = [1, 1, 1]} : vector<2x4x16xf32> to vector<2x1x16xf32>
    %388 = vector.broadcast %386 : vector<1x4x1xf32> to vector<2x4x16xf32>
    %389 = vector.broadcast %387 : vector<2x1x16xf32> to vector<2x4x16xf32>
    %390 = arith.mulf %388, %389 : vector<2x4x16xf32>
    %391 = arith.addf %383, %390 : vector<2x4x16xf32>
    %392 = vector.extract_strided_slice %142 {offsets = [7, 2, 0, 0], sizes = [1, 1, 4, 1], strides = [1, 1, 1, 1]} : vector<9x4x4x1xf32> to vector<1x1x4x1xf32>
    %393 = vector.shape_cast %392 : vector<1x1x4x1xf32> to vector<4x1xf32>
    %394 = vector.shape_cast %393 : vector<4x1xf32> to vector<1x4x1xf32>
    %395 = vector.extract_strided_slice %375 {offsets = [0, 2, 0], sizes = [2, 1, 16], strides = [1, 1, 1]} : vector<2x4x16xf32> to vector<2x1x16xf32>
    %396 = vector.broadcast %394 : vector<1x4x1xf32> to vector<2x4x16xf32>
    %397 = vector.broadcast %395 : vector<2x1x16xf32> to vector<2x4x16xf32>
    %398 = arith.mulf %396, %397 : vector<2x4x16xf32>
    %399 = arith.addf %391, %398 : vector<2x4x16xf32>
    %400 = vector.extract_strided_slice %142 {offsets = [7, 3, 0, 0], sizes = [1, 1, 4, 1], strides = [1, 1, 1, 1]} : vector<9x4x4x1xf32> to vector<1x1x4x1xf32>
    %401 = vector.shape_cast %400 : vector<1x1x4x1xf32> to vector<4x1xf32>
    %402 = vector.shape_cast %401 : vector<4x1xf32> to vector<1x4x1xf32>
    %403 = vector.extract_strided_slice %375 {offsets = [0, 3, 0], sizes = [2, 1, 16], strides = [1, 1, 1]} : vector<2x4x16xf32> to vector<2x1x16xf32>
    %404 = vector.broadcast %402 : vector<1x4x1xf32> to vector<2x4x16xf32>
    %405 = vector.broadcast %403 : vector<2x1x16xf32> to vector<2x4x16xf32>
    %406 = arith.mulf %404, %405 : vector<2x4x16xf32>
    %407 = arith.addf %399, %406 : vector<2x4x16xf32>
    %408 = vector.extract_strided_slice %0 {offsets = [0, 0, 8], sizes = [2, 4, 16], strides = [1, 1, 1]} : vector<2x4x24xf32> to vector<2x4x16xf32>
    %409 = vector.extract_strided_slice %142 {offsets = [8, 0, 0, 0], sizes = [1, 1, 4, 1], strides = [1, 1, 1, 1]} : vector<9x4x4x1xf32> to vector<1x1x4x1xf32>
    %410 = vector.shape_cast %409 : vector<1x1x4x1xf32> to vector<4x1xf32>
    %411 = vector.shape_cast %410 : vector<4x1xf32> to vector<1x4x1xf32>
    %412 = vector.extract_strided_slice %408 {offsets = [0, 0, 0], sizes = [2, 1, 16], strides = [1, 1, 1]} : vector<2x4x16xf32> to vector<2x1x16xf32>
    %413 = vector.broadcast %411 : vector<1x4x1xf32> to vector<2x4x16xf32>
    %414 = vector.broadcast %412 : vector<2x1x16xf32> to vector<2x4x16xf32>
    %415 = arith.mulf %413, %414 : vector<2x4x16xf32>
    %416 = arith.addf %407, %415 : vector<2x4x16xf32>
    %417 = vector.extract_strided_slice %142 {offsets = [8, 1, 0, 0], sizes = [1, 1, 4, 1], strides = [1, 1, 1, 1]} : vector<9x4x4x1xf32> to vector<1x1x4x1xf32>
    %418 = vector.shape_cast %417 : vector<1x1x4x1xf32> to vector<4x1xf32>
    %419 = vector.shape_cast %418 : vector<4x1xf32> to vector<1x4x1xf32>
    %420 = vector.extract_strided_slice %408 {offsets = [0, 1, 0], sizes = [2, 1, 16], strides = [1, 1, 1]} : vector<2x4x16xf32> to vector<2x1x16xf32>
    %421 = vector.broadcast %419 : vector<1x4x1xf32> to vector<2x4x16xf32>
    %422 = vector.broadcast %420 : vector<2x1x16xf32> to vector<2x4x16xf32>
    %423 = arith.mulf %421, %422 : vector<2x4x16xf32>
    %424 = arith.addf %416, %423 : vector<2x4x16xf32>
    %425 = vector.extract_strided_slice %142 {offsets = [8, 2, 0, 0], sizes = [1, 1, 4, 1], strides = [1, 1, 1, 1]} : vector<9x4x4x1xf32> to vector<1x1x4x1xf32>
    %426 = vector.shape_cast %425 : vector<1x1x4x1xf32> to vector<4x1xf32>
    %427 = vector.shape_cast %426 : vector<4x1xf32> to vector<1x4x1xf32>
    %428 = vector.extract_strided_slice %408 {offsets = [0, 2, 0], sizes = [2, 1, 16], strides = [1, 1, 1]} : vector<2x4x16xf32> to vector<2x1x16xf32>
    %429 = vector.broadcast %427 : vector<1x4x1xf32> to vector<2x4x16xf32>
    %430 = vector.broadcast %428 : vector<2x1x16xf32> to vector<2x4x16xf32>
    %431 = arith.mulf %429, %430 : vector<2x4x16xf32>
    %432 = arith.addf %424, %431 : vector<2x4x16xf32>
    %433 = vector.extract_strided_slice %142 {offsets = [8, 3, 0, 0], sizes = [1, 1, 4, 1], strides = [1, 1, 1, 1]} : vector<9x4x4x1xf32> to vector<1x1x4x1xf32>
    %434 = vector.shape_cast %433 : vector<1x1x4x1xf32> to vector<4x1xf32>
    %435 = vector.shape_cast %434 : vector<4x1xf32> to vector<1x4x1xf32>
    %436 = vector.extract_strided_slice %408 {offsets = [0, 3, 0], sizes = [2, 1, 16], strides = [1, 1, 1]} : vector<2x4x16xf32> to vector<2x1x16xf32>
    %437 = vector.broadcast %435 : vector<1x4x1xf32> to vector<2x4x16xf32>
    %438 = vector.broadcast %436 : vector<2x1x16xf32> to vector<2x4x16xf32>
    %439 = arith.mulf %437, %438 : vector<2x4x16xf32>
    %440 = arith.addf %432, %439 : vector<2x4x16xf32>
    %c0_27 = arith.constant 0 : index
    %c0_28 = arith.constant 0 : index
    %441 = vector.load %arg7[%c0_27, %c0_28] : memref<4x1xf32, #tpu.memory_space<vmem>>, vector<4x1xf32>
    %442 = vector.shape_cast %441 : vector<4x1xf32> to vector<1x4x1xf32>
    %443 = vector.broadcast %442 : vector<1x4x1xf32> to vector<2x4x16xf32>
    %444 = arith.addf %440, %443 : vector<2x4x16xf32>
    %cst_29 = arith.constant dense<0.000000e+00> : vector<4xf32>
    %445 = vector.multi_reduction <add>, %444, %cst_29 [0, 2] : vector<2x4x16xf32> to vector<4xf32>
    %446 = vector.shape_cast %445 : vector<4xf32> to vector<1x4x1xf32>
    %cst_30 = arith.constant 3.200000e+01 : f32
    %447 = vector.broadcast %cst_30 : f32 to vector<1x4x1xf32>
    %448 = arith.divf %446, %447 : vector<1x4x1xf32>
    %449 = vector.broadcast %448 : vector<1x4x1xf32> to vector<2x4x16xf32>
    %450 = arith.subf %444, %449 : vector<2x4x16xf32>
    %451 = arith.mulf %450, %450 : vector<2x4x16xf32>
    %cst_31 = arith.constant dense<0.000000e+00> : vector<4xf32>
    %452 = vector.multi_reduction <add>, %451, %cst_31 [0, 2] : vector<2x4x16xf32> to vector<4xf32>
    %453 = vector.shape_cast %452 : vector<4xf32> to vector<1x4x1xf32>
    %cst_32 = arith.constant 3.200000e+01 : f32
    %454 = vector.broadcast %cst_32 : f32 to vector<1x4x1xf32>
    %455 = arith.divf %453, %454 : vector<1x4x1xf32>
    %456 = vector.broadcast %448 : vector<1x4x1xf32> to vector<2x4x16xf32>
    %457 = arith.subf %444, %456 : vector<2x4x16xf32>
    %cst_33 = arith.constant 9.99999974E-6 : f32
    %458 = vector.broadcast %cst_33 : f32 to vector<1x4x1xf32>
    %459 = arith.addf %455, %458 : vector<1x4x1xf32>
    %460 = math.rsqrt %459 : vector<1x4x1xf32>
    %461 = vector.broadcast %460 : vector<1x4x1xf32> to vector<2x4x16xf32>
    %462 = arith.mulf %457, %461 : vector<2x4x16xf32>
    %c0_34 = arith.constant 0 : index
    %c0_35 = arith.constant 0 : index
    %463 = vector.load %arg8[%c0_34, %c0_35] : memref<4x1xf32, #tpu.memory_space<vmem>>, vector<4x1xf32>
    %464 = vector.shape_cast %463 : vector<4x1xf32> to vector<1x4x1xf32>
    %465 = vector.broadcast %464 : vector<1x4x1xf32> to vector<2x4x16xf32>
    %466 = arith.mulf %462, %465 : vector<2x4x16xf32>
    %c0_36 = arith.constant 0 : index
    %c0_37 = arith.constant 0 : index
    %467 = vector.load %arg9[%c0_36, %c0_37] : memref<4x1xf32, #tpu.memory_space<vmem>>, vector<4x1xf32>
    %468 = vector.shape_cast %467 : vector<4x1xf32> to vector<1x4x1xf32>
    %469 = vector.broadcast %468 : vector<1x4x1xf32> to vector<2x4x16xf32>
    %470 = arith.addf %466, %469 : vector<2x4x16xf32>
    %cst_38 = arith.constant dense<0xFF800000> : vector<2x4xf32>
    %471 = vector.multi_reduction <maximumf>, %470, %cst_38 [2] : vector<2x4x16xf32> to vector<2x4xf32>
    %472 = vector.shape_cast %471 : vector<2x4xf32> to vector<2x4x1xf32>
    %473 = vector.broadcast %472 : vector<2x4x1xf32> to vector<2x4x16xf32>
    %474 = arith.subf %470, %473 : vector<2x4x16xf32>
    %475 = math.exp %474 : vector<2x4x16xf32>
    %cst_39 = arith.constant dense<0.000000e+00> : vector<2x4xf32>
    %476 = vector.multi_reduction <add>, %475, %cst_39 [2] : vector<2x4x16xf32> to vector<2x4xf32>
    %477 = vector.shape_cast %476 : vector<2x4xf32> to vector<2x4x1xf32>
    %478 = vector.broadcast %477 : vector<2x4x1xf32> to vector<2x4x16xf32>
    %479 = arith.divf %475, %478 : vector<2x4x16xf32>
    %c0_40 = arith.constant 0 : index
    %c0_41 = arith.constant 0 : index
    %c0_42 = arith.constant 0 : index
    %480 = vector.load %arg11[%c0_40, %c0_41, %c0_42] : memref<2x4x16xf32, #tpu.memory_space<vmem>>, vector<2x4x16xf32>
    tpu.vector_store %arg11[%c0_40, %c0_41, %c0_42], %479 {strides = array<i32>} : memref<2x4x16xf32, #tpu.memory_space<vmem>>, vector<2x4x16xf32>,
    return
  }
  func.func @transform_0(%arg0: i32) -> (i32, i32, i32) {
    %c0_i32 = arith.constant 0 : i32
    %c0_i32_0 = arith.constant 0 : i32
    %c0_i32_1 = arith.constant 0 : i32
    %c0_i32_2 = arith.constant 0 : i32
    return %c0_i32, %c0_i32_0, %c0_i32_1 : i32, i32, i32
  }
  func.func @transform_1(%arg0: i32) -> (i32, i32, i32, i32) {
    %c0_i32 = arith.constant 0 : i32
    %c0_i32_0 = arith.constant 0 : i32
    %c0_i32_1 = arith.constant 0 : i32
    %c0_i32_2 = arith.constant 0 : i32
    return %c0_i32, %c0_i32_0, %arg0, %c0_i32_1 : i32, i32, i32, i32
  }
  func.func @transform_2(%arg0: i32) -> (i32, i32) {
    %c0_i32 = arith.constant 0 : i32
    %c0_i32_0 = arith.constant 0 : i32
    return %arg0, %c0_i32 : i32, i32
  }
  func.func @transform_3(%arg0: i32) -> (i32, i32) {
    %c0_i32 = arith.constant 0 : i32
    %c0_i32_0 = arith.constant 0 : i32
    return %arg0, %c0_i32 : i32, i32
  }
  func.func @transform_4(%arg0: i32) -> (i32, i32) {
    %c0_i32 = arith.constant 0 : i32
    %c0_i32_0 = arith.constant 0 : i32
    return %arg0, %c0_i32 : i32, i32
  }
  func.func @transform_5(%arg0: i32) -> (i32, i32, i32, i32) {
    %c0_i32 = arith.constant 0 : i32
    %c0_i32_0 = arith.constant 0 : i32
    %c0_i32_1 = arith.constant 0 : i32
    %c0_i32_2 = arith.constant 0 : i32
    return %c0_i32, %c0_i32_0, %arg0, %c0_i32_1 : i32, i32, i32, i32
  }
  func.func @transform_6(%arg0: i32) -> (i32, i32) {
    %c0_i32 = arith.constant 0 : i32
    %c0_i32_0 = arith.constant 0 : i32
    return %arg0, %c0_i32 : i32, i32
  }
  func.func @transform_7(%arg0: i32) -> (i32, i32) {
    %c0_i32 = arith.constant 0 : i32
    %c0_i32_0 = arith.constant 0 : i32
    return %arg0, %c0_i32 : i32, i32
  }
  func.func @transform_8(%arg0: i32) -> (i32, i32) {
    %c0_i32 = arith.constant 0 : i32
    %c0_i32_0 = arith.constant 0 : i32
    return %arg0, %c0_i32 : i32, i32
  }
  func.func @transform_9(%arg0: i32) -> (i32, i32, i32) {
    %c0_i32 = arith.constant 0 : i32
    %c0_i32_0 = arith.constant 0 : i32
    %c0_i32_1 = arith.constant 0 : i32
    return %c0_i32, %arg0, %c0_i32_0 : i32, i32, i32
  }
  func.func @transform_10(%arg0: i32) -> (i32, i32, i32) {
    %c0_i32 = arith.constant 0 : i32
    %c0_i32_0 = arith.constant 0 : i32
    %c0_i32_1 = arith.constant 0 : i32
    return %c0_i32, %arg0, %c0_i32_0 : i32, i32, i32
  }
}

module attributes {stable_mosaic.version = 11 : i64} {
  func.func @_proj_kernel(%arg0: i32, %arg1: memref<8x8x32xf32, #tpu.memory_space<vmem>>, %arg2: memref<1x32xf32, #tpu.memory_space<vmem>>, %arg3: memref<8x8xf32, #tpu.memory_space<vmem>>) attributes {dimension_semantics = [#tpu.dimension_semantics<parallel>], iteration_bounds = array<i64: 1>, scalar_prefetch = 0 : i64, scratch_operands = 0 : i64, tpu.core_type = #tpu.core_type<tc>, window_params = [{transform_indices = @transform_0, window_bounds = array<i64: 8, 8, 32>}, {pipeline_mode = #tpu.pipeline_mode<synchronous>, transform_indices = @transform_1, window_bounds = array<i64: 1, 32>}, {transform_indices = @transform_2, window_bounds = array<i64: 8, 8>}]} {
    %c0 = arith.constant 0 : index
    %c0_0 = arith.constant 0 : index
    %c0_1 = arith.constant 0 : index
    %0 = vector.load %arg1[%c0, %c0_0, %c0_1] : memref<8x8x32xf32, #tpu.memory_space<vmem>>, vector<8x8x32xf32>
    %c0_2 = arith.constant 0 : index
    %c0_3 = arith.constant 0 : index
    %1 = vector.load %arg2[%c0_2, %c0_3] : memref<1x32xf32, #tpu.memory_space<vmem>>, vector<1x32xf32>
    %2 = vector.shape_cast %1 : vector<1x32xf32> to vector<1x1x32xf32>
    %3 = vector.broadcast %2 : vector<1x1x32xf32> to vector<8x8x32xf32>
    %4 = arith.mulf %0, %3 : vector<8x8x32xf32>
    %cst = arith.constant dense<0.000000e+00> : vector<8x8xf32>
    %5 = vector.multi_reduction <add>, %4, %cst [2] : vector<8x8x32xf32> to vector<8x8xf32>
    %c0_4 = arith.constant 0 : index
    %c0_5 = arith.constant 0 : index
    %6 = vector.load %arg3[%c0_4, %c0_5] : memref<8x8xf32, #tpu.memory_space<vmem>>, vector<8x8xf32>
    tpu.vector_store %arg3[%c0_4, %c0_5], %5 {strides = array<i32>} : memref<8x8xf32, #tpu.memory_space<vmem>>, vector<8x8xf32>,
    return
  }
  func.func @transform_0(%arg0: i32) -> (i32, i32, i32) {
    %c0_i32 = arith.constant 0 : i32
    %c0_i32_0 = arith.constant 0 : i32
    %c0_i32_1 = arith.constant 0 : i32
    return %arg0, %c0_i32, %c0_i32_0 : i32, i32, i32
  }
  func.func @transform_1(%arg0: i32) -> (i32, i32) {
    %c0_i32 = arith.constant 0 : i32
    %c0_i32_0 = arith.constant 0 : i32
    %c0_i32_1 = arith.constant 0 : i32
    return %c0_i32, %c0_i32_0 : i32, i32
  }
  func.func @transform_2(%arg0: i32) -> (i32, i32) {
    %c0_i32 = arith.constant 0 : i32
    %c0_i32_0 = arith.constant 0 : i32
    return %arg0, %c0_i32 : i32, i32
  }
}

module attributes {stable_mosaic.version = 11 : i64} {
  func.func @_conv_bn_softmax_kernel(%arg0: i32, %arg1: memref<2x4x16xf32, #tpu.memory_space<vmem>>, %arg2: memref<3x4x4x1xf32, #tpu.memory_space<vmem>>, %arg3: memref<4x1xf32, #tpu.memory_space<vmem>>, %arg4: memref<4x1xf32, #tpu.memory_space<vmem>>, %arg5: memref<4x1xf32, #tpu.memory_space<vmem>>, %arg6: memref<9x4x4x1xf32, #tpu.memory_space<vmem>>, %arg7: memref<4x1xf32, #tpu.memory_space<vmem>>, %arg8: memref<4x1xf32, #tpu.memory_space<vmem>>, %arg9: memref<4x1xf32, #tpu.memory_space<vmem>>, %arg10: memref<2x4x8xf32, #tpu.memory_space<vmem>>, %arg11: memref<2x4x8xf32, #tpu.memory_space<vmem>>) attributes {dimension_semantics = [#tpu.dimension_semantics<parallel>], iteration_bounds = array<i64: 1>, scalar_prefetch = 0 : i64, scratch_operands = 0 : i64, tpu.core_type = #tpu.core_type<tc>, window_params = [{pipeline_mode = #tpu.pipeline_mode<synchronous>, transform_indices = @transform_0, window_bounds = array<i64: 2, 4, 16>}, {transform_indices = @transform_1, window_bounds = array<i64: 3, 4, 4, 1>}, {transform_indices = @transform_2, window_bounds = array<i64: 4, 1>}, {transform_indices = @transform_3, window_bounds = array<i64: 4, 1>}, {transform_indices = @transform_4, window_bounds = array<i64: 4, 1>}, {transform_indices = @transform_5, window_bounds = array<i64: 9, 4, 4, 1>}, {transform_indices = @transform_6, window_bounds = array<i64: 4, 1>}, {transform_indices = @transform_7, window_bounds = array<i64: 4, 1>}, {transform_indices = @transform_8, window_bounds = array<i64: 4, 1>}, {transform_indices = @transform_9, window_bounds = array<i64: 2, 4, 8>}, {transform_indices = @transform_10, window_bounds = array<i64: 2, 4, 8>}]} {
    %c0 = arith.constant 0 : index
    %c0_0 = arith.constant 0 : index
    %c0_1 = arith.constant 0 : index
    %0 = vector.load %arg1[%c0, %c0_0, %c0_1] : memref<2x4x16xf32, #tpu.memory_space<vmem>>, vector<2x4x16xf32>
    %c0_2 = arith.constant 0 : index
    %c0_3 = arith.constant 0 : index
    %c0_4 = arith.constant 0 : index
    %c0_5 = arith.constant 0 : index
    %1 = vector.load %arg2[%c0_2, %c0_3, %c0_4, %c0_5] : memref<3x4x4x1xf32, #tpu.memory_space<vmem>>, vector<3x4x4x1xf32>
    %cst = arith.constant 0.000000e+00 : f32
    %2 = vector.broadcast %cst : f32 to vector<2x4x8xf32>
    %3 = vector.extract_strided_slice %0 {offsets = [0, 0, 3], sizes = [2, 4, 8], strides = [1, 1, 1]} : vector<2x4x16xf32> to vector<2x4x8xf32>
    %4 = vector.extract_strided_slice %1 {offsets = [0, 0, 0, 0], sizes = [1, 1, 4, 1], strides = [1, 1, 1, 1]} : vector<3x4x4x1xf32> to vector<1x1x4x1xf32>
    %5 = vector.shape_cast %4 : vector<1x1x4x1xf32> to vector<4x1xf32>
    %6 = vector.shape_cast %5 : vector<4x1xf32> to vector<1x4x1xf32>
    %7 = vector.extract_strided_slice %3 {offsets = [0, 0, 0], sizes = [2, 1, 8], strides = [1, 1, 1]} : vector<2x4x8xf32> to vector<2x1x8xf32>
    %8 = vector.broadcast %6 : vector<1x4x1xf32> to vector<2x4x8xf32>
    %9 = vector.broadcast %7 : vector<2x1x8xf32> to vector<2x4x8xf32>
    %10 = arith.mulf %8, %9 : vector<2x4x8xf32>
    %11 = arith.addf %2, %10 : vector<2x4x8xf32>
    %12 = vector.extract_strided_slice %1 {offsets = [0, 1, 0, 0], sizes = [1, 1, 4, 1], strides = [1, 1, 1, 1]} : vector<3x4x4x1xf32> to vector<1x1x4x1xf32>
    %13 = vector.shape_cast %12 : vector<1x1x4x1xf32> to vector<4x1xf32>
    %14 = vector.shape_cast %13 : vector<4x1xf32> to vector<1x4x1xf32>
    %15 = vector.extract_strided_slice %3 {offsets = [0, 1, 0], sizes = [2, 1, 8], strides = [1, 1, 1]} : vector<2x4x8xf32> to vector<2x1x8xf32>
    %16 = vector.broadcast %14 : vector<1x4x1xf32> to vector<2x4x8xf32>
    %17 = vector.broadcast %15 : vector<2x1x8xf32> to vector<2x4x8xf32>
    %18 = arith.mulf %16, %17 : vector<2x4x8xf32>
    %19 = arith.addf %11, %18 : vector<2x4x8xf32>
    %20 = vector.extract_strided_slice %1 {offsets = [0, 2, 0, 0], sizes = [1, 1, 4, 1], strides = [1, 1, 1, 1]} : vector<3x4x4x1xf32> to vector<1x1x4x1xf32>
    %21 = vector.shape_cast %20 : vector<1x1x4x1xf32> to vector<4x1xf32>
    %22 = vector.shape_cast %21 : vector<4x1xf32> to vector<1x4x1xf32>
    %23 = vector.extract_strided_slice %3 {offsets = [0, 2, 0], sizes = [2, 1, 8], strides = [1, 1, 1]} : vector<2x4x8xf32> to vector<2x1x8xf32>
    %24 = vector.broadcast %22 : vector<1x4x1xf32> to vector<2x4x8xf32>
    %25 = vector.broadcast %23 : vector<2x1x8xf32> to vector<2x4x8xf32>
    %26 = arith.mulf %24, %25 : vector<2x4x8xf32>
    %27 = arith.addf %19, %26 : vector<2x4x8xf32>
    %28 = vector.extract_strided_slice %1 {offsets = [0, 3, 0, 0], sizes = [1, 1, 4, 1], strides = [1, 1, 1, 1]} : vector<3x4x4x1xf32> to vector<1x1x4x1xf32>
    %29 = vector.shape_cast %28 : vector<1x1x4x1xf32> to vector<4x1xf32>
    %30 = vector.shape_cast %29 : vector<4x1xf32> to vector<1x4x1xf32>
    %31 = vector.extract_strided_slice %3 {offsets = [0, 3, 0], sizes = [2, 1, 8], strides = [1, 1, 1]} : vector<2x4x8xf32> to vector<2x1x8xf32>
    %32 = vector.broadcast %30 : vector<1x4x1xf32> to vector<2x4x8xf32>
    %33 = vector.broadcast %31 : vector<2x1x8xf32> to vector<2x4x8xf32>
    %34 = arith.mulf %32, %33 : vector<2x4x8xf32>
    %35 = arith.addf %27, %34 : vector<2x4x8xf32>
    %36 = vector.extract_strided_slice %0 {offsets = [0, 0, 4], sizes = [2, 4, 8], strides = [1, 1, 1]} : vector<2x4x16xf32> to vector<2x4x8xf32>
    %37 = vector.extract_strided_slice %1 {offsets = [1, 0, 0, 0], sizes = [1, 1, 4, 1], strides = [1, 1, 1, 1]} : vector<3x4x4x1xf32> to vector<1x1x4x1xf32>
    %38 = vector.shape_cast %37 : vector<1x1x4x1xf32> to vector<4x1xf32>
    %39 = vector.shape_cast %38 : vector<4x1xf32> to vector<1x4x1xf32>
    %40 = vector.extract_strided_slice %36 {offsets = [0, 0, 0], sizes = [2, 1, 8], strides = [1, 1, 1]} : vector<2x4x8xf32> to vector<2x1x8xf32>
    %41 = vector.broadcast %39 : vector<1x4x1xf32> to vector<2x4x8xf32>
    %42 = vector.broadcast %40 : vector<2x1x8xf32> to vector<2x4x8xf32>
    %43 = arith.mulf %41, %42 : vector<2x4x8xf32>
    %44 = arith.addf %35, %43 : vector<2x4x8xf32>
    %45 = vector.extract_strided_slice %1 {offsets = [1, 1, 0, 0], sizes = [1, 1, 4, 1], strides = [1, 1, 1, 1]} : vector<3x4x4x1xf32> to vector<1x1x4x1xf32>
    %46 = vector.shape_cast %45 : vector<1x1x4x1xf32> to vector<4x1xf32>
    %47 = vector.shape_cast %46 : vector<4x1xf32> to vector<1x4x1xf32>
    %48 = vector.extract_strided_slice %36 {offsets = [0, 1, 0], sizes = [2, 1, 8], strides = [1, 1, 1]} : vector<2x4x8xf32> to vector<2x1x8xf32>
    %49 = vector.broadcast %47 : vector<1x4x1xf32> to vector<2x4x8xf32>
    %50 = vector.broadcast %48 : vector<2x1x8xf32> to vector<2x4x8xf32>
    %51 = arith.mulf %49, %50 : vector<2x4x8xf32>
    %52 = arith.addf %44, %51 : vector<2x4x8xf32>
    %53 = vector.extract_strided_slice %1 {offsets = [1, 2, 0, 0], sizes = [1, 1, 4, 1], strides = [1, 1, 1, 1]} : vector<3x4x4x1xf32> to vector<1x1x4x1xf32>
    %54 = vector.shape_cast %53 : vector<1x1x4x1xf32> to vector<4x1xf32>
    %55 = vector.shape_cast %54 : vector<4x1xf32> to vector<1x4x1xf32>
    %56 = vector.extract_strided_slice %36 {offsets = [0, 2, 0], sizes = [2, 1, 8], strides = [1, 1, 1]} : vector<2x4x8xf32> to vector<2x1x8xf32>
    %57 = vector.broadcast %55 : vector<1x4x1xf32> to vector<2x4x8xf32>
    %58 = vector.broadcast %56 : vector<2x1x8xf32> to vector<2x4x8xf32>
    %59 = arith.mulf %57, %58 : vector<2x4x8xf32>
    %60 = arith.addf %52, %59 : vector<2x4x8xf32>
    %61 = vector.extract_strided_slice %1 {offsets = [1, 3, 0, 0], sizes = [1, 1, 4, 1], strides = [1, 1, 1, 1]} : vector<3x4x4x1xf32> to vector<1x1x4x1xf32>
    %62 = vector.shape_cast %61 : vector<1x1x4x1xf32> to vector<4x1xf32>
    %63 = vector.shape_cast %62 : vector<4x1xf32> to vector<1x4x1xf32>
    %64 = vector.extract_strided_slice %36 {offsets = [0, 3, 0], sizes = [2, 1, 8], strides = [1, 1, 1]} : vector<2x4x8xf32> to vector<2x1x8xf32>
    %65 = vector.broadcast %63 : vector<1x4x1xf32> to vector<2x4x8xf32>
    %66 = vector.broadcast %64 : vector<2x1x8xf32> to vector<2x4x8xf32>
    %67 = arith.mulf %65, %66 : vector<2x4x8xf32>
    %68 = arith.addf %60, %67 : vector<2x4x8xf32>
    %69 = vector.extract_strided_slice %0 {offsets = [0, 0, 5], sizes = [2, 4, 8], strides = [1, 1, 1]} : vector<2x4x16xf32> to vector<2x4x8xf32>
    %70 = vector.extract_strided_slice %1 {offsets = [2, 0, 0, 0], sizes = [1, 1, 4, 1], strides = [1, 1, 1, 1]} : vector<3x4x4x1xf32> to vector<1x1x4x1xf32>
    %71 = vector.shape_cast %70 : vector<1x1x4x1xf32> to vector<4x1xf32>
    %72 = vector.shape_cast %71 : vector<4x1xf32> to vector<1x4x1xf32>
    %73 = vector.extract_strided_slice %69 {offsets = [0, 0, 0], sizes = [2, 1, 8], strides = [1, 1, 1]} : vector<2x4x8xf32> to vector<2x1x8xf32>
    %74 = vector.broadcast %72 : vector<1x4x1xf32> to vector<2x4x8xf32>
    %75 = vector.broadcast %73 : vector<2x1x8xf32> to vector<2x4x8xf32>
    %76 = arith.mulf %74, %75 : vector<2x4x8xf32>
    %77 = arith.addf %68, %76 : vector<2x4x8xf32>
    %78 = vector.extract_strided_slice %1 {offsets = [2, 1, 0, 0], sizes = [1, 1, 4, 1], strides = [1, 1, 1, 1]} : vector<3x4x4x1xf32> to vector<1x1x4x1xf32>
    %79 = vector.shape_cast %78 : vector<1x1x4x1xf32> to vector<4x1xf32>
    %80 = vector.shape_cast %79 : vector<4x1xf32> to vector<1x4x1xf32>
    %81 = vector.extract_strided_slice %69 {offsets = [0, 1, 0], sizes = [2, 1, 8], strides = [1, 1, 1]} : vector<2x4x8xf32> to vector<2x1x8xf32>
    %82 = vector.broadcast %80 : vector<1x4x1xf32> to vector<2x4x8xf32>
    %83 = vector.broadcast %81 : vector<2x1x8xf32> to vector<2x4x8xf32>
    %84 = arith.mulf %82, %83 : vector<2x4x8xf32>
    %85 = arith.addf %77, %84 : vector<2x4x8xf32>
    %86 = vector.extract_strided_slice %1 {offsets = [2, 2, 0, 0], sizes = [1, 1, 4, 1], strides = [1, 1, 1, 1]} : vector<3x4x4x1xf32> to vector<1x1x4x1xf32>
    %87 = vector.shape_cast %86 : vector<1x1x4x1xf32> to vector<4x1xf32>
    %88 = vector.shape_cast %87 : vector<4x1xf32> to vector<1x4x1xf32>
    %89 = vector.extract_strided_slice %69 {offsets = [0, 2, 0], sizes = [2, 1, 8], strides = [1, 1, 1]} : vector<2x4x8xf32> to vector<2x1x8xf32>
    %90 = vector.broadcast %88 : vector<1x4x1xf32> to vector<2x4x8xf32>
    %91 = vector.broadcast %89 : vector<2x1x8xf32> to vector<2x4x8xf32>
    %92 = arith.mulf %90, %91 : vector<2x4x8xf32>
    %93 = arith.addf %85, %92 : vector<2x4x8xf32>
    %94 = vector.extract_strided_slice %1 {offsets = [2, 3, 0, 0], sizes = [1, 1, 4, 1], strides = [1, 1, 1, 1]} : vector<3x4x4x1xf32> to vector<1x1x4x1xf32>
    %95 = vector.shape_cast %94 : vector<1x1x4x1xf32> to vector<4x1xf32>
    %96 = vector.shape_cast %95 : vector<4x1xf32> to vector<1x4x1xf32>
    %97 = vector.extract_strided_slice %69 {offsets = [0, 3, 0], sizes = [2, 1, 8], strides = [1, 1, 1]} : vector<2x4x8xf32> to vector<2x1x8xf32>
    %98 = vector.broadcast %96 : vector<1x4x1xf32> to vector<2x4x8xf32>
    %99 = vector.broadcast %97 : vector<2x1x8xf32> to vector<2x4x8xf32>
    %100 = arith.mulf %98, %99 : vector<2x4x8xf32>
    %101 = arith.addf %93, %100 : vector<2x4x8xf32>
    %c0_6 = arith.constant 0 : index
    %c0_7 = arith.constant 0 : index
    %102 = vector.load %arg3[%c0_6, %c0_7] : memref<4x1xf32, #tpu.memory_space<vmem>>, vector<4x1xf32>
    %103 = vector.shape_cast %102 : vector<4x1xf32> to vector<1x4x1xf32>
    %104 = vector.broadcast %103 : vector<1x4x1xf32> to vector<2x4x8xf32>
    %105 = arith.addf %101, %104 : vector<2x4x8xf32>
    %cst_8 = arith.constant dense<0.000000e+00> : vector<4xf32>
    %106 = vector.multi_reduction <add>, %105, %cst_8 [0, 2] : vector<2x4x8xf32> to vector<4xf32>
    %107 = vector.shape_cast %106 : vector<4xf32> to vector<1x4x1xf32>
    %cst_9 = arith.constant 1.600000e+01 : f32
    %108 = vector.broadcast %cst_9 : f32 to vector<1x4x1xf32>
    %109 = arith.divf %107, %108 : vector<1x4x1xf32>
    %110 = vector.broadcast %109 : vector<1x4x1xf32> to vector<2x4x8xf32>
    %111 = arith.subf %105, %110 : vector<2x4x8xf32>
    %112 = arith.mulf %111, %111 : vector<2x4x8xf32>
    %cst_10 = arith.constant dense<0.000000e+00> : vector<4xf32>
    %113 = vector.multi_reduction <add>, %112, %cst_10 [0, 2] : vector<2x4x8xf32> to vector<4xf32>
    %114 = vector.shape_cast %113 : vector<4xf32> to vector<1x4x1xf32>
    %cst_11 = arith.constant 1.600000e+01 : f32
    %115 = vector.broadcast %cst_11 : f32 to vector<1x4x1xf32>
    %116 = arith.divf %114, %115 : vector<1x4x1xf32>
    %117 = vector.broadcast %109 : vector<1x4x1xf32> to vector<2x4x8xf32>
    %118 = arith.subf %105, %117 : vector<2x4x8xf32>
    %cst_12 = arith.constant 9.99999974E-6 : f32
    %119 = vector.broadcast %cst_12 : f32 to vector<1x4x1xf32>
    %120 = arith.addf %116, %119 : vector<1x4x1xf32>
    %121 = math.rsqrt %120 : vector<1x4x1xf32>
    %122 = vector.broadcast %121 : vector<1x4x1xf32> to vector<2x4x8xf32>
    %123 = arith.mulf %118, %122 : vector<2x4x8xf32>
    %c0_13 = arith.constant 0 : index
    %c0_14 = arith.constant 0 : index
    %124 = vector.load %arg4[%c0_13, %c0_14] : memref<4x1xf32, #tpu.memory_space<vmem>>, vector<4x1xf32>
    %125 = vector.shape_cast %124 : vector<4x1xf32> to vector<1x4x1xf32>
    %126 = vector.broadcast %125 : vector<1x4x1xf32> to vector<2x4x8xf32>
    %127 = arith.mulf %123, %126 : vector<2x4x8xf32>
    %c0_15 = arith.constant 0 : index
    %c0_16 = arith.constant 0 : index
    %128 = vector.load %arg5[%c0_15, %c0_16] : memref<4x1xf32, #tpu.memory_space<vmem>>, vector<4x1xf32>
    %129 = vector.shape_cast %128 : vector<4x1xf32> to vector<1x4x1xf32>
    %130 = vector.broadcast %129 : vector<1x4x1xf32> to vector<2x4x8xf32>
    %131 = arith.addf %127, %130 : vector<2x4x8xf32>
    %cst_17 = arith.constant dense<0xFF800000> : vector<2x4xf32>
    %132 = vector.multi_reduction <maximumf>, %131, %cst_17 [2] : vector<2x4x8xf32> to vector<2x4xf32>
    %133 = vector.shape_cast %132 : vector<2x4xf32> to vector<2x4x1xf32>
    %134 = vector.broadcast %133 : vector<2x4x1xf32> to vector<2x4x8xf32>
    %135 = arith.subf %131, %134 : vector<2x4x8xf32>
    %136 = math.exp %135 : vector<2x4x8xf32>
    %cst_18 = arith.constant dense<0.000000e+00> : vector<2x4xf32>
    %137 = vector.multi_reduction <add>, %136, %cst_18 [2] : vector<2x4x8xf32> to vector<2x4xf32>
    %138 = vector.shape_cast %137 : vector<2x4xf32> to vector<2x4x1xf32>
    %139 = vector.broadcast %138 : vector<2x4x1xf32> to vector<2x4x8xf32>
    %140 = arith.divf %136, %139 : vector<2x4x8xf32>
    %c0_19 = arith.constant 0 : index
    %c0_20 = arith.constant 0 : index
    %c0_21 = arith.constant 0 : index
    %141 = vector.load %arg10[%c0_19, %c0_20, %c0_21] : memref<2x4x8xf32, #tpu.memory_space<vmem>>, vector<2x4x8xf32>
    tpu.vector_store %arg10[%c0_19, %c0_20, %c0_21], %140 {strides = array<i32>} : memref<2x4x8xf32, #tpu.memory_space<vmem>>, vector<2x4x8xf32>,
    %c0_22 = arith.constant 0 : index
    %c0_23 = arith.constant 0 : index
    %c0_24 = arith.constant 0 : index
    %c0_25 = arith.constant 0 : index
    %142 = vector.load %arg6[%c0_22, %c0_23, %c0_24, %c0_25] : memref<9x4x4x1xf32, #tpu.memory_space<vmem>>, vector<9x4x4x1xf32>
    %cst_26 = arith.constant 0.000000e+00 : f32
    %143 = vector.broadcast %cst_26 : f32 to vector<2x4x8xf32>
    %144 = vector.extract_strided_slice %0 {offsets = [0, 0, 0], sizes = [2, 4, 8], strides = [1, 1, 1]} : vector<2x4x16xf32> to vector<2x4x8xf32>
    %145 = vector.extract_strided_slice %142 {offsets = [0, 0, 0, 0], sizes = [1, 1, 4, 1], strides = [1, 1, 1, 1]} : vector<9x4x4x1xf32> to vector<1x1x4x1xf32>
    %146 = vector.shape_cast %145 : vector<1x1x4x1xf32> to vector<4x1xf32>
    %147 = vector.shape_cast %146 : vector<4x1xf32> to vector<1x4x1xf32>
    %148 = vector.extract_strided_slice %144 {offsets = [0, 0, 0], sizes = [2, 1, 8], strides = [1, 1, 1]} : vector<2x4x8xf32> to vector<2x1x8xf32>
    %149 = vector.broadcast %147 : vector<1x4x1xf32> to vector<2x4x8xf32>
    %150 = vector.broadcast %148 : vector<2x1x8xf32> to vector<2x4x8xf32>
    %151 = arith.mulf %149, %150 : vector<2x4x8xf32>
    %152 = arith.addf %143, %151 : vector<2x4x8xf32>
    %153 = vector.extract_strided_slice %142 {offsets = [0, 1, 0, 0], sizes = [1, 1, 4, 1], strides = [1, 1, 1, 1]} : vector<9x4x4x1xf32> to vector<1x1x4x1xf32>
    %154 = vector.shape_cast %153 : vector<1x1x4x1xf32> to vector<4x1xf32>
    %155 = vector.shape_cast %154 : vector<4x1xf32> to vector<1x4x1xf32>
    %156 = vector.extract_strided_slice %144 {offsets = [0, 1, 0], sizes = [2, 1, 8], strides = [1, 1, 1]} : vector<2x4x8xf32> to vector<2x1x8xf32>
    %157 = vector.broadcast %155 : vector<1x4x1xf32> to vector<2x4x8xf32>
    %158 = vector.broadcast %156 : vector<2x1x8xf32> to vector<2x4x8xf32>
    %159 = arith.mulf %157, %158 : vector<2x4x8xf32>
    %160 = arith.addf %152, %159 : vector<2x4x8xf32>
    %161 = vector.extract_strided_slice %142 {offsets = [0, 2, 0, 0], sizes = [1, 1, 4, 1], strides = [1, 1, 1, 1]} : vector<9x4x4x1xf32> to vector<1x1x4x1xf32>
    %162 = vector.shape_cast %161 : vector<1x1x4x1xf32> to vector<4x1xf32>
    %163 = vector.shape_cast %162 : vector<4x1xf32> to vector<1x4x1xf32>
    %164 = vector.extract_strided_slice %144 {offsets = [0, 2, 0], sizes = [2, 1, 8], strides = [1, 1, 1]} : vector<2x4x8xf32> to vector<2x1x8xf32>
    %165 = vector.broadcast %163 : vector<1x4x1xf32> to vector<2x4x8xf32>
    %166 = vector.broadcast %164 : vector<2x1x8xf32> to vector<2x4x8xf32>
    %167 = arith.mulf %165, %166 : vector<2x4x8xf32>
    %168 = arith.addf %160, %167 : vector<2x4x8xf32>
    %169 = vector.extract_strided_slice %142 {offsets = [0, 3, 0, 0], sizes = [1, 1, 4, 1], strides = [1, 1, 1, 1]} : vector<9x4x4x1xf32> to vector<1x1x4x1xf32>
    %170 = vector.shape_cast %169 : vector<1x1x4x1xf32> to vector<4x1xf32>
    %171 = vector.shape_cast %170 : vector<4x1xf32> to vector<1x4x1xf32>
    %172 = vector.extract_strided_slice %144 {offsets = [0, 3, 0], sizes = [2, 1, 8], strides = [1, 1, 1]} : vector<2x4x8xf32> to vector<2x1x8xf32>
    %173 = vector.broadcast %171 : vector<1x4x1xf32> to vector<2x4x8xf32>
    %174 = vector.broadcast %172 : vector<2x1x8xf32> to vector<2x4x8xf32>
    %175 = arith.mulf %173, %174 : vector<2x4x8xf32>
    %176 = arith.addf %168, %175 : vector<2x4x8xf32>
    %177 = vector.extract_strided_slice %0 {offsets = [0, 0, 1], sizes = [2, 4, 8], strides = [1, 1, 1]} : vector<2x4x16xf32> to vector<2x4x8xf32>
    %178 = vector.extract_strided_slice %142 {offsets = [1, 0, 0, 0], sizes = [1, 1, 4, 1], strides = [1, 1, 1, 1]} : vector<9x4x4x1xf32> to vector<1x1x4x1xf32>
    %179 = vector.shape_cast %178 : vector<1x1x4x1xf32> to vector<4x1xf32>
    %180 = vector.shape_cast %179 : vector<4x1xf32> to vector<1x4x1xf32>
    %181 = vector.extract_strided_slice %177 {offsets = [0, 0, 0], sizes = [2, 1, 8], strides = [1, 1, 1]} : vector<2x4x8xf32> to vector<2x1x8xf32>
    %182 = vector.broadcast %180 : vector<1x4x1xf32> to vector<2x4x8xf32>
    %183 = vector.broadcast %181 : vector<2x1x8xf32> to vector<2x4x8xf32>
    %184 = arith.mulf %182, %183 : vector<2x4x8xf32>
    %185 = arith.addf %176, %184 : vector<2x4x8xf32>
    %186 = vector.extract_strided_slice %142 {offsets = [1, 1, 0, 0], sizes = [1, 1, 4, 1], strides = [1, 1, 1, 1]} : vector<9x4x4x1xf32> to vector<1x1x4x1xf32>
    %187 = vector.shape_cast %186 : vector<1x1x4x1xf32> to vector<4x1xf32>
    %188 = vector.shape_cast %187 : vector<4x1xf32> to vector<1x4x1xf32>
    %189 = vector.extract_strided_slice %177 {offsets = [0, 1, 0], sizes = [2, 1, 8], strides = [1, 1, 1]} : vector<2x4x8xf32> to vector<2x1x8xf32>
    %190 = vector.broadcast %188 : vector<1x4x1xf32> to vector<2x4x8xf32>
    %191 = vector.broadcast %189 : vector<2x1x8xf32> to vector<2x4x8xf32>
    %192 = arith.mulf %190, %191 : vector<2x4x8xf32>
    %193 = arith.addf %185, %192 : vector<2x4x8xf32>
    %194 = vector.extract_strided_slice %142 {offsets = [1, 2, 0, 0], sizes = [1, 1, 4, 1], strides = [1, 1, 1, 1]} : vector<9x4x4x1xf32> to vector<1x1x4x1xf32>
    %195 = vector.shape_cast %194 : vector<1x1x4x1xf32> to vector<4x1xf32>
    %196 = vector.shape_cast %195 : vector<4x1xf32> to vector<1x4x1xf32>
    %197 = vector.extract_strided_slice %177 {offsets = [0, 2, 0], sizes = [2, 1, 8], strides = [1, 1, 1]} : vector<2x4x8xf32> to vector<2x1x8xf32>
    %198 = vector.broadcast %196 : vector<1x4x1xf32> to vector<2x4x8xf32>
    %199 = vector.broadcast %197 : vector<2x1x8xf32> to vector<2x4x8xf32>
    %200 = arith.mulf %198, %199 : vector<2x4x8xf32>
    %201 = arith.addf %193, %200 : vector<2x4x8xf32>
    %202 = vector.extract_strided_slice %142 {offsets = [1, 3, 0, 0], sizes = [1, 1, 4, 1], strides = [1, 1, 1, 1]} : vector<9x4x4x1xf32> to vector<1x1x4x1xf32>
    %203 = vector.shape_cast %202 : vector<1x1x4x1xf32> to vector<4x1xf32>
    %204 = vector.shape_cast %203 : vector<4x1xf32> to vector<1x4x1xf32>
    %205 = vector.extract_strided_slice %177 {offsets = [0, 3, 0], sizes = [2, 1, 8], strides = [1, 1, 1]} : vector<2x4x8xf32> to vector<2x1x8xf32>
    %206 = vector.broadcast %204 : vector<1x4x1xf32> to vector<2x4x8xf32>
    %207 = vector.broadcast %205 : vector<2x1x8xf32> to vector<2x4x8xf32>
    %208 = arith.mulf %206, %207 : vector<2x4x8xf32>
    %209 = arith.addf %201, %208 : vector<2x4x8xf32>
    %210 = vector.extract_strided_slice %0 {offsets = [0, 0, 2], sizes = [2, 4, 8], strides = [1, 1, 1]} : vector<2x4x16xf32> to vector<2x4x8xf32>
    %211 = vector.extract_strided_slice %142 {offsets = [2, 0, 0, 0], sizes = [1, 1, 4, 1], strides = [1, 1, 1, 1]} : vector<9x4x4x1xf32> to vector<1x1x4x1xf32>
    %212 = vector.shape_cast %211 : vector<1x1x4x1xf32> to vector<4x1xf32>
    %213 = vector.shape_cast %212 : vector<4x1xf32> to vector<1x4x1xf32>
    %214 = vector.extract_strided_slice %210 {offsets = [0, 0, 0], sizes = [2, 1, 8], strides = [1, 1, 1]} : vector<2x4x8xf32> to vector<2x1x8xf32>
    %215 = vector.broadcast %213 : vector<1x4x1xf32> to vector<2x4x8xf32>
    %216 = vector.broadcast %214 : vector<2x1x8xf32> to vector<2x4x8xf32>
    %217 = arith.mulf %215, %216 : vector<2x4x8xf32>
    %218 = arith.addf %209, %217 : vector<2x4x8xf32>
    %219 = vector.extract_strided_slice %142 {offsets = [2, 1, 0, 0], sizes = [1, 1, 4, 1], strides = [1, 1, 1, 1]} : vector<9x4x4x1xf32> to vector<1x1x4x1xf32>
    %220 = vector.shape_cast %219 : vector<1x1x4x1xf32> to vector<4x1xf32>
    %221 = vector.shape_cast %220 : vector<4x1xf32> to vector<1x4x1xf32>
    %222 = vector.extract_strided_slice %210 {offsets = [0, 1, 0], sizes = [2, 1, 8], strides = [1, 1, 1]} : vector<2x4x8xf32> to vector<2x1x8xf32>
    %223 = vector.broadcast %221 : vector<1x4x1xf32> to vector<2x4x8xf32>
    %224 = vector.broadcast %222 : vector<2x1x8xf32> to vector<2x4x8xf32>
    %225 = arith.mulf %223, %224 : vector<2x4x8xf32>
    %226 = arith.addf %218, %225 : vector<2x4x8xf32>
    %227 = vector.extract_strided_slice %142 {offsets = [2, 2, 0, 0], sizes = [1, 1, 4, 1], strides = [1, 1, 1, 1]} : vector<9x4x4x1xf32> to vector<1x1x4x1xf32>
    %228 = vector.shape_cast %227 : vector<1x1x4x1xf32> to vector<4x1xf32>
    %229 = vector.shape_cast %228 : vector<4x1xf32> to vector<1x4x1xf32>
    %230 = vector.extract_strided_slice %210 {offsets = [0, 2, 0], sizes = [2, 1, 8], strides = [1, 1, 1]} : vector<2x4x8xf32> to vector<2x1x8xf32>
    %231 = vector.broadcast %229 : vector<1x4x1xf32> to vector<2x4x8xf32>
    %232 = vector.broadcast %230 : vector<2x1x8xf32> to vector<2x4x8xf32>
    %233 = arith.mulf %231, %232 : vector<2x4x8xf32>
    %234 = arith.addf %226, %233 : vector<2x4x8xf32>
    %235 = vector.extract_strided_slice %142 {offsets = [2, 3, 0, 0], sizes = [1, 1, 4, 1], strides = [1, 1, 1, 1]} : vector<9x4x4x1xf32> to vector<1x1x4x1xf32>
    %236 = vector.shape_cast %235 : vector<1x1x4x1xf32> to vector<4x1xf32>
    %237 = vector.shape_cast %236 : vector<4x1xf32> to vector<1x4x1xf32>
    %238 = vector.extract_strided_slice %210 {offsets = [0, 3, 0], sizes = [2, 1, 8], strides = [1, 1, 1]} : vector<2x4x8xf32> to vector<2x1x8xf32>
    %239 = vector.broadcast %237 : vector<1x4x1xf32> to vector<2x4x8xf32>
    %240 = vector.broadcast %238 : vector<2x1x8xf32> to vector<2x4x8xf32>
    %241 = arith.mulf %239, %240 : vector<2x4x8xf32>
    %242 = arith.addf %234, %241 : vector<2x4x8xf32>
    %243 = vector.extract_strided_slice %0 {offsets = [0, 0, 3], sizes = [2, 4, 8], strides = [1, 1, 1]} : vector<2x4x16xf32> to vector<2x4x8xf32>
    %244 = vector.extract_strided_slice %142 {offsets = [3, 0, 0, 0], sizes = [1, 1, 4, 1], strides = [1, 1, 1, 1]} : vector<9x4x4x1xf32> to vector<1x1x4x1xf32>
    %245 = vector.shape_cast %244 : vector<1x1x4x1xf32> to vector<4x1xf32>
    %246 = vector.shape_cast %245 : vector<4x1xf32> to vector<1x4x1xf32>
    %247 = vector.extract_strided_slice %243 {offsets = [0, 0, 0], sizes = [2, 1, 8], strides = [1, 1, 1]} : vector<2x4x8xf32> to vector<2x1x8xf32>
    %248 = vector.broadcast %246 : vector<1x4x1xf32> to vector<2x4x8xf32>
    %249 = vector.broadcast %247 : vector<2x1x8xf32> to vector<2x4x8xf32>
    %250 = arith.mulf %248, %249 : vector<2x4x8xf32>
    %251 = arith.addf %242, %250 : vector<2x4x8xf32>
    %252 = vector.extract_strided_slice %142 {offsets = [3, 1, 0, 0], sizes = [1, 1, 4, 1], strides = [1, 1, 1, 1]} : vector<9x4x4x1xf32> to vector<1x1x4x1xf32>
    %253 = vector.shape_cast %252 : vector<1x1x4x1xf32> to vector<4x1xf32>
    %254 = vector.shape_cast %253 : vector<4x1xf32> to vector<1x4x1xf32>
    %255 = vector.extract_strided_slice %243 {offsets = [0, 1, 0], sizes = [2, 1, 8], strides = [1, 1, 1]} : vector<2x4x8xf32> to vector<2x1x8xf32>
    %256 = vector.broadcast %254 : vector<1x4x1xf32> to vector<2x4x8xf32>
    %257 = vector.broadcast %255 : vector<2x1x8xf32> to vector<2x4x8xf32>
    %258 = arith.mulf %256, %257 : vector<2x4x8xf32>
    %259 = arith.addf %251, %258 : vector<2x4x8xf32>
    %260 = vector.extract_strided_slice %142 {offsets = [3, 2, 0, 0], sizes = [1, 1, 4, 1], strides = [1, 1, 1, 1]} : vector<9x4x4x1xf32> to vector<1x1x4x1xf32>
    %261 = vector.shape_cast %260 : vector<1x1x4x1xf32> to vector<4x1xf32>
    %262 = vector.shape_cast %261 : vector<4x1xf32> to vector<1x4x1xf32>
    %263 = vector.extract_strided_slice %243 {offsets = [0, 2, 0], sizes = [2, 1, 8], strides = [1, 1, 1]} : vector<2x4x8xf32> to vector<2x1x8xf32>
    %264 = vector.broadcast %262 : vector<1x4x1xf32> to vector<2x4x8xf32>
    %265 = vector.broadcast %263 : vector<2x1x8xf32> to vector<2x4x8xf32>
    %266 = arith.mulf %264, %265 : vector<2x4x8xf32>
    %267 = arith.addf %259, %266 : vector<2x4x8xf32>
    %268 = vector.extract_strided_slice %142 {offsets = [3, 3, 0, 0], sizes = [1, 1, 4, 1], strides = [1, 1, 1, 1]} : vector<9x4x4x1xf32> to vector<1x1x4x1xf32>
    %269 = vector.shape_cast %268 : vector<1x1x4x1xf32> to vector<4x1xf32>
    %270 = vector.shape_cast %269 : vector<4x1xf32> to vector<1x4x1xf32>
    %271 = vector.extract_strided_slice %243 {offsets = [0, 3, 0], sizes = [2, 1, 8], strides = [1, 1, 1]} : vector<2x4x8xf32> to vector<2x1x8xf32>
    %272 = vector.broadcast %270 : vector<1x4x1xf32> to vector<2x4x8xf32>
    %273 = vector.broadcast %271 : vector<2x1x8xf32> to vector<2x4x8xf32>
    %274 = arith.mulf %272, %273 : vector<2x4x8xf32>
    %275 = arith.addf %267, %274 : vector<2x4x8xf32>
    %276 = vector.extract_strided_slice %0 {offsets = [0, 0, 4], sizes = [2, 4, 8], strides = [1, 1, 1]} : vector<2x4x16xf32> to vector<2x4x8xf32>
    %277 = vector.extract_strided_slice %142 {offsets = [4, 0, 0, 0], sizes = [1, 1, 4, 1], strides = [1, 1, 1, 1]} : vector<9x4x4x1xf32> to vector<1x1x4x1xf32>
    %278 = vector.shape_cast %277 : vector<1x1x4x1xf32> to vector<4x1xf32>
    %279 = vector.shape_cast %278 : vector<4x1xf32> to vector<1x4x1xf32>
    %280 = vector.extract_strided_slice %276 {offsets = [0, 0, 0], sizes = [2, 1, 8], strides = [1, 1, 1]} : vector<2x4x8xf32> to vector<2x1x8xf32>
    %281 = vector.broadcast %279 : vector<1x4x1xf32> to vector<2x4x8xf32>
    %282 = vector.broadcast %280 : vector<2x1x8xf32> to vector<2x4x8xf32>
    %283 = arith.mulf %281, %282 : vector<2x4x8xf32>
    %284 = arith.addf %275, %283 : vector<2x4x8xf32>
    %285 = vector.extract_strided_slice %142 {offsets = [4, 1, 0, 0], sizes = [1, 1, 4, 1], strides = [1, 1, 1, 1]} : vector<9x4x4x1xf32> to vector<1x1x4x1xf32>
    %286 = vector.shape_cast %285 : vector<1x1x4x1xf32> to vector<4x1xf32>
    %287 = vector.shape_cast %286 : vector<4x1xf32> to vector<1x4x1xf32>
    %288 = vector.extract_strided_slice %276 {offsets = [0, 1, 0], sizes = [2, 1, 8], strides = [1, 1, 1]} : vector<2x4x8xf32> to vector<2x1x8xf32>
    %289 = vector.broadcast %287 : vector<1x4x1xf32> to vector<2x4x8xf32>
    %290 = vector.broadcast %288 : vector<2x1x8xf32> to vector<2x4x8xf32>
    %291 = arith.mulf %289, %290 : vector<2x4x8xf32>
    %292 = arith.addf %284, %291 : vector<2x4x8xf32>
    %293 = vector.extract_strided_slice %142 {offsets = [4, 2, 0, 0], sizes = [1, 1, 4, 1], strides = [1, 1, 1, 1]} : vector<9x4x4x1xf32> to vector<1x1x4x1xf32>
    %294 = vector.shape_cast %293 : vector<1x1x4x1xf32> to vector<4x1xf32>
    %295 = vector.shape_cast %294 : vector<4x1xf32> to vector<1x4x1xf32>
    %296 = vector.extract_strided_slice %276 {offsets = [0, 2, 0], sizes = [2, 1, 8], strides = [1, 1, 1]} : vector<2x4x8xf32> to vector<2x1x8xf32>
    %297 = vector.broadcast %295 : vector<1x4x1xf32> to vector<2x4x8xf32>
    %298 = vector.broadcast %296 : vector<2x1x8xf32> to vector<2x4x8xf32>
    %299 = arith.mulf %297, %298 : vector<2x4x8xf32>
    %300 = arith.addf %292, %299 : vector<2x4x8xf32>
    %301 = vector.extract_strided_slice %142 {offsets = [4, 3, 0, 0], sizes = [1, 1, 4, 1], strides = [1, 1, 1, 1]} : vector<9x4x4x1xf32> to vector<1x1x4x1xf32>
    %302 = vector.shape_cast %301 : vector<1x1x4x1xf32> to vector<4x1xf32>
    %303 = vector.shape_cast %302 : vector<4x1xf32> to vector<1x4x1xf32>
    %304 = vector.extract_strided_slice %276 {offsets = [0, 3, 0], sizes = [2, 1, 8], strides = [1, 1, 1]} : vector<2x4x8xf32> to vector<2x1x8xf32>
    %305 = vector.broadcast %303 : vector<1x4x1xf32> to vector<2x4x8xf32>
    %306 = vector.broadcast %304 : vector<2x1x8xf32> to vector<2x4x8xf32>
    %307 = arith.mulf %305, %306 : vector<2x4x8xf32>
    %308 = arith.addf %300, %307 : vector<2x4x8xf32>
    %309 = vector.extract_strided_slice %0 {offsets = [0, 0, 5], sizes = [2, 4, 8], strides = [1, 1, 1]} : vector<2x4x16xf32> to vector<2x4x8xf32>
    %310 = vector.extract_strided_slice %142 {offsets = [5, 0, 0, 0], sizes = [1, 1, 4, 1], strides = [1, 1, 1, 1]} : vector<9x4x4x1xf32> to vector<1x1x4x1xf32>
    %311 = vector.shape_cast %310 : vector<1x1x4x1xf32> to vector<4x1xf32>
    %312 = vector.shape_cast %311 : vector<4x1xf32> to vector<1x4x1xf32>
    %313 = vector.extract_strided_slice %309 {offsets = [0, 0, 0], sizes = [2, 1, 8], strides = [1, 1, 1]} : vector<2x4x8xf32> to vector<2x1x8xf32>
    %314 = vector.broadcast %312 : vector<1x4x1xf32> to vector<2x4x8xf32>
    %315 = vector.broadcast %313 : vector<2x1x8xf32> to vector<2x4x8xf32>
    %316 = arith.mulf %314, %315 : vector<2x4x8xf32>
    %317 = arith.addf %308, %316 : vector<2x4x8xf32>
    %318 = vector.extract_strided_slice %142 {offsets = [5, 1, 0, 0], sizes = [1, 1, 4, 1], strides = [1, 1, 1, 1]} : vector<9x4x4x1xf32> to vector<1x1x4x1xf32>
    %319 = vector.shape_cast %318 : vector<1x1x4x1xf32> to vector<4x1xf32>
    %320 = vector.shape_cast %319 : vector<4x1xf32> to vector<1x4x1xf32>
    %321 = vector.extract_strided_slice %309 {offsets = [0, 1, 0], sizes = [2, 1, 8], strides = [1, 1, 1]} : vector<2x4x8xf32> to vector<2x1x8xf32>
    %322 = vector.broadcast %320 : vector<1x4x1xf32> to vector<2x4x8xf32>
    %323 = vector.broadcast %321 : vector<2x1x8xf32> to vector<2x4x8xf32>
    %324 = arith.mulf %322, %323 : vector<2x4x8xf32>
    %325 = arith.addf %317, %324 : vector<2x4x8xf32>
    %326 = vector.extract_strided_slice %142 {offsets = [5, 2, 0, 0], sizes = [1, 1, 4, 1], strides = [1, 1, 1, 1]} : vector<9x4x4x1xf32> to vector<1x1x4x1xf32>
    %327 = vector.shape_cast %326 : vector<1x1x4x1xf32> to vector<4x1xf32>
    %328 = vector.shape_cast %327 : vector<4x1xf32> to vector<1x4x1xf32>
    %329 = vector.extract_strided_slice %309 {offsets = [0, 2, 0], sizes = [2, 1, 8], strides = [1, 1, 1]} : vector<2x4x8xf32> to vector<2x1x8xf32>
    %330 = vector.broadcast %328 : vector<1x4x1xf32> to vector<2x4x8xf32>
    %331 = vector.broadcast %329 : vector<2x1x8xf32> to vector<2x4x8xf32>
    %332 = arith.mulf %330, %331 : vector<2x4x8xf32>
    %333 = arith.addf %325, %332 : vector<2x4x8xf32>
    %334 = vector.extract_strided_slice %142 {offsets = [5, 3, 0, 0], sizes = [1, 1, 4, 1], strides = [1, 1, 1, 1]} : vector<9x4x4x1xf32> to vector<1x1x4x1xf32>
    %335 = vector.shape_cast %334 : vector<1x1x4x1xf32> to vector<4x1xf32>
    %336 = vector.shape_cast %335 : vector<4x1xf32> to vector<1x4x1xf32>
    %337 = vector.extract_strided_slice %309 {offsets = [0, 3, 0], sizes = [2, 1, 8], strides = [1, 1, 1]} : vector<2x4x8xf32> to vector<2x1x8xf32>
    %338 = vector.broadcast %336 : vector<1x4x1xf32> to vector<2x4x8xf32>
    %339 = vector.broadcast %337 : vector<2x1x8xf32> to vector<2x4x8xf32>
    %340 = arith.mulf %338, %339 : vector<2x4x8xf32>
    %341 = arith.addf %333, %340 : vector<2x4x8xf32>
    %342 = vector.extract_strided_slice %0 {offsets = [0, 0, 6], sizes = [2, 4, 8], strides = [1, 1, 1]} : vector<2x4x16xf32> to vector<2x4x8xf32>
    %343 = vector.extract_strided_slice %142 {offsets = [6, 0, 0, 0], sizes = [1, 1, 4, 1], strides = [1, 1, 1, 1]} : vector<9x4x4x1xf32> to vector<1x1x4x1xf32>
    %344 = vector.shape_cast %343 : vector<1x1x4x1xf32> to vector<4x1xf32>
    %345 = vector.shape_cast %344 : vector<4x1xf32> to vector<1x4x1xf32>
    %346 = vector.extract_strided_slice %342 {offsets = [0, 0, 0], sizes = [2, 1, 8], strides = [1, 1, 1]} : vector<2x4x8xf32> to vector<2x1x8xf32>
    %347 = vector.broadcast %345 : vector<1x4x1xf32> to vector<2x4x8xf32>
    %348 = vector.broadcast %346 : vector<2x1x8xf32> to vector<2x4x8xf32>
    %349 = arith.mulf %347, %348 : vector<2x4x8xf32>
    %350 = arith.addf %341, %349 : vector<2x4x8xf32>
    %351 = vector.extract_strided_slice %142 {offsets = [6, 1, 0, 0], sizes = [1, 1, 4, 1], strides = [1, 1, 1, 1]} : vector<9x4x4x1xf32> to vector<1x1x4x1xf32>
    %352 = vector.shape_cast %351 : vector<1x1x4x1xf32> to vector<4x1xf32>
    %353 = vector.shape_cast %352 : vector<4x1xf32> to vector<1x4x1xf32>
    %354 = vector.extract_strided_slice %342 {offsets = [0, 1, 0], sizes = [2, 1, 8], strides = [1, 1, 1]} : vector<2x4x8xf32> to vector<2x1x8xf32>
    %355 = vector.broadcast %353 : vector<1x4x1xf32> to vector<2x4x8xf32>
    %356 = vector.broadcast %354 : vector<2x1x8xf32> to vector<2x4x8xf32>
    %357 = arith.mulf %355, %356 : vector<2x4x8xf32>
    %358 = arith.addf %350, %357 : vector<2x4x8xf32>
    %359 = vector.extract_strided_slice %142 {offsets = [6, 2, 0, 0], sizes = [1, 1, 4, 1], strides = [1, 1, 1, 1]} : vector<9x4x4x1xf32> to vector<1x1x4x1xf32>
    %360 = vector.shape_cast %359 : vector<1x1x4x1xf32> to vector<4x1xf32>
    %361 = vector.shape_cast %360 : vector<4x1xf32> to vector<1x4x1xf32>
    %362 = vector.extract_strided_slice %342 {offsets = [0, 2, 0], sizes = [2, 1, 8], strides = [1, 1, 1]} : vector<2x4x8xf32> to vector<2x1x8xf32>
    %363 = vector.broadcast %361 : vector<1x4x1xf32> to vector<2x4x8xf32>
    %364 = vector.broadcast %362 : vector<2x1x8xf32> to vector<2x4x8xf32>
    %365 = arith.mulf %363, %364 : vector<2x4x8xf32>
    %366 = arith.addf %358, %365 : vector<2x4x8xf32>
    %367 = vector.extract_strided_slice %142 {offsets = [6, 3, 0, 0], sizes = [1, 1, 4, 1], strides = [1, 1, 1, 1]} : vector<9x4x4x1xf32> to vector<1x1x4x1xf32>
    %368 = vector.shape_cast %367 : vector<1x1x4x1xf32> to vector<4x1xf32>
    %369 = vector.shape_cast %368 : vector<4x1xf32> to vector<1x4x1xf32>
    %370 = vector.extract_strided_slice %342 {offsets = [0, 3, 0], sizes = [2, 1, 8], strides = [1, 1, 1]} : vector<2x4x8xf32> to vector<2x1x8xf32>
    %371 = vector.broadcast %369 : vector<1x4x1xf32> to vector<2x4x8xf32>
    %372 = vector.broadcast %370 : vector<2x1x8xf32> to vector<2x4x8xf32>
    %373 = arith.mulf %371, %372 : vector<2x4x8xf32>
    %374 = arith.addf %366, %373 : vector<2x4x8xf32>
    %375 = vector.extract_strided_slice %0 {offsets = [0, 0, 7], sizes = [2, 4, 8], strides = [1, 1, 1]} : vector<2x4x16xf32> to vector<2x4x8xf32>
    %376 = vector.extract_strided_slice %142 {offsets = [7, 0, 0, 0], sizes = [1, 1, 4, 1], strides = [1, 1, 1, 1]} : vector<9x4x4x1xf32> to vector<1x1x4x1xf32>
    %377 = vector.shape_cast %376 : vector<1x1x4x1xf32> to vector<4x1xf32>
    %378 = vector.shape_cast %377 : vector<4x1xf32> to vector<1x4x1xf32>
    %379 = vector.extract_strided_slice %375 {offsets = [0, 0, 0], sizes = [2, 1, 8], strides = [1, 1, 1]} : vector<2x4x8xf32> to vector<2x1x8xf32>
    %380 = vector.broadcast %378 : vector<1x4x1xf32> to vector<2x4x8xf32>
    %381 = vector.broadcast %379 : vector<2x1x8xf32> to vector<2x4x8xf32>
    %382 = arith.mulf %380, %381 : vector<2x4x8xf32>
    %383 = arith.addf %374, %382 : vector<2x4x8xf32>
    %384 = vector.extract_strided_slice %142 {offsets = [7, 1, 0, 0], sizes = [1, 1, 4, 1], strides = [1, 1, 1, 1]} : vector<9x4x4x1xf32> to vector<1x1x4x1xf32>
    %385 = vector.shape_cast %384 : vector<1x1x4x1xf32> to vector<4x1xf32>
    %386 = vector.shape_cast %385 : vector<4x1xf32> to vector<1x4x1xf32>
    %387 = vector.extract_strided_slice %375 {offsets = [0, 1, 0], sizes = [2, 1, 8], strides = [1, 1, 1]} : vector<2x4x8xf32> to vector<2x1x8xf32>
    %388 = vector.broadcast %386 : vector<1x4x1xf32> to vector<2x4x8xf32>
    %389 = vector.broadcast %387 : vector<2x1x8xf32> to vector<2x4x8xf32>
    %390 = arith.mulf %388, %389 : vector<2x4x8xf32>
    %391 = arith.addf %383, %390 : vector<2x4x8xf32>
    %392 = vector.extract_strided_slice %142 {offsets = [7, 2, 0, 0], sizes = [1, 1, 4, 1], strides = [1, 1, 1, 1]} : vector<9x4x4x1xf32> to vector<1x1x4x1xf32>
    %393 = vector.shape_cast %392 : vector<1x1x4x1xf32> to vector<4x1xf32>
    %394 = vector.shape_cast %393 : vector<4x1xf32> to vector<1x4x1xf32>
    %395 = vector.extract_strided_slice %375 {offsets = [0, 2, 0], sizes = [2, 1, 8], strides = [1, 1, 1]} : vector<2x4x8xf32> to vector<2x1x8xf32>
    %396 = vector.broadcast %394 : vector<1x4x1xf32> to vector<2x4x8xf32>
    %397 = vector.broadcast %395 : vector<2x1x8xf32> to vector<2x4x8xf32>
    %398 = arith.mulf %396, %397 : vector<2x4x8xf32>
    %399 = arith.addf %391, %398 : vector<2x4x8xf32>
    %400 = vector.extract_strided_slice %142 {offsets = [7, 3, 0, 0], sizes = [1, 1, 4, 1], strides = [1, 1, 1, 1]} : vector<9x4x4x1xf32> to vector<1x1x4x1xf32>
    %401 = vector.shape_cast %400 : vector<1x1x4x1xf32> to vector<4x1xf32>
    %402 = vector.shape_cast %401 : vector<4x1xf32> to vector<1x4x1xf32>
    %403 = vector.extract_strided_slice %375 {offsets = [0, 3, 0], sizes = [2, 1, 8], strides = [1, 1, 1]} : vector<2x4x8xf32> to vector<2x1x8xf32>
    %404 = vector.broadcast %402 : vector<1x4x1xf32> to vector<2x4x8xf32>
    %405 = vector.broadcast %403 : vector<2x1x8xf32> to vector<2x4x8xf32>
    %406 = arith.mulf %404, %405 : vector<2x4x8xf32>
    %407 = arith.addf %399, %406 : vector<2x4x8xf32>
    %408 = vector.extract_strided_slice %0 {offsets = [0, 0, 8], sizes = [2, 4, 8], strides = [1, 1, 1]} : vector<2x4x16xf32> to vector<2x4x8xf32>
    %409 = vector.extract_strided_slice %142 {offsets = [8, 0, 0, 0], sizes = [1, 1, 4, 1], strides = [1, 1, 1, 1]} : vector<9x4x4x1xf32> to vector<1x1x4x1xf32>
    %410 = vector.shape_cast %409 : vector<1x1x4x1xf32> to vector<4x1xf32>
    %411 = vector.shape_cast %410 : vector<4x1xf32> to vector<1x4x1xf32>
    %412 = vector.extract_strided_slice %408 {offsets = [0, 0, 0], sizes = [2, 1, 8], strides = [1, 1, 1]} : vector<2x4x8xf32> to vector<2x1x8xf32>
    %413 = vector.broadcast %411 : vector<1x4x1xf32> to vector<2x4x8xf32>
    %414 = vector.broadcast %412 : vector<2x1x8xf32> to vector<2x4x8xf32>
    %415 = arith.mulf %413, %414 : vector<2x4x8xf32>
    %416 = arith.addf %407, %415 : vector<2x4x8xf32>
    %417 = vector.extract_strided_slice %142 {offsets = [8, 1, 0, 0], sizes = [1, 1, 4, 1], strides = [1, 1, 1, 1]} : vector<9x4x4x1xf32> to vector<1x1x4x1xf32>
    %418 = vector.shape_cast %417 : vector<1x1x4x1xf32> to vector<4x1xf32>
    %419 = vector.shape_cast %418 : vector<4x1xf32> to vector<1x4x1xf32>
    %420 = vector.extract_strided_slice %408 {offsets = [0, 1, 0], sizes = [2, 1, 8], strides = [1, 1, 1]} : vector<2x4x8xf32> to vector<2x1x8xf32>
    %421 = vector.broadcast %419 : vector<1x4x1xf32> to vector<2x4x8xf32>
    %422 = vector.broadcast %420 : vector<2x1x8xf32> to vector<2x4x8xf32>
    %423 = arith.mulf %421, %422 : vector<2x4x8xf32>
    %424 = arith.addf %416, %423 : vector<2x4x8xf32>
    %425 = vector.extract_strided_slice %142 {offsets = [8, 2, 0, 0], sizes = [1, 1, 4, 1], strides = [1, 1, 1, 1]} : vector<9x4x4x1xf32> to vector<1x1x4x1xf32>
    %426 = vector.shape_cast %425 : vector<1x1x4x1xf32> to vector<4x1xf32>
    %427 = vector.shape_cast %426 : vector<4x1xf32> to vector<1x4x1xf32>
    %428 = vector.extract_strided_slice %408 {offsets = [0, 2, 0], sizes = [2, 1, 8], strides = [1, 1, 1]} : vector<2x4x8xf32> to vector<2x1x8xf32>
    %429 = vector.broadcast %427 : vector<1x4x1xf32> to vector<2x4x8xf32>
    %430 = vector.broadcast %428 : vector<2x1x8xf32> to vector<2x4x8xf32>
    %431 = arith.mulf %429, %430 : vector<2x4x8xf32>
    %432 = arith.addf %424, %431 : vector<2x4x8xf32>
    %433 = vector.extract_strided_slice %142 {offsets = [8, 3, 0, 0], sizes = [1, 1, 4, 1], strides = [1, 1, 1, 1]} : vector<9x4x4x1xf32> to vector<1x1x4x1xf32>
    %434 = vector.shape_cast %433 : vector<1x1x4x1xf32> to vector<4x1xf32>
    %435 = vector.shape_cast %434 : vector<4x1xf32> to vector<1x4x1xf32>
    %436 = vector.extract_strided_slice %408 {offsets = [0, 3, 0], sizes = [2, 1, 8], strides = [1, 1, 1]} : vector<2x4x8xf32> to vector<2x1x8xf32>
    %437 = vector.broadcast %435 : vector<1x4x1xf32> to vector<2x4x8xf32>
    %438 = vector.broadcast %436 : vector<2x1x8xf32> to vector<2x4x8xf32>
    %439 = arith.mulf %437, %438 : vector<2x4x8xf32>
    %440 = arith.addf %432, %439 : vector<2x4x8xf32>
    %c0_27 = arith.constant 0 : index
    %c0_28 = arith.constant 0 : index
    %441 = vector.load %arg7[%c0_27, %c0_28] : memref<4x1xf32, #tpu.memory_space<vmem>>, vector<4x1xf32>
    %442 = vector.shape_cast %441 : vector<4x1xf32> to vector<1x4x1xf32>
    %443 = vector.broadcast %442 : vector<1x4x1xf32> to vector<2x4x8xf32>
    %444 = arith.addf %440, %443 : vector<2x4x8xf32>
    %cst_29 = arith.constant dense<0.000000e+00> : vector<4xf32>
    %445 = vector.multi_reduction <add>, %444, %cst_29 [0, 2] : vector<2x4x8xf32> to vector<4xf32>
    %446 = vector.shape_cast %445 : vector<4xf32> to vector<1x4x1xf32>
    %cst_30 = arith.constant 1.600000e+01 : f32
    %447 = vector.broadcast %cst_30 : f32 to vector<1x4x1xf32>
    %448 = arith.divf %446, %447 : vector<1x4x1xf32>
    %449 = vector.broadcast %448 : vector<1x4x1xf32> to vector<2x4x8xf32>
    %450 = arith.subf %444, %449 : vector<2x4x8xf32>
    %451 = arith.mulf %450, %450 : vector<2x4x8xf32>
    %cst_31 = arith.constant dense<0.000000e+00> : vector<4xf32>
    %452 = vector.multi_reduction <add>, %451, %cst_31 [0, 2] : vector<2x4x8xf32> to vector<4xf32>
    %453 = vector.shape_cast %452 : vector<4xf32> to vector<1x4x1xf32>
    %cst_32 = arith.constant 1.600000e+01 : f32
    %454 = vector.broadcast %cst_32 : f32 to vector<1x4x1xf32>
    %455 = arith.divf %453, %454 : vector<1x4x1xf32>
    %456 = vector.broadcast %448 : vector<1x4x1xf32> to vector<2x4x8xf32>
    %457 = arith.subf %444, %456 : vector<2x4x8xf32>
    %cst_33 = arith.constant 9.99999974E-6 : f32
    %458 = vector.broadcast %cst_33 : f32 to vector<1x4x1xf32>
    %459 = arith.addf %455, %458 : vector<1x4x1xf32>
    %460 = math.rsqrt %459 : vector<1x4x1xf32>
    %461 = vector.broadcast %460 : vector<1x4x1xf32> to vector<2x4x8xf32>
    %462 = arith.mulf %457, %461 : vector<2x4x8xf32>
    %c0_34 = arith.constant 0 : index
    %c0_35 = arith.constant 0 : index
    %463 = vector.load %arg8[%c0_34, %c0_35] : memref<4x1xf32, #tpu.memory_space<vmem>>, vector<4x1xf32>
    %464 = vector.shape_cast %463 : vector<4x1xf32> to vector<1x4x1xf32>
    %465 = vector.broadcast %464 : vector<1x4x1xf32> to vector<2x4x8xf32>
    %466 = arith.mulf %462, %465 : vector<2x4x8xf32>
    %c0_36 = arith.constant 0 : index
    %c0_37 = arith.constant 0 : index
    %467 = vector.load %arg9[%c0_36, %c0_37] : memref<4x1xf32, #tpu.memory_space<vmem>>, vector<4x1xf32>
    %468 = vector.shape_cast %467 : vector<4x1xf32> to vector<1x4x1xf32>
    %469 = vector.broadcast %468 : vector<1x4x1xf32> to vector<2x4x8xf32>
    %470 = arith.addf %466, %469 : vector<2x4x8xf32>
    %cst_38 = arith.constant dense<0xFF800000> : vector<2x4xf32>
    %471 = vector.multi_reduction <maximumf>, %470, %cst_38 [2] : vector<2x4x8xf32> to vector<2x4xf32>
    %472 = vector.shape_cast %471 : vector<2x4xf32> to vector<2x4x1xf32>
    %473 = vector.broadcast %472 : vector<2x4x1xf32> to vector<2x4x8xf32>
    %474 = arith.subf %470, %473 : vector<2x4x8xf32>
    %475 = math.exp %474 : vector<2x4x8xf32>
    %cst_39 = arith.constant dense<0.000000e+00> : vector<2x4xf32>
    %476 = vector.multi_reduction <add>, %475, %cst_39 [2] : vector<2x4x8xf32> to vector<2x4xf32>
    %477 = vector.shape_cast %476 : vector<2x4xf32> to vector<2x4x1xf32>
    %478 = vector.broadcast %477 : vector<2x4x1xf32> to vector<2x4x8xf32>
    %479 = arith.divf %475, %478 : vector<2x4x8xf32>
    %c0_40 = arith.constant 0 : index
    %c0_41 = arith.constant 0 : index
    %c0_42 = arith.constant 0 : index
    %480 = vector.load %arg11[%c0_40, %c0_41, %c0_42] : memref<2x4x8xf32, #tpu.memory_space<vmem>>, vector<2x4x8xf32>
    tpu.vector_store %arg11[%c0_40, %c0_41, %c0_42], %479 {strides = array<i32>} : memref<2x4x8xf32, #tpu.memory_space<vmem>>, vector<2x4x8xf32>,
    return
  }
  func.func @transform_0(%arg0: i32) -> (i32, i32, i32) {
    %c0_i32 = arith.constant 0 : i32
    %c0_i32_0 = arith.constant 0 : i32
    %c0_i32_1 = arith.constant 0 : i32
    %c0_i32_2 = arith.constant 0 : i32
    return %c0_i32, %c0_i32_0, %c0_i32_1 : i32, i32, i32
  }
  func.func @transform_1(%arg0: i32) -> (i32, i32, i32, i32) {
    %c0_i32 = arith.constant 0 : i32
    %c0_i32_0 = arith.constant 0 : i32
    %c0_i32_1 = arith.constant 0 : i32
    %c0_i32_2 = arith.constant 0 : i32
    return %c0_i32, %c0_i32_0, %arg0, %c0_i32_1 : i32, i32, i32, i32
  }
  func.func @transform_2(%arg0: i32) -> (i32, i32) {
    %c0_i32 = arith.constant 0 : i32
    %c0_i32_0 = arith.constant 0 : i32
    return %arg0, %c0_i32 : i32, i32
  }
  func.func @transform_3(%arg0: i32) -> (i32, i32) {
    %c0_i32 = arith.constant 0 : i32
    %c0_i32_0 = arith.constant 0 : i32
    return %arg0, %c0_i32 : i32, i32
  }
  func.func @transform_4(%arg0: i32) -> (i32, i32) {
    %c0_i32 = arith.constant 0 : i32
    %c0_i32_0 = arith.constant 0 : i32
    return %arg0, %c0_i32 : i32, i32
  }
  func.func @transform_5(%arg0: i32) -> (i32, i32, i32, i32) {
    %c0_i32 = arith.constant 0 : i32
    %c0_i32_0 = arith.constant 0 : i32
    %c0_i32_1 = arith.constant 0 : i32
    %c0_i32_2 = arith.constant 0 : i32
    return %c0_i32, %c0_i32_0, %arg0, %c0_i32_1 : i32, i32, i32, i32
  }
  func.func @transform_6(%arg0: i32) -> (i32, i32) {
    %c0_i32 = arith.constant 0 : i32
    %c0_i32_0 = arith.constant 0 : i32
    return %arg0, %c0_i32 : i32, i32
  }
  func.func @transform_7(%arg0: i32) -> (i32, i32) {
    %c0_i32 = arith.constant 0 : i32
    %c0_i32_0 = arith.constant 0 : i32
    return %arg0, %c0_i32 : i32, i32
  }
  func.func @transform_8(%arg0: i32) -> (i32, i32) {
    %c0_i32 = arith.constant 0 : i32
    %c0_i32_0 = arith.constant 0 : i32
    return %arg0, %c0_i32 : i32, i32
  }
  func.func @transform_9(%arg0: i32) -> (i32, i32, i32) {
    %c0_i32 = arith.constant 0 : i32
    %c0_i32_0 = arith.constant 0 : i32
    %c0_i32_1 = arith.constant 0 : i32
    return %c0_i32, %arg0, %c0_i32_0 : i32, i32, i32
  }
  func.func @transform_10(%arg0: i32) -> (i32, i32, i32) {
    %c0_i32 = arith.constant 0 : i32
    %c0_i32_0 = arith.constant 0 : i32
    %c0_i32_1 = arith.constant 0 : i32
    return %c0_i32, %arg0, %c0_i32_0 : i32, i32, i32
  }
}

module attributes {stable_mosaic.version = 11 : i64} {
  func.func @_attn_kernel(%arg0: i32, %arg1: i32, %arg2: memref<1xf32, #tpu.memory_space<smem>>, %arg3: memref<8x8xf32, #tpu.memory_space<vmem>>, %arg4: memref<8x16xf32, #tpu.memory_space<vmem>>, %arg5: memref<8x16x32xf32, #tpu.memory_space<vmem>>, %arg6: memref<8x8x32xf32, #tpu.memory_space<vmem>>, %arg7: memref<8x8x16xf32, #tpu.memory_space<vmem>>) attributes {dimension_semantics = [#tpu.dimension_semantics<parallel>, #tpu.dimension_semantics<parallel>], iteration_bounds = array<i64: 1, 1>, scalar_prefetch = 0 : i64, scratch_operands = 0 : i64, tpu.core_type = #tpu.core_type<tc>, window_params = [{transform_indices = @transform_0, window_bounds = array<i64: 1>}, {transform_indices = @transform_1, window_bounds = array<i64: 8, 8>}, {transform_indices = @transform_2, window_bounds = array<i64: 8, 16>}, {transform_indices = @transform_3, window_bounds = array<i64: 8, 16, 32>}, {transform_indices = @transform_4, window_bounds = array<i64: 8, 8, 32>}, {transform_indices = @transform_5, window_bounds = array<i64: 8, 8, 16>}]} {
    %c0 = arith.constant 0 : index
    %0 = memref.load %arg2[%c0] : memref<1xf32, #tpu.memory_space<smem>>
    %c0_0 = arith.constant 0 : index
    %c0_1 = arith.constant 0 : index
    %1 = vector.load %arg3[%c0_0, %c0_1] : memref<8x8xf32, #tpu.memory_space<vmem>>, vector<8x8xf32>
    %c0_2 = arith.constant 0 : index
    %c0_3 = arith.constant 0 : index
    %2 = vector.load %arg4[%c0_2, %c0_3] : memref<8x16xf32, #tpu.memory_space<vmem>>, vector<8x16xf32>
    %3 = vector.broadcast %0 : f32 to vector<8x8xf32>
    %4 = arith.mulf %3, %1 : vector<8x8xf32>
    %5 = vector.shape_cast %4 : vector<8x8xf32> to vector<8x8x1xf32>
    %6 = vector.shape_cast %2 : vector<8x16xf32> to vector<8x1x16xf32>
    %7 = vector.broadcast %5 : vector<8x8x1xf32> to vector<8x8x16xf32>
    %8 = vector.broadcast %6 : vector<8x1x16xf32> to vector<8x8x16xf32>
    %9 = arith.mulf %7, %8 : vector<8x8x16xf32>
    %cst = arith.constant dense<0xFF800000> : vector<8x8xf32>
    %10 = vector.multi_reduction <maximumf>, %9, %cst [2] : vector<8x8x16xf32> to vector<8x8xf32>
    %11 = vector.shape_cast %10 : vector<8x8xf32> to vector<8x8x1xf32>
    %12 = vector.broadcast %11 : vector<8x8x1xf32> to vector<8x8x16xf32>
    %13 = arith.subf %9, %12 : vector<8x8x16xf32>
    %14 = math.exp %13 : vector<8x8x16xf32>
    %cst_4 = arith.constant dense<0.000000e+00> : vector<8x8xf32>
    %15 = vector.multi_reduction <add>, %14, %cst_4 [2] : vector<8x8x16xf32> to vector<8x8xf32>
    %16 = vector.shape_cast %15 : vector<8x8xf32> to vector<8x8x1xf32>
    %17 = vector.broadcast %16 : vector<8x8x1xf32> to vector<8x8x16xf32>
    %18 = arith.divf %14, %17 : vector<8x8x16xf32>
    %c0_5 = arith.constant 0 : index
    %c0_6 = arith.constant 0 : index
    %c0_7 = arith.constant 0 : index
    %19 = vector.load %arg7[%c0_5, %c0_6, %c0_7] : memref<8x8x16xf32, #tpu.memory_space<vmem>>, vector<8x8x16xf32>
    tpu.vector_store %arg7[%c0_5, %c0_6, %c0_7], %18 {strides = array<i32>} : memref<8x8x16xf32, #tpu.memory_space<vmem>>, vector<8x8x16xf32>,
    %20 = arith.truncf %18 : vector<8x8x16xf32> to vector<8x8x16xbf16>
    %c0_8 = arith.constant 0 : index
    %c0_9 = arith.constant 0 : index
    %c0_10 = arith.constant 0 : index
    %21 = vector.load %arg5[%c0_8, %c0_9, %c0_10] : memref<8x16x32xf32, #tpu.memory_space<vmem>>, vector<8x16x32xf32>
    %22 = arith.truncf %21 : vector<8x16x32xf32> to vector<8x16x32xbf16>
    %cst_11 = arith.constant dense<0.000000e+00> : vector<8x8x32xf32>
    %23 = tpu.matmul %20, %22, %cst_11 {dimension_numbers = #tpu.dot_dimension_numbers<[2], [1], [1], [2], [0, 0, 0, 1, 1, 2], [0], [0]>} : vector<8x8x16xbf16>, vector<8x16x32xbf16>, vector<8x8x32xf32> -> vector<8x8x32xf32>
    %c0_12 = arith.constant 0 : index
    %c0_13 = arith.constant 0 : index
    %c0_14 = arith.constant 0 : index
    %24 = vector.load %arg6[%c0_12, %c0_13, %c0_14] : memref<8x8x32xf32, #tpu.memory_space<vmem>>, vector<8x8x32xf32>
    tpu.vector_store %arg6[%c0_12, %c0_13, %c0_14], %23 {strides = array<i32>} : memref<8x8x32xf32, #tpu.memory_space<vmem>>, vector<8x8x32xf32>,
    return
  }
  func.func @transform_0(%arg0: i32, %arg1: i32) -> i32 {
    %c0_i32 = arith.constant 0 : i32
    %c0_i32_0 = arith.constant 0 : i32
    return %c0_i32 : i32
  }
  func.func @transform_1(%arg0: i32, %arg1: i32) -> (i32, i32) {
    %c0_i32 = arith.constant 0 : i32
    return %arg0, %arg1 : i32, i32
  }
  func.func @transform_2(%arg0: i32, %arg1: i32) -> (i32, i32) {
    %c0_i32 = arith.constant 0 : i32
    %c0_i32_0 = arith.constant 0 : i32
    return %arg0, %c0_i32 : i32, i32
  }
  func.func @transform_3(%arg0: i32, %arg1: i32) -> (i32, i32, i32) {
    %c0_i32 = arith.constant 0 : i32
    %c0_i32_0 = arith.constant 0 : i32
    %c0_i32_1 = arith.constant 0 : i32
    return %arg0, %c0_i32, %c0_i32_0 : i32, i32, i32
  }
  func.func @transform_4(%arg0: i32, %arg1: i32) -> (i32, i32, i32) {
    %c0_i32 = arith.constant 0 : i32
    %c0_i32_0 = arith.constant 0 : i32
    return %arg0, %arg1, %c0_i32 : i32, i32, i32
  }
  func.func @transform_5(%arg0: i32, %arg1: i32) -> (i32, i32, i32) {
    %c0_i32 = arith.constant 0 : i32
    %c0_i32_0 = arith.constant 0 : i32
    return %arg0, %arg1, %c0_i32 : i32, i32, i32
  }
}

</mosaic_0001>

<llo_original>
// kernel: kittycat_forward.6
$region0: #{kittycat_forward.6}
  #allocation0 [shape = 'u32[]', space=smem, size = 0x4, offset = 0x4, fixed_abs, tag = 'smem constant byte address 0x4 - core index']
  #allocation1 [shape = 'u32[144,128]{1,0:T(1,128)}', space=vmem, size = 0x12000, scoped, tag = 'internal scratch']
  %s0 = inlined_call_operand.vmem [shape: f32[8,16,32], index: 0, kind: input, shape index: {}]
  %s1 = inlined_call_operand.vmem [shape: f32[1,32], index: 1, kind: input, shape index: {}]
  %s2 = inlined_call_operand.vmem [shape: f32[8,16], index: 2, kind: output, shape index: {}]
  %s3 = sld [smem:[#allocation0]]
  $region18: #{kittycat_forward.6} parent=0
    _
  %s5 = ssub.s32 1, %s3
  %s6 = scalar_select 0, %s5, %s3
  // Predicated region
  $region2: #{kittycat_forward.6} parent=0 // pred_check
    _
  $region3: #{kittycat_forward.6} parent=0 // pred_check_branch
    %8 = sbr.rel (0) target = $region5
  $region4: #{kittycat_forward.6} parent=0 // pred_region
    _
  $region5: #{kittycat_forward.6} parent=0 // pred_fallthru
    _
  // Predicated region
  $region6: #{kittycat_forward.6} parent=0 // pred_check
    _
  $region7: #{kittycat_forward.6} parent=0 // pred_check_branch
    %10 = sbr.rel (0) target = $region9
  $region8: #{kittycat_forward.6} parent=0 // pred_region
    _
  $region9: #{kittycat_forward.6} parent=0 // pred_fallthru
    _
  %v11 = vld [vmem:[%s0] sm:$0xff]
  %v12 = vld [vmem:[%s0 + $0x8] sm:$0xff]
  %v13 = vld [vmem:[%s0 + $0x10] sm:$0xff]
  %v14 = vld [vmem:[%s0 + $0x18] sm:$0xff]
  %v15 = vld [vmem:[%s0 + $0x20] sm:$0xff]
  %v16 = vld [vmem:[%s0 + $0x28] sm:$0xff]
  %v17 = vld [vmem:[%s0 + $0x30] sm:$0xff]
  %v18 = vld [vmem:[%s0 + $0x38] sm:$0xff]
  %v19 = vld [vmem:[%s0 + $0x40] sm:$0xff]
  %v20 = vld [vmem:[%s0 + $0x48] sm:$0xff]
  %v21 = vld [vmem:[%s0 + $0x50] sm:$0xff]
  %v22 = vld [vmem:[%s0 + $0x58] sm:$0xff]
  %v23 = vld [vmem:[%s0 + $0x60] sm:$0xff]
  %v24 = vld [vmem:[%s0 + $0x68] sm:$0xff]
  %v25 = vld [vmem:[%s0 + $0x70] sm:$0xff]
  %v26 = vld [vmem:[%s0 + $0x78] sm:$0xff]
  %v27 = vld [vmem:[%s1] sm:$0x1]
  %v29 = vlaneseq
  %v30 = vshrl.u32 %v29, 7
  %v31 = vsub.s32 0, %v30
  %v32 = vrot.slane %v27, %v31
  %v34 = vmul.f32 %v11, %v32
  %v35 = vmul.f32 %v12, %v32
  %v36 = vmul.f32 %v13, %v32
  %v37 = vmul.f32 %v14, %v32
  %v38 = vmul.f32 %v15, %v32
  %v39 = vmul.f32 %v16, %v32
  %v40 = vmul.f32 %v17, %v32
  %v41 = vmul.f32 %v18, %v32
  %v42 = vmul.f32 %v19, %v32
  %v43 = vmul.f32 %v20, %v32
  %v44 = vmul.f32 %v21, %v32
  %v45 = vmul.f32 %v22, %v32
  %v46 = vmul.f32 %v23, %v32
  %v47 = vmul.f32 %v24, %v32
  %v48 = vmul.f32 %v25, %v32
  %v49 = vmul.f32 %v26, %v32
  %vm50 = vcmask 261120
  %v51 = vsel %vm50, %v34, 0.0
  %52 = vadd.xlane.f32.xlu0 %v51
  %v53 = vpop.xlane.xlu0 %52
  %v54 = vsel %vm50, %v35, 0.0
  %55 = vadd.xlane.f32.xlu0 %v54
  %v56 = vpop.xlane.xlu0 %55
  %v57 = vsel %vm50, %v36, 0.0
  %58 = vadd.xlane.f32.xlu0 %v57
  %v59 = vpop.xlane.xlu0 %58
  %v60 = vsel %vm50, %v37, 0.0
  %61 = vadd.xlane.f32.xlu0 %v60
  %v62 = vpop.xlane.xlu0 %61
  %v63 = vsel %vm50, %v38, 0.0
  %64 = vadd.xlane.f32.xlu0 %v63
  %v65 = vpop.xlane.xlu0 %64
  %v66 = vsel %vm50, %v39, 0.0
  %67 = vadd.xlane.f32.xlu0 %v66
  %v68 = vpop.xlane.xlu0 %67
  %v69 = vsel %vm50, %v40, 0.0
  %70 = vadd.xlane.f32.xlu0 %v69
  %v71 = vpop.xlane.xlu0 %70
  %v72 = vsel %vm50, %v41, 0.0
  %73 = vadd.xlane.f32.xlu0 %v72
  %v74 = vpop.xlane.xlu0 %73
  %v75 = vsel %vm50, %v42, 0.0
  %76 = vadd.xlane.f32.xlu0 %v75
  %v77 = vpop.xlane.xlu0 %76
  %v78 = vsel %vm50, %v43, 0.0
  %79 = vadd.xlane.f32.xlu0 %v78
  %v80 = vpop.xlane.xlu0 %79
  %v81 = vsel %vm50, %v44, 0.0
  %82 = vadd.xlane.f32.xlu0 %v81
  %v83 = vpop.xlane.xlu0 %82
  %v84 = vsel %vm50, %v45, 0.0
  %85 = vadd.xlane.f32.xlu0 %v84
  %v86 = vpop.xlane.xlu0 %85
  %v87 = vsel %vm50, %v46, 0.0
  %88 = vadd.xlane.f32.xlu0 %v87
  %v89 = vpop.xlane.xlu0 %88
  %v90 = vsel %vm50, %v47, 0.0
  %91 = vadd.xlane.f32.xlu0 %v90
  %v92 = vpop.xlane.xlu0 %91
  %v93 = vsel %vm50, %v48, 0.0
  %94 = vadd.xlane.f32.xlu0 %v93
  %v95 = vpop.xlane.xlu0 %94
  %v96 = vsel %vm50, %v49, 0.0
  %97 = vadd.xlane.f32.xlu0 %v96
  %v98 = vpop.xlane.xlu0 %97
  %v115 = vlaneseq
  %v116 = vand.u32 %v115, 127
  %v117 = vlaneseq
  %v118 = vshrl.u32 %v117, 7
  %v119 = vsub.s32 %v116, %v118
  %v120 = vrot.slane %v53, %v119
  %v121 = vadd.s32 %v116, 4294967288
  %v122 = vlaneseq
  %v123 = vshrl.u32 %v122, 7
  %v124 = vsub.s32 %v121, %v123
  %v125 = vrot.slane %v56, %v124
  %vm126 = vcmask 130112
  %v127 = vsel %vm126, %v125, %v120
  %v128 = vlaneseq
  %v129 = vshrl.u32 %v128, 7
  %v130 = vsub.s32 %v116, %v129
  %v131 = vrot.slane %v59, %v130
  %v132 = vlaneseq
  %v133 = vshrl.u32 %v132, 7
  %v134 = vsub.s32 %v121, %v133
  %v135 = vrot.slane %v62, %v134
  %v136 = vsel %vm126, %v135, %v131
  %v137 = vlaneseq
  %v138 = vshrl.u32 %v137, 7
  %v139 = vsub.s32 %v116, %v138
  %v140 = vrot.slane %v65, %v139
  %v141 = vlaneseq
  %v142 = vshrl.u32 %v141, 7
  %v143 = vsub.s32 %v121, %v142
  %v144 = vrot.slane %v68, %v143
  %v145 = vsel %vm126, %v144, %v140
  %v146 = vlaneseq
  %v147 = vshrl.u32 %v146, 7
  %v148 = vsub.s32 %v116, %v147
  %v149 = vrot.slane %v71, %v148
  %v150 = vlaneseq
  %v151 = vshrl.u32 %v150, 7
  %v152 = vsub.s32 %v121, %v151
  %v153 = vrot.slane %v74, %v152
  %v154 = vsel %vm126, %v153, %v149
  %v155 = vlaneseq
  %v156 = vshrl.u32 %v155, 7
  %v157 = vsub.s32 %v116, %v156
  %v158 = vrot.slane %v77, %v157
  %v159 = vlaneseq
  %v160 = vshrl.u32 %v159, 7
  %v161 = vsub.s32 %v121, %v160
  %v162 = vrot.slane %v80, %v161
  %v163 = vsel %vm126, %v162, %v158
  %v164 = vlaneseq
  %v165 = vshrl.u32 %v164, 7
  %v166 = vsub.s32 %v116, %v165
  %v167 = vrot.slane %v83, %v166
  %v168 = vlaneseq
  %v169 = vshrl.u32 %v168, 7
  %v170 = vsub.s32 %v121, %v169
  %v171 = vrot.slane %v86, %v170
  %v172 = vsel %vm126, %v171, %v167
  %v173 = vlaneseq
  %v174 = vshrl.u32 %v173, 7
  %v175 = vsub.s32 %v116, %v174
  %v176 = vrot.slane %v89, %v175
  %v177 = vlaneseq
  %v178 = vshrl.u32 %v177, 7
  %v179 = vsub.s32 %v121, %v178
  %v180 = vrot.slane %v92, %v179
  %v181 = vsel %vm126, %v180, %v176
  %v182 = vlaneseq
  %v183 = vshrl.u32 %v182, 7
  %v184 = vsub.s32 %v116, %v183
  %v185 = vrot.slane %v95, %v184
  %v186 = vlaneseq
  %v187 = vshrl.u32 %v186, 7
  %v188 = vsub.s32 %v121, %v187
  %v189 = vrot.slane %v98, %v188
  %v190 = vsel %vm126, %v189, %v185
  %vm191 = vcmask 1041409
  %v192 = vsel %vm191, %v136, %v127
  %vm193 = vcmask 1042434
  %v194 = vsel %vm193, %v145, %v192
  %vm195 = vcmask 1043459
  %v196 = vsel %vm195, %v154, %v194
  %vm197 = vcmask 1044484
  %v198 = vsel %vm197, %v163, %v196
  %vm199 = vcmask 1045509
  %v200 = vsel %vm199, %v172, %v198
  %vm201 = vcmask 1046534
  %v202 = vsel %vm201, %v181, %v200
  %vm203 = vcmask 1047559
  %v204 = vsel %vm203, %v190, %v202
  %vm206 = vcmask 130048
  %207 = vst.msk [vmem:[%s2] sm:$0xff] %vm206, %v204
  // Predicated region
  $region10: #{kittycat_forward.6} parent=0 // pred_check
    _
  $region11: #{kittycat_forward.6} parent=0 // pred_check_branch
    %209 = sbr.rel (0) target = $region13
  $region12: #{kittycat_forward.6} parent=0 // pred_region
    _
  $region13: #{kittycat_forward.6} parent=0 // pred_fallthru
    _
  // Predicated region
  $region14: #{kittycat_forward.6} parent=0 // pred_check
    _
  $region15: #{kittycat_forward.6} parent=0 // pred_check_branch
    %211 = sbr.rel (0) target = $region17
  $region16: #{kittycat_forward.6} parent=0 // pred_region
    _
  $region17: #{kittycat_forward.6} parent=0 // pred_fallthru
    _

// kernel: kittycat_forward.5
$region0: #{kittycat_forward.5}
  #allocation0 [shape = 'u32[]', space=smem, size = 0x4, offset = 0x4, fixed_abs, tag = 'smem constant byte address 0x4 - core index']
  #allocation1 [shape = 'u32[144,128]{1,0:T(1,128)}', space=vmem, size = 0x12000, scoped, tag = 'internal scratch']
  %s0 = inlined_call_operand.vmem [shape: f32[8,8,32], index: 0, kind: input, shape index: {}]
  %s1 = inlined_call_operand.vmem [shape: f32[1,32], index: 1, kind: input, shape index: {}]
  %s2 = inlined_call_operand.vmem [shape: f32[8,8], index: 2, kind: output, shape index: {}]
  %s3 = sld [smem:[#allocation0]]
  $region18: #{kittycat_forward.5} parent=0
    _
  %s5 = ssub.s32 1, %s3
  %s6 = scalar_select 0, %s5, %s3
  // Predicated region
  $region2: #{kittycat_forward.5} parent=0 // pred_check
    _
  $region3: #{kittycat_forward.5} parent=0 // pred_check_branch
    %8 = sbr.rel (0) target = $region5
  $region4: #{kittycat_forward.5} parent=0 // pred_region
    _
  $region5: #{kittycat_forward.5} parent=0 // pred_fallthru
    _
  // Predicated region
  $region6: #{kittycat_forward.5} parent=0 // pred_check
    _
  $region7: #{kittycat_forward.5} parent=0 // pred_check_branch
    %10 = sbr.rel (0) target = $region9
  $region8: #{kittycat_forward.5} parent=0 // pred_region
    _
  $region9: #{kittycat_forward.5} parent=0 // pred_fallthru
    _
  %v11 = vld [vmem:[%s0] sm:$0xff]
  %v12 = vld [vmem:[%s0 + $0x8] sm:$0xff]
  %v13 = vld [vmem:[%s0 + $0x10] sm:$0xff]
  %v14 = vld [vmem:[%s0 + $0x18] sm:$0xff]
  %v15 = vld [vmem:[%s0 + $0x20] sm:$0xff]
  %v16 = vld [vmem:[%s0 + $0x28] sm:$0xff]
  %v17 = vld [vmem:[%s0 + $0x30] sm:$0xff]
  %v18 = vld [vmem:[%s0 + $0x38] sm:$0xff]
  %v19 = vld [vmem:[%s1] sm:$0x1]
  %v21 = vlaneseq
  %v22 = vshrl.u32 %v21, 7
  %v23 = vsub.s32 0, %v22
  %v24 = vrot.slane %v19, %v23
  %v26 = vmul.f32 %v11, %v24
  %v27 = vmul.f32 %v12, %v24
  %v28 = vmul.f32 %v13, %v24
  %v29 = vmul.f32 %v14, %v24
  %v30 = vmul.f32 %v15, %v24
  %v31 = vmul.f32 %v16, %v24
  %v32 = vmul.f32 %v17, %v24
  %v33 = vmul.f32 %v18, %v24
  %vm34 = vcmask 261120
  %v35 = vsel %vm34, %v26, 0.0
  %36 = vadd.xlane.f32.xlu0 %v35
  %v37 = vpop.xlane.xlu0 %36
  %v38 = vsel %vm34, %v27, 0.0
  %39 = vadd.xlane.f32.xlu0 %v38
  %v40 = vpop.xlane.xlu0 %39
  %v41 = vsel %vm34, %v28, 0.0
  %42 = vadd.xlane.f32.xlu0 %v41
  %v43 = vpop.xlane.xlu0 %42
  %v44 = vsel %vm34, %v29, 0.0
  %45 = vadd.xlane.f32.xlu0 %v44
  %v46 = vpop.xlane.xlu0 %45
  %v47 = vsel %vm34, %v30, 0.0
  %48 = vadd.xlane.f32.xlu0 %v47
  %v49 = vpop.xlane.xlu0 %48
  %v50 = vsel %vm34, %v31, 0.0
  %51 = vadd.xlane.f32.xlu0 %v50
  %v52 = vpop.xlane.xlu0 %51
  %v53 = vsel %vm34, %v32, 0.0
  %54 = vadd.xlane.f32.xlu0 %v53
  %v55 = vpop.xlane.xlu0 %54
  %v56 = vsel %vm34, %v33, 0.0
  %57 = vadd.xlane.f32.xlu0 %v56
  %v58 = vpop.xlane.xlu0 %57
  %v67 = vlaneseq
  %v68 = vand.u32 %v67, 127
  %v69 = vlaneseq
  %v70 = vshrl.u32 %v69, 7
  %v71 = vsub.s32 %v68, %v70
  %v72 = vrot.slane %v37, %v71
  %v73 = vlaneseq
  %v74 = vshrl.u32 %v73, 7
  %v75 = vsub.s32 %v68, %v74
  %v76 = vrot.slane %v40, %v75
  %v77 = vlaneseq
  %v78 = vshrl.u32 %v77, 7
  %v79 = vsub.s32 %v68, %v78
  %v80 = vrot.slane %v43, %v79
  %v81 = vlaneseq
  %v82 = vshrl.u32 %v81, 7
  %v83 = vsub.s32 %v68, %v82
  %v84 = vrot.slane %v46, %v83
  %v85 = vlaneseq
  %v86 = vshrl.u32 %v85, 7
  %v87 = vsub.s32 %v68, %v86
  %v88 = vrot.slane %v49, %v87
  %v89 = vlaneseq
  %v90 = vshrl.u32 %v89, 7
  %v91 = vsub.s32 %v68, %v90
  %v92 = vrot.slane %v52, %v91
  %v93 = vlaneseq
  %v94 = vshrl.u32 %v93, 7
  %v95 = vsub.s32 %v68, %v94
  %v96 = vrot.slane %v55, %v95
  %v97 = vlaneseq
  %v98 = vshrl.u32 %v97, 7
  %v99 = vsub.s32 %v68, %v98
  %v100 = vrot.slane %v58, %v99
  %vm101 = vcmask 1041409
  %v102 = vsel %vm101, %v76, %v72
  %vm103 = vcmask 1042434
  %v104 = vsel %vm103, %v80, %v102
  %vm105 = vcmask 1043459
  %v106 = vsel %vm105, %v84, %v104
  %vm107 = vcmask 1044484
  %v108 = vsel %vm107, %v88, %v106
  %vm109 = vcmask 1045509
  %v110 = vsel %vm109, %v92, %v108
  %vm111 = vcmask 1046534
  %v112 = vsel %vm111, %v96, %v110
  %vm113 = vcmask 1047559
  %v114 = vsel %vm113, %v100, %v112
  %vm116 = vcmask 64512
  %117 = vst.msk [vmem:[%s2] sm:$0xff] %vm116, %v114
  // Predicated region
  $region10: #{kittycat_forward.5} parent=0 // pred_check
    _
  $region11: #{kittycat_forward.5} parent=0 // pred_check_branch
    %119 = sbr.rel (0) target = $region13
  $region12: #{kittycat_forward.5} parent=0 // pred_region
    _
  $region13: #{kittycat_forward.5} parent=0 // pred_fallthru
    _
  // Predicated region
  $region14: #{kittycat_forward.5} parent=0 // pred_check
    _
  $region15: #{kittycat_forward.5} parent=0 // pred_check_branch
    %121 = sbr.rel (0) target = $region17
  $region16: #{kittycat_forward.5} parent=0 // pred_region
    _
  $region17: #{kittycat_forward.5} parent=0 // pred_fallthru
    _

// kernel: kittycat_forward.8
$region0: #{kittycat_forward.8}
  #allocation0 [shape = 'u32[]', space=smem, size = 0x4, offset = 0x4, fixed_abs, tag = 'smem constant byte address 0x4 - core index']
  #allocation1 [shape = 'u32[144,128]{1,0:T(1,128)}', space=vmem, size = 0x12000, scoped, tag = 'internal scratch']
  %s0 = inlined_call_operand.vmem [shape: f32[2,4,24], index: 0, kind: input, shape index: {}]
  %s1 = inlined_call_operand.vmem [shape: f32[3,4,4,1], index: 1, kind: input, shape index: {}]
  %s2 = inlined_call_operand.vmem [shape: f32[4,1], index: 2, kind: input, shape index: {}]
  %s3 = inlined_call_operand.vmem [shape: f32[4,1], index: 3, kind: input, shape index: {}]
  %s4 = inlined_call_operand.vmem [shape: f32[4,1], index: 4, kind: input, shape index: {}]
  %s5 = inlined_call_operand.vmem [shape: f32[9,4,4,1], index: 5, kind: input, shape index: {}]
  %s6 = inlined_call_operand.vmem [shape: f32[4,1], index: 6, kind: input, shape index: {}]
  %s7 = inlined_call_operand.vmem [shape: f32[4,1], index: 7, kind: input, shape index: {}]
  %s8 = inlined_call_operand.vmem [shape: f32[4,1], index: 8, kind: input, shape index: {}]
  %s9 = inlined_call_operand.vmem [shape: f32[2,4,16], index: 9, kind: output, shape index: {0}]
  %s10 = inlined_call_operand.vmem [shape: f32[2,4,16], index: 10, kind: output, shape index: {1}]
  %11 = xla_tuple %s9, %s10
  %s12 = sld [smem:[#allocation0]]
  $region54: #{kittycat_forward.8} parent=0
    _
  %s14 = ssub.s32 1, %s12
  %s15 = scalar_select 0, %s14, %s12
  // Predicated region
  $region2: #{kittycat_forward.8} parent=0 // pred_check
    _
  $region3: #{kittycat_forward.8} parent=0 // pred_check_branch
    %17 = sbr.rel (0) target = $region5
  $region4: #{kittycat_forward.8} parent=0 // pred_region
    _
  $region5: #{kittycat_forward.8} parent=0 // pred_fallthru
    _
  // Predicated region
  $region6: #{kittycat_forward.8} parent=0 // pred_check
    _
  $region7: #{kittycat_forward.8} parent=0 // pred_check_branch
    %19 = sbr.rel (0) target = $region9
  $region8: #{kittycat_forward.8} parent=0 // pred_region
    _
  $region9: #{kittycat_forward.8} parent=0 // pred_fallthru
    _
  // Predicated region
  $region10: #{kittycat_forward.8} parent=0 // pred_check
    _
  $region11: #{kittycat_forward.8} parent=0 // pred_check_branch
    %21 = sbr.rel (0) target = $region13
  $region12: #{kittycat_forward.8} parent=0 // pred_region
    _
  $region13: #{kittycat_forward.8} parent=0 // pred_fallthru
    _
  // Predicated region
  $region14: #{kittycat_forward.8} parent=0 // pred_check
    _
  $region15: #{kittycat_forward.8} parent=0 // pred_check_branch
    %23 = sbr.rel (0) target = $region17
  $region16: #{kittycat_forward.8} parent=0 // pred_region
    _
  $region17: #{kittycat_forward.8} parent=0 // pred_fallthru
    _
  // Predicated region
  $region18: #{kittycat_forward.8} parent=0 // pred_check
    _
  $region19: #{kittycat_forward.8} parent=0 // pred_check_branch
    %25 = sbr.rel (0) target = $region21
  $region20: #{kittycat_forward.8} parent=0 // pred_region
    _
  $region21: #{kittycat_forward.8} parent=0 // pred_fallthru
    _
  // Predicated region
  $region22: #{kittycat_forward.8} parent=0 // pred_check
    _
  $region23: #{kittycat_forward.8} parent=0 // pred_check_branch
    %27 = sbr.rel (0) target = $region25
  $region24: #{kittycat_forward.8} parent=0 // pred_region
    _
  $region25: #{kittycat_forward.8} parent=0 // pred_fallthru
    _
  // Predicated region
  $region26: #{kittycat_forward.8} parent=0 // pred_check
    _
  $region27: #{kittycat_forward.8} parent=0 // pred_check_branch
    %29 = sbr.rel (0) target = $region29
  $region28: #{kittycat_forward.8} parent=0 // pred_region
    _
  $region29: #{kittycat_forward.8} parent=0 // pred_fallthru
    _
  // Predicated region
  $region30: #{kittycat_forward.8} parent=0 // pred_check
    _
  $region31: #{kittycat_forward.8} parent=0 // pred_check_branch
    %31 = sbr.rel (0) target = $region33
  $region32: #{kittycat_forward.8} parent=0 // pred_region
    _
  $region33: #{kittycat_forward.8} parent=0 // pred_fallthru
    _
  // Predicated region
  $region34: #{kittycat_forward.8} parent=0 // pred_check
    _
  $region35: #{kittycat_forward.8} parent=0 // pred_check_branch
    %33 = sbr.rel (0) target = $region37
  $region36: #{kittycat_forward.8} parent=0 // pred_region
    _
  $region37: #{kittycat_forward.8} parent=0 // pred_fallthru
    _
  %v34 = vld [vmem:[%s0] sm:$0xf]
  %v35 = vld [vmem:[%s0 + $0x4] sm:$0xf]
  %v36 = vld [vmem:[%s1] sm:$0xf]
  %v37 = vld [vmem:[%s1 + $0x4] sm:$0xf]
  %v38 = vld [vmem:[%s1 + $0x8] sm:$0xf]
  %v39 = vld [vmem:[%s1 + $0xc] sm:$0xf]
  %v40 = vld [vmem:[%s1 + $0x10] sm:$0xf]
  %v41 = vld [vmem:[%s1 + $0x14] sm:$0xf]
  %v42 = vld [vmem:[%s1 + $0x18] sm:$0xf]
  %v43 = vld [vmem:[%s1 + $0x1c] sm:$0xf]
  %v44 = vld [vmem:[%s1 + $0x20] sm:$0xf]
  %v45 = vld [vmem:[%s1 + $0x24] sm:$0xf]
  %v46 = vld [vmem:[%s1 + $0x28] sm:$0xf]
  %v47 = vld [vmem:[%s1 + $0x2c] sm:$0xf]
  %49 = vset.pattern.permute.xlu0 0
  %50 = vperm.xlu0 %49, %v36
  %v51 = vpop.permute.xlu0 %50
  %v53 = vlaneseq
  %v54 = vshrl.u32 %v53, 7
  %v55 = vsub.s32 0, %v54
  %v56 = vrot.slane %v34, %v55
  %v57 = vlaneseq
  %v58 = vshrl.u32 %v57, 7
  %v59 = vsub.s32 0, %v58
  %v60 = vrot.slane %v35, %v59
  %v61 = vmul.f32 %v51, %v56
  %v62 = vmul.f32 %v51, %v60
  %v63 = vadd.f32 %v61, 0.0
  %v64 = vadd.f32 %v62, 0.0
  %66 = vset.pattern.permute.xlu0 0
  %67 = vperm.xlu0 %66, %v37
  %v68 = vpop.permute.xlu0 %67
  %v70 = vlaneseq
  %v71 = vshrl.u32 %v70, 7
  %v72 = vsub.s32 1, %v71
  %v73 = vrot.slane %v34, %v72
  %v74 = vlaneseq
  %v75 = vshrl.u32 %v74, 7
  %v76 = vsub.s32 1, %v75
  %v77 = vrot.slane %v35, %v76
  %v78 = vmul.f32 %v68, %v73
  %v79 = vmul.f32 %v68, %v77
  %v80 = vadd.f32 %v63, %v78
  %v81 = vadd.f32 %v64, %v79
  %83 = vset.pattern.permute.xlu0 0
  %84 = vperm.xlu0 %83, %v38
  %v85 = vpop.permute.xlu0 %84
  %v87 = vlaneseq
  %v88 = vshrl.u32 %v87, 7
  %v89 = vsub.s32 2, %v88
  %v90 = vrot.slane %v34, %v89
  %v91 = vlaneseq
  %v92 = vshrl.u32 %v91, 7
  %v93 = vsub.s32 2, %v92
  %v94 = vrot.slane %v35, %v93
  %v95 = vmul.f32 %v85, %v90
  %v96 = vmul.f32 %v85, %v94
  %v97 = vadd.f32 %v80, %v95
  %v98 = vadd.f32 %v81, %v96
  %100 = vset.pattern.permute.xlu0 0
  %101 = vperm.xlu0 %100, %v39
  %v102 = vpop.permute.xlu0 %101
  %v104 = vlaneseq
  %v105 = vshrl.u32 %v104, 7
  %v106 = vsub.s32 3, %v105
  %v107 = vrot.slane %v34, %v106
  %v108 = vlaneseq
  %v109 = vshrl.u32 %v108, 7
  %v110 = vsub.s32 3, %v109
  %v111 = vrot.slane %v35, %v110
  %v112 = vmul.f32 %v102, %v107
  %v113 = vmul.f32 %v102, %v111
  %v114 = vadd.f32 %v97, %v112
  %v115 = vadd.f32 %v98, %v113
  %117 = vset.pattern.permute.xlu0 0
  %118 = vperm.xlu0 %117, %v40
  %v119 = vpop.permute.xlu0 %118
  %v121 = vmul.f32 %v119, %v56
  %v122 = vmul.f32 %v119, %v60
  %125 = vrot.lane.b32.xlu0 %v121, 127
  %v126 = vpop.permute.xlu0 %125
  %127 = vrot.lane.b32.xlu0 %v122, 127
  %v128 = vpop.permute.xlu0 %127
  %v131 = vadd.f32 %v114, %v126
  %v132 = vadd.f32 %v115, %v128
  %134 = vset.pattern.permute.xlu0 0
  %135 = vperm.xlu0 %134, %v41
  %v136 = vpop.permute.xlu0 %135
  %v138 = vmul.f32 %v136, %v73
  %v139 = vmul.f32 %v136, %v77
  %142 = vrot.lane.b32.xlu0 %v138, 127
  %v143 = vpop.permute.xlu0 %142
  %144 = vrot.lane.b32.xlu0 %v139, 127
  %v145 = vpop.permute.xlu0 %144
  %v148 = vadd.f32 %v131, %v143
  %v149 = vadd.f32 %v132, %v145
  %151 = vset.pattern.permute.xlu0 0
  %152 = vperm.xlu0 %151, %v42
  %v153 = vpop.permute.xlu0 %152
  %v155 = vmul.f32 %v153, %v90
  %v156 = vmul.f32 %v153, %v94
  %159 = vrot.lane.b32.xlu0 %v155, 127
  %v160 = vpop.permute.xlu0 %159
  %161 = vrot.lane.b32.xlu0 %v156, 127
  %v162 = vpop.permute.xlu0 %161
  %v165 = vadd.f32 %v148, %v160
  %v166 = vadd.f32 %v149, %v162
  %168 = vset.pattern.permute.xlu0 0
  %169 = vperm.xlu0 %168, %v43
  %v170 = vpop.permute.xlu0 %169
  %v172 = vmul.f32 %v170, %v107
  %v173 = vmul.f32 %v170, %v111
  %176 = vrot.lane.b32.xlu0 %v172, 127
  %v177 = vpop.permute.xlu0 %176
  %178 = vrot.lane.b32.xlu0 %v173, 127
  %v179 = vpop.permute.xlu0 %178
  %v182 = vadd.f32 %v165, %v177
  %v183 = vadd.f32 %v166, %v179
  %185 = vset.pattern.permute.xlu0 0
  %186 = vperm.xlu0 %185, %v44
  %v187 = vpop.permute.xlu0 %186
  %v189 = vmul.f32 %v187, %v56
  %v190 = vmul.f32 %v187, %v60
  %193 = vrot.lane.b32.xlu0 %v189, 126
  %v194 = vpop.permute.xlu0 %193
  %195 = vrot.lane.b32.xlu0 %v190, 126
  %v196 = vpop.permute.xlu0 %195
  %v199 = vadd.f32 %v182, %v194
  %v200 = vadd.f32 %v183, %v196
  %202 = vset.pattern.permute.xlu0 0
  %203 = vperm.xlu0 %202, %v45
  %v204 = vpop.permute.xlu0 %203
  %v206 = vmul.f32 %v204, %v73
  %v207 = vmul.f32 %v204, %v77
  %210 = vrot.lane.b32.xlu0 %v206, 126
  %v211 = vpop.permute.xlu0 %210
  %212 = vrot.lane.b32.xlu0 %v207, 126
  %v213 = vpop.permute.xlu0 %212
  %v216 = vadd.f32 %v199, %v211
  %v217 = vadd.f32 %v200, %v213
  %219 = vset.pattern.permute.xlu0 0
  %220 = vperm.xlu0 %219, %v46
  %v221 = vpop.permute.xlu0 %220
  %v223 = vmul.f32 %v221, %v90
  %v224 = vmul.f32 %v221, %v94
  %227 = vrot.lane.b32.xlu0 %v223, 126
  %v228 = vpop.permute.xlu0 %227
  %229 = vrot.lane.b32.xlu0 %v224, 126
  %v230 = vpop.permute.xlu0 %229
  %v233 = vadd.f32 %v216, %v228
  %v234 = vadd.f32 %v217, %v230
  %236 = vset.pattern.permute.xlu0 0
  %237 = vperm.xlu0 %236, %v47
  %v238 = vpop.permute.xlu0 %237
  %v240 = vmul.f32 %v238, %v107
  %v241 = vmul.f32 %v238, %v111
  %244 = vrot.lane.b32.xlu0 %v240, 126
  %v245 = vpop.permute.xlu0 %244
  %246 = vrot.lane.b32.xlu0 %v241, 126
  %v247 = vpop.permute.xlu0 %246
  %v250 = vadd.f32 %v233, %v245
  %v251 = vadd.f32 %v234, %v247
  %v252 = vld [vmem:[%s2] sm:$0xf]
  %254 = vset.pattern.permute.xlu0 0
  %255 = vperm.xlu0 %254, %v252
  %v256 = vpop.permute.xlu0 %255
  %v258 = vadd.f32 %v250, %v256
  %v259 = vadd.f32 %v251, %v256
  %262 = vrot.lane.b32.xlu0 %v258, 125
  %v263 = vpop.permute.xlu0 %262
  %264 = vrot.lane.b32.xlu0 %v259, 125
  %v265 = vpop.permute.xlu0 %264
  %vm268 = vcmask 125952
  %v269 = vsel %vm268, %v263, 0.0
  %v270 = vsel %vm268, %v265, 0.0
  %v271 = vadd.f32 %v269, %v270
  %272 = vadd.xlane.f32.xlu0 %v271
  %v273 = vpop.xlane.xlu0 %272
  %v274 = vrcp.pop 32.0
  %v275 = vmul.f32 %v273, %v274
  %v276 = vsub.f32 %v258, %v275
  %v277 = vsub.f32 %v259, %v275
  %v278 = vmul.f32 %v276, %v276
  %v279 = vmul.f32 %v277, %v277
  %282 = vrot.lane.b32.xlu0 %v278, 125
  %v283 = vpop.permute.xlu0 %282
  %284 = vrot.lane.b32.xlu0 %v279, 125
  %v285 = vpop.permute.xlu0 %284
  %v288 = vsel %vm268, %v283, 0.0
  %v289 = vsel %vm268, %v285, 0.0
  %v290 = vadd.f32 %v288, %v289
  %291 = vadd.xlane.f32.xlu0 %v290
  %v292 = vpop.xlane.xlu0 %291
  %v293 = vmul.f32 %v292, %v274
  %v294 = vadd.f32 %v293, 1e-05
  %v295 = vrsqrt.pop %v294
  %v296 = vmul.f32 %v276, %v295
  %v297 = vmul.f32 %v277, %v295
  %v298 = vld [vmem:[%s3] sm:$0xf]
  %300 = vset.pattern.permute.xlu0 0
  %301 = vperm.xlu0 %300, %v298
  %v302 = vpop.permute.xlu0 %301
  %v304 = vmul.f32 %v296, %v302
  %v305 = vmul.f32 %v297, %v302
  %v306 = vld [vmem:[%s4] sm:$0xf]
  %308 = vset.pattern.permute.xlu0 0
  %309 = vperm.xlu0 %308, %v306
  %v310 = vpop.permute.xlu0 %309
  %v312 = vadd.f32 %v304, %v310
  %v313 = vadd.f32 %v305, %v310
  %vm314 = vcmask 150552
  %v315 = vsel %vm314, %v312, -inf
  %316 = vmax.xlane.f32.xlu0 %v315
  %v317 = vpop.xlane.xlu0 %316
  %v318 = vsel %vm314, %v313, -inf
  %319 = vmax.xlane.f32.xlu0 %v318
  %v320 = vpop.xlane.xlu0 %319
  %v321 = vsub.f32 %v312, %v317
  %v322 = vsub.f32 %v313, %v320
  %v323 = vmul.f32 %v321, 1.442695
  %v324 = vpow.pop %v323
  %v325 = vmul.f32 %v322, 1.442695
  %v326 = vpow.pop %v325
  %329 = vrot.lane.b32.xlu0 %v324, 125
  %v330 = vpop.permute.xlu0 %329
  %331 = vrot.lane.b32.xlu0 %v326, 125
  %v332 = vpop.permute.xlu0 %331
  %v335 = vsel %vm268, %v330, 0.0
  %336 = vadd.xlane.f32.xlu0 %v335
  %v337 = vpop.xlane.xlu0 %336
  %v338 = vsel %vm268, %v332, 0.0
  %339 = vadd.xlane.f32.xlu0 %v338
  %v340 = vpop.xlane.xlu0 %339
  %v341 = vrcp.pop %v337
  %v342 = vmul.f32 %v324, %v341
  %v343 = vrcp.pop %v340
  %v344 = vmul.f32 %v326, %v343
  %347 = vrot.lane.b32.xlu0 %v342, 125
  %v348 = vpop.permute.xlu0 %347
  %349 = vrot.lane.b32.xlu0 %v344, 125
  %v350 = vpop.permute.xlu0 %349
  %353 = vst.msk [vmem:[%s9] sm:$0xf] %vm268, %v348
  %354 = vst.msk [vmem:[%s9 + $0x4] sm:$0xf] %vm268, %v350
  %v355 = vld [vmem:[%s5] sm:$0xf]
  %v356 = vld [vmem:[%s5 + $0x4] sm:$0xf]
  %v357 = vld [vmem:[%s5 + $0x8] sm:$0xf]
  %v358 = vld [vmem:[%s5 + $0xc] sm:$0xf]
  %v359 = vld [vmem:[%s5 + $0x10] sm:$0xf]
  %v360 = vld [vmem:[%s5 + $0x14] sm:$0xf]
  %v361 = vld [vmem:[%s5 + $0x18] sm:$0xf]
  %v362 = vld [vmem:[%s5 + $0x1c] sm:$0xf]
  %v363 = vld [vmem:[%s5 + $0x20] sm:$0xf]
  %v364 = vld [vmem:[%s5 + $0x24] sm:$0xf]
  %v365 = vld [vmem:[%s5 + $0x28] sm:$0xf]
  %v366 = vld [vmem:[%s5 + $0x2c] sm:$0xf]
  %v367 = vld [vmem:[%s5 + $0x30] sm:$0xf]
  %v368 = vld [vmem:[%s5 + $0x34] sm:$0xf]
  %v369 = vld [vmem:[%s5 + $0x38] sm:$0xf]
  %v370 = vld [vmem:[%s5 + $0x3c] sm:$0xf]
  %v371 = vld [vmem:[%s5 + $0x40] sm:$0xf]
  %v372 = vld [vmem:[%s5 + $0x44] sm:$0xf]
  %v373 = vld [vmem:[%s5 + $0x48] sm:$0xf]
  %v374 = vld [vmem:[%s5 + $0x4c] sm:$0xf]
  %v375 = vld [vmem:[%s5 + $0x50] sm:$0xf]
  %v376 = vld [vmem:[%s5 + $0x54] sm:$0xf]
  %v377 = vld [vmem:[%s5 + $0x58] sm:$0xf]
  %v378 = vld [vmem:[%s5 + $0x5c] sm:$0xf]
  %v379 = vld [vmem:[%s5 + $0x60] sm:$0xf]
  %v380 = vld [vmem:[%s5 + $0x64] sm:$0xf]
  %v381 = vld [vmem:[%s5 + $0x68] sm:$0xf]
  %v382 = vld [vmem:[%s5 + $0x6c] sm:$0xf]
  %v383 = vld [vmem:[%s5 + $0x70] sm:$0xf]
  %v384 = vld [vmem:[%s5 + $0x74] sm:$0xf]
  %v385 = vld [vmem:[%s5 + $0x78] sm:$0xf]
  %v386 = vld [vmem:[%s5 + $0x7c] sm:$0xf]
  %v387 = vld [vmem:[%s5 + $0x80] sm:$0xf]
  %v388 = vld [vmem:[%s5 + $0x84] sm:$0xf]
  %v389 = vld [vmem:[%s5 + $0x88] sm:$0xf]
  %v390 = vld [vmem:[%s5 + $0x8c] sm:$0xf]
  %392 = vset.pattern.permute.xlu0 0
  %393 = vperm.xlu0 %392, %v355
  %v394 = vpop.permute.xlu0 %393
  %v396 = vmul.f32 %v394, %v56
  %v397 = vmul.f32 %v394, %v60
  %v398 = vadd.f32 %v396, 0.0
  %v399 = vadd.f32 %v397, 0.0
  %401 = vset.pattern.permute.xlu0 0
  %402 = vperm.xlu0 %401, %v356
  %v403 = vpop.permute.xlu0 %402
  %v405 = vmul.f32 %v403, %v73
  %v406 = vmul.f32 %v403, %v77
  %v407 = vadd.f32 %v398, %v405
  %v408 = vadd.f32 %v399, %v406
  %410 = vset.pattern.permute.xlu0 0
  %411 = vperm.xlu0 %410, %v357
  %v412 = vpop.permute.xlu0 %411
  %v414 = vmul.f32 %v412, %v90
  %v415 = vmul.f32 %v412, %v94
  %v416 = vadd.f32 %v407, %v414
  %v417 = vadd.f32 %v408, %v415
  %419 = vset.pattern.permute.xlu0 0
  %420 = vperm.xlu0 %419, %v358
  %v421 = vpop.permute.xlu0 %420
  %v423 = vmul.f32 %v421, %v107
  %v424 = vmul.f32 %v421, %v111
  %v425 = vadd.f32 %v416, %v423
  %v426 = vadd.f32 %v417, %v424
  %428 = vset.pattern.permute.xlu0 0
  %429 = vperm.xlu0 %428, %v359
  %v430 = vpop.permute.xlu0 %429
  %v432 = vmul.f32 %v430, %v56
  %v433 = vmul.f32 %v430, %v60
  %436 = vrot.lane.b32.xlu0 %v432, 127
  %v437 = vpop.permute.xlu0 %436
  %438 = vrot.lane.b32.xlu0 %v433, 127
  %v439 = vpop.permute.xlu0 %438
  %v442 = vadd.f32 %v425, %v437
  %v443 = vadd.f32 %v426, %v439
  %445 = vset.pattern.permute.xlu0 0
  %446 = vperm.xlu0 %445, %v360
  %v447 = vpop.permute.xlu0 %446
  %v449 = vmul.f32 %v447, %v73
  %v450 = vmul.f32 %v447, %v77
  %453 = vrot.lane.b32.xlu0 %v449, 127
  %v454 = vpop.permute.xlu0 %453
  %455 = vrot.lane.b32.xlu0 %v450, 127
  %v456 = vpop.permute.xlu0 %455
  %v459 = vadd.f32 %v442, %v454
  %v460 = vadd.f32 %v443, %v456
  %462 = vset.pattern.permute.xlu0 0
  %463 = vperm.xlu0 %462, %v361
  %v464 = vpop.permute.xlu0 %463
  %v466 = vmul.f32 %v464, %v90
  %v467 = vmul.f32 %v464, %v94
  %470 = vrot.lane.b32.xlu0 %v466, 127
  %v471 = vpop.permute.xlu0 %470
  %472 = vrot.lane.b32.xlu0 %v467, 127
  %v473 = vpop.permute.xlu0 %472
  %v476 = vadd.f32 %v459, %v471
  %v477 = vadd.f32 %v460, %v473
  %479 = vset.pattern.permute.xlu0 0
  %480 = vperm.xlu0 %479, %v362
  %v481 = vpop.permute.xlu0 %480
  %v483 = vmul.f32 %v481, %v107
  %v484 = vmul.f32 %v481, %v111
  %487 = vrot.lane.b32.xlu0 %v483, 127
  %v488 = vpop.permute.xlu0 %487
  %489 = vrot.lane.b32.xlu0 %v484, 127
  %v490 = vpop.permute.xlu0 %489
  %v493 = vadd.f32 %v476, %v488
  %v494 = vadd.f32 %v477, %v490
  %496 = vset.pattern.permute.xlu0 0
  %497 = vperm.xlu0 %496, %v363
  %v498 = vpop.permute.xlu0 %497
  %v500 = vmul.f32 %v498, %v56
  %v501 = vmul.f32 %v498, %v60
  %504 = vrot.lane.b32.xlu0 %v500, 126
  %v505 = vpop.permute.xlu0 %504
  %506 = vrot.lane.b32.xlu0 %v501, 126
  %v507 = vpop.permute.xlu0 %506
  %v510 = vadd.f32 %v493, %v505
  %v511 = vadd.f32 %v494, %v507
  %513 = vset.pattern.permute.xlu0 0
  %514 = vperm.xlu0 %513, %v364
  %v515 = vpop.permute.xlu0 %514
  %v517 = vmul.f32 %v515, %v73
  %v518 = vmul.f32 %v515, %v77
  %521 = vrot.lane.b32.xlu0 %v517, 126
  %v522 = vpop.permute.xlu0 %521
  %523 = vrot.lane.b32.xlu0 %v518, 126
  %v524 = vpop.permute.xlu0 %523
  %v527 = vadd.f32 %v510, %v522
  %v528 = vadd.f32 %v511, %v524
  %530 = vset.pattern.permute.xlu0 0
  %531 = vperm.xlu0 %530, %v365
  %v532 = vpop.permute.xlu0 %531
  %v534 = vmul.f32 %v532, %v90
  %v535 = vmul.f32 %v532, %v94
  %538 = vrot.lane.b32.xlu0 %v534, 126
  %v539 = vpop.permute.xlu0 %538
  %540 = vrot.lane.b32.xlu0 %v535, 126
  %v541 = vpop.permute.xlu0 %540
  %v544 = vadd.f32 %v527, %v539
  %v545 = vadd.f32 %v528, %v541
  %547 = vset.pattern.permute.xlu0 0
  %548 = vperm.xlu0 %547, %v366
  %v549 = vpop.permute.xlu0 %548
  %v551 = vmul.f32 %v549, %v107
  %v552 = vmul.f32 %v549, %v111
  %555 = vrot.lane.b32.xlu0 %v551, 126
  %v556 = vpop.permute.xlu0 %555
  %557 = vrot.lane.b32.xlu0 %v552, 126
  %v558 = vpop.permute.xlu0 %557
  %v561 = vadd.f32 %v544, %v556
  %v562 = vadd.f32 %v545, %v558
  %564 = vset.pattern.permute.xlu0 0
  %565 = vperm.xlu0 %564, %v367
  %v566 = vpop.permute.xlu0 %565
  %v568 = vmul.f32 %v566, %v56
  %v569 = vmul.f32 %v566, %v60
  %572 = vrot.lane.b32.xlu0 %v568, 125
  %v573 = vpop.permute.xlu0 %572
  %574 = vrot.lane.b32.xlu0 %v569, 125
  %v575 = vpop.permute.xlu0 %574
  %v578 = vadd.f32 %v561, %v573
  %v579 = vadd.f32 %v562, %v575
  %581 = vset.pattern.permute.xlu0 0
  %582 = vperm.xlu0 %581, %v368
  %v583 = vpop.permute.xlu0 %582
  %v585 = vmul.f32 %v583, %v73
  %v586 = vmul.f32 %v583, %v77
  %589 = vrot.lane.b32.xlu0 %v585, 125
  %v590 = vpop.permute.xlu0 %589
  %591 = vrot.lane.b32.xlu0 %v586, 125
  %v592 = vpop.permute.xlu0 %591
  %v595 = vadd.f32 %v578, %v590
  %v596 = vadd.f32 %v579, %v592
  %598 = vset.pattern.permute.xlu0 0
  %599 = vperm.xlu0 %598, %v369
  %v600 = vpop.permute.xlu0 %599
  %v602 = vmul.f32 %v600, %v90
  %v603 = vmul.f32 %v600, %v94
  %606 = vrot.lane.b32.xlu0 %v602, 125
  %v607 = vpop.permute.xlu0 %606
  %608 = vrot.lane.b32.xlu0 %v603, 125
  %v609 = vpop.permute.xlu0 %608
  %v612 = vadd.f32 %v595, %v607
  %v613 = vadd.f32 %v596, %v609
  %615 = vset.pattern.permute.xlu0 0
  %616 = vperm.xlu0 %615, %v370
  %v617 = vpop.permute.xlu0 %616
  %v619 = vmul.f32 %v617, %v107
  %v620 = vmul.f32 %v617, %v111
  %623 = vrot.lane.b32.xlu0 %v619, 125
  %v624 = vpop.permute.xlu0 %623
  %625 = vrot.lane.b32.xlu0 %v620, 125
  %v626 = vpop.permute.xlu0 %625
  %v629 = vadd.f32 %v612, %v624
  %v630 = vadd.f32 %v613, %v626
  %632 = vset.pattern.permute.xlu0 0
  %633 = vperm.xlu0 %632, %v371
  %v634 = vpop.permute.xlu0 %633
  %v636 = vmul.f32 %v634, %v56
  %v637 = vmul.f32 %v634, %v60
  %640 = vrot.lane.b32.xlu0 %v636, 124
  %v641 = vpop.permute.xlu0 %640
  %642 = vrot.lane.b32.xlu0 %v637, 124
  %v643 = vpop.permute.xlu0 %642
  %v646 = vadd.f32 %v629, %v641
  %v647 = vadd.f32 %v630, %v643
  %649 = vset.pattern.permute.xlu0 0
  %650 = vperm.xlu0 %649, %v372
  %v651 = vpop.permute.xlu0 %650
  %v653 = vmul.f32 %v651, %v73
  %v654 = vmul.f32 %v651, %v77
  %657 = vrot.lane.b32.xlu0 %v653, 124
  %v658 = vpop.permute.xlu0 %657
  %659 = vrot.lane.b32.xlu0 %v654, 124
  %v660 = vpop.permute.xlu0 %659
  %v663 = vadd.f32 %v646, %v658
  %v664 = vadd.f32 %v647, %v660
  %666 = vset.pattern.permute.xlu0 0
  %667 = vperm.xlu0 %666, %v373
  %v668 = vpop.permute.xlu0 %667
  %v670 = vmul.f32 %v668, %v90
  %v671 = vmul.f32 %v668, %v94
  %674 = vrot.lane.b32.xlu0 %v670, 124
  %v675 = vpop.permute.xlu0 %674
  %676 = vrot.lane.b32.xlu0 %v671, 124
  %v677 = vpop.permute.xlu0 %676
  %v680 = vadd.f32 %v663, %v675
  %v681 = vadd.f32 %v664, %v677
  %683 = vset.pattern.permute.xlu0 0
  %684 = vperm.xlu0 %683, %v374
  %v685 = vpop.permute.xlu0 %684
  %v687 = vmul.f32 %v685, %v107
  %v688 = vmul.f32 %v685, %v111
  %691 = vrot.lane.b32.xlu0 %v687, 124
  %v692 = vpop.permute.xlu0 %691
  %693 = vrot.lane.b32.xlu0 %v688, 124
  %v694 = vpop.permute.xlu0 %693
  %v697 = vadd.f32 %v680, %v692
  %v698 = vadd.f32 %v681, %v694
  %700 = vset.pattern.permute.xlu0 0
  %701 = vperm.xlu0 %700, %v375
  %v702 = vpop.permute.xlu0 %701
  %v704 = vmul.f32 %v702, %v56
  %v705 = vmul.f32 %v702, %v60
  %708 = vrot.lane.b32.xlu0 %v704, 123
  %v709 = vpop.permute.xlu0 %708
  %710 = vrot.lane.b32.xlu0 %v705, 123
  %v711 = vpop.permute.xlu0 %710
  %v714 = vadd.f32 %v697, %v709
  %v715 = vadd.f32 %v698, %v711
  %717 = vset.pattern.permute.xlu0 0
  %718 = vperm.xlu0 %717, %v376
  %v719 = vpop.permute.xlu0 %718
  %v721 = vmul.f32 %v719, %v73
  %v722 = vmul.f32 %v719, %v77
  %725 = vrot.lane.b32.xlu0 %v721, 123
  %v726 = vpop.permute.xlu0 %725
  %727 = vrot.lane.b32.xlu0 %v722, 123
  %v728 = vpop.permute.xlu0 %727
  %v731 = vadd.f32 %v714, %v726
  %v732 = vadd.f32 %v715, %v728
  %734 = vset.pattern.permute.xlu0 0
  %735 = vperm.xlu0 %734, %v377
  %v736 = vpop.permute.xlu0 %735
  %v738 = vmul.f32 %v736, %v90
  %v739 = vmul.f32 %v736, %v94
  %742 = vrot.lane.b32.xlu0 %v738, 123
  %v743 = vpop.permute.xlu0 %742
  %744 = vrot.lane.b32.xlu0 %v739, 123
  %v745 = vpop.permute.xlu0 %744
  %v748 = vadd.f32 %v731, %v743
  %v749 = vadd.f32 %v732, %v745
  %751 = vset.pattern.permute.xlu0 0
  %752 = vperm.xlu0 %751, %v378
  %v753 = vpop.permute.xlu0 %752
  %v755 = vmul.f32 %v753, %v107
  %v756 = vmul.f32 %v753, %v111
  %759 = vrot.lane.b32.xlu0 %v755, 123
  %v760 = vpop.permute.xlu0 %759
  %761 = vrot.lane.b32.xlu0 %v756, 123
  %v762 = vpop.permute.xlu0 %761
  %v765 = vadd.f32 %v748, %v760
  %v766 = vadd.f32 %v749, %v762
  %768 = vset.pattern.permute.xlu0 0
  %769 = vperm.xlu0 %768, %v379
  %v770 = vpop.permute.xlu0 %769
  %v772 = vmul.f32 %v770, %v56
  %v773 = vmul.f32 %v770, %v60
  %776 = vrot.lane.b32.xlu0 %v772, 122
  %v777 = vpop.permute.xlu0 %776
  %778 = vrot.lane.b32.xlu0 %v773, 122
  %v779 = vpop.permute.xlu0 %778
  %v782 = vadd.f32 %v765, %v777
  %v783 = vadd.f32 %v766, %v779
  %785 = vset.pattern.permute.xlu0 0
  %786 = vperm.xlu0 %785, %v380
  %v787 = vpop.permute.xlu0 %786
  %v789 = vmul.f32 %v787, %v73
  %v790 = vmul.f32 %v787, %v77
  %793 = vrot.lane.b32.xlu0 %v789, 122
  %v794 = vpop.permute.xlu0 %793
  %795 = vrot.lane.b32.xlu0 %v790, 122
  %v796 = vpop.permute.xlu0 %795
  %v799 = vadd.f32 %v782, %v794
  %v800 = vadd.f32 %v783, %v796
  %802 = vset.pattern.permute.xlu0 0
  %803 = vperm.xlu0 %802, %v381
  %v804 = vpop.permute.xlu0 %803
  %v806 = vmul.f32 %v804, %v90
  %v807 = vmul.f32 %v804, %v94
  %810 = vrot.lane.b32.xlu0 %v806, 122
  %v811 = vpop.permute.xlu0 %810
  %812 = vrot.lane.b32.xlu0 %v807, 122
  %v813 = vpop.permute.xlu0 %812
  %v816 = vadd.f32 %v799, %v811
  %v817 = vadd.f32 %v800, %v813
  %819 = vset.pattern.permute.xlu0 0
  %820 = vperm.xlu0 %819, %v382
  %v821 = vpop.permute.xlu0 %820
  %v823 = vmul.f32 %v821, %v107
  %v824 = vmul.f32 %v821, %v111
  %827 = vrot.lane.b32.xlu0 %v823, 122
  %v828 = vpop.permute.xlu0 %827
  %829 = vrot.lane.b32.xlu0 %v824, 122
  %v830 = vpop.permute.xlu0 %829
  %v833 = vadd.f32 %v816, %v828
  %v834 = vadd.f32 %v817, %v830
  %836 = vset.pattern.permute.xlu0 0
  %837 = vperm.xlu0 %836, %v383
  %v838 = vpop.permute.xlu0 %837
  %v840 = vmul.f32 %v838, %v56
  %v841 = vmul.f32 %v838, %v60
  %844 = vrot.lane.b32.xlu0 %v840, 121
  %v845 = vpop.permute.xlu0 %844
  %846 = vrot.lane.b32.xlu0 %v841, 121
  %v847 = vpop.permute.xlu0 %846
  %v850 = vadd.f32 %v833, %v845
  %v851 = vadd.f32 %v834, %v847
  %853 = vset.pattern.permute.xlu0 0
  %854 = vperm.xlu0 %853, %v384
  %v855 = vpop.permute.xlu0 %854
  %v857 = vmul.f32 %v855, %v73
  %v858 = vmul.f32 %v855, %v77
  %861 = vrot.lane.b32.xlu0 %v857, 121
  %v862 = vpop.permute.xlu0 %861
  %863 = vrot.lane.b32.xlu0 %v858, 121
  %v864 = vpop.permute.xlu0 %863
  %v867 = vadd.f32 %v850, %v862
  %v868 = vadd.f32 %v851, %v864
  %870 = vset.pattern.permute.xlu0 0
  %871 = vperm.xlu0 %870, %v385
  %v872 = vpop.permute.xlu0 %871
  %v874 = vmul.f32 %v872, %v90
  %v875 = vmul.f32 %v872, %v94
  %878 = vrot.lane.b32.xlu0 %v874, 121
  %v879 = vpop.permute.xlu0 %878
  %880 = vrot.lane.b32.xlu0 %v875, 121
  %v881 = vpop.permute.xlu0 %880
  %v884 = vadd.f32 %v867, %v879
  %v885 = vadd.f32 %v868, %v881
  %887 = vset.pattern.permute.xlu0 0
  %888 = vperm.xlu0 %887, %v386
  %v889 = vpop.permute.xlu0 %888
  %v891 = vmul.f32 %v889, %v107
  %v892 = vmul.f32 %v889, %v111
  %895 = vrot.lane.b32.xlu0 %v891, 121
  %v896 = vpop.permute.xlu0 %895
  %897 = vrot.lane.b32.xlu0 %v892, 121
  %v898 = vpop.permute.xlu0 %897
  %v901 = vadd.f32 %v884, %v896
  %v902 = vadd.f32 %v885, %v898
  %904 = vset.pattern.permute.xlu0 0
  %905 = vperm.xlu0 %904, %v387
  %v906 = vpop.permute.xlu0 %905
  %v908 = vmul.f32 %v906, %v56
  %v909 = vmul.f32 %v906, %v60
  %912 = vrot.lane.b32.xlu0 %v908, 120
  %v913 = vpop.permute.xlu0 %912
  %914 = vrot.lane.b32.xlu0 %v909, 120
  %v915 = vpop.permute.xlu0 %914
  %v918 = vadd.f32 %v901, %v913
  %v919 = vadd.f32 %v902, %v915
  %921 = vset.pattern.permute.xlu0 0
  %922 = vperm.xlu0 %921, %v388
  %v923 = vpop.permute.xlu0 %922
  %v925 = vmul.f32 %v923, %v73
  %v926 = vmul.f32 %v923, %v77
  %929 = vrot.lane.b32.xlu0 %v925, 120
  %v930 = vpop.permute.xlu0 %929
  %931 = vrot.lane.b32.xlu0 %v926, 120
  %v932 = vpop.permute.xlu0 %931
  %v935 = vadd.f32 %v918, %v930
  %v936 = vadd.f32 %v919, %v932
  %938 = vset.pattern.permute.xlu0 0
  %939 = vperm.xlu0 %938, %v389
  %v940 = vpop.permute.xlu0 %939
  %v942 = vmul.f32 %v940, %v90
  %v943 = vmul.f32 %v940, %v94
  %946 = vrot.lane.b32.xlu0 %v942, 120
  %v947 = vpop.permute.xlu0 %946
  %948 = vrot.lane.b32.xlu0 %v943, 120
  %v949 = vpop.permute.xlu0 %948
  %v952 = vadd.f32 %v935, %v947
  %v953 = vadd.f32 %v936, %v949
  %955 = vset.pattern.permute.xlu0 0
  %956 = vperm.xlu0 %955, %v390
  %v957 = vpop.permute.xlu0 %956
  %v959 = vmul.f32 %v957, %v107
  %v960 = vmul.f32 %v957, %v111
  %963 = vrot.lane.b32.xlu0 %v959, 120
  %v964 = vpop.permute.xlu0 %963
  %965 = vrot.lane.b32.xlu0 %v960, 120
  %v966 = vpop.permute.xlu0 %965
  %v969 = vadd.f32 %v952, %v964
  %v970 = vadd.f32 %v953, %v966
  %v971 = vld [vmem:[%s6] sm:$0xf]
  %973 = vset.pattern.permute.xlu0 0
  %974 = vperm.xlu0 %973, %v971
  %v975 = vpop.permute.xlu0 %974
  %v977 = vadd.f32 %v969, %v975
  %v978 = vadd.f32 %v970, %v975
  %v979 = vsel %vm268, %v977, 0.0
  %v980 = vsel %vm268, %v978, 0.0
  %v981 = vadd.f32 %v979, %v980
  %982 = vadd.xlane.f32.xlu0 %v981
  %v983 = vpop.xlane.xlu0 %982
  %v984 = vmul.f32 %v983, %v274
  %v985 = vsub.f32 %v977, %v984
  %v986 = vsub.f32 %v978, %v984
  %v987 = vmul.f32 %v985, %v985
  %v988 = vmul.f32 %v986, %v986
  %v989 = vsel %vm268, %v987, 0.0
  %v990 = vsel %vm268, %v988, 0.0
  %v991 = vadd.f32 %v989, %v990
  %992 = vadd.xlane.f32.xlu0 %v991
  %v993 = vpop.xlane.xlu0 %992
  %v994 = vmul.f32 %v993, %v274
  %v995 = vadd.f32 %v994, 1e-05
  %v996 = vrsqrt.pop %v995
  %v997 = vmul.f32 %v985, %v996
  %v998 = vmul.f32 %v986, %v996
  %v999 = vld [vmem:[%s7] sm:$0xf]
  %1001 = vset.pattern.permute.xlu0 0
  %1002 = vperm.xlu0 %1001, %v999
  %v1003 = vpop.permute.xlu0 %1002
  %v1005 = vmul.f32 %v997, %v1003
  %v1006 = vmul.f32 %v998, %v1003
  %v1007 = vld [vmem:[%s8] sm:$0xf]
  %1009 = vset.pattern.permute.xlu0 0
  %1010 = vperm.xlu0 %1009, %v1007
  %v1011 = vpop.permute.xlu0 %1010
  %v1013 = vadd.f32 %v1005, %v1011
  %v1014 = vadd.f32 %v1006, %v1011
  %v1015 = vsel %vm268, %v1013, -inf
  %1016 = vmax.xlane.f32.xlu0 %v1015
  %v1017 = vpop.xlane.xlu0 %1016
  %v1018 = vsel %vm268, %v1014, -inf
  %1019 = vmax.xlane.f32.xlu0 %v1018
  %v1020 = vpop.xlane.xlu0 %1019
  %v1021 = vsub.f32 %v1013, %v1017
  %v1022 = vsub.f32 %v1014, %v1020
  %v1023 = vmul.f32 %v1021, 1.442695
  %v1024 = vpow.pop %v1023
  %v1025 = vmul.f32 %v1022, 1.442695
  %v1026 = vpow.pop %v1025
  %v1027 = vsel %vm268, %v1024, 0.0
  %1028 = vadd.xlane.f32.xlu0 %v1027
  %v1029 = vpop.xlane.xlu0 %1028
  %v1030 = vsel %vm268, %v1026, 0.0
  %1031 = vadd.xlane.f32.xlu0 %v1030
  %v1032 = vpop.xlane.xlu0 %1031
  %v1033 = vrcp.pop %v1029
  %v1034 = vmul.f32 %v1024, %v1033
  %v1035 = vrcp.pop %v1032
  %v1036 = vmul.f32 %v1026, %v1035
  %1037 = vst.msk [vmem:[%s10] sm:$0xf] %vm268, %v1034
  %1038 = vst.msk [vmem:[%s10 + $0x4] sm:$0xf] %vm268, %v1036
  // Predicated region
  $region38: #{kittycat_forward.8} parent=0 // pred_check
    _
  $region39: #{kittycat_forward.8} parent=0 // pred_check_branch
    %1040 = sbr.rel (0) target = $region41
  $region40: #{kittycat_forward.8} parent=0 // pred_region
    _
  $region41: #{kittycat_forward.8} parent=0 // pred_fallthru
    _
  // Predicated region
  $region42: #{kittycat_forward.8} parent=0 // pred_check
    _
  $region43: #{kittycat_forward.8} parent=0 // pred_check_branch
    %1042 = sbr.rel (0) target = $region45
  $region44: #{kittycat_forward.8} parent=0 // pred_region
    _
  $region45: #{kittycat_forward.8} parent=0 // pred_fallthru
    _
  // Predicated region
  $region46: #{kittycat_forward.8} parent=0 // pred_check
    _
  $region47: #{kittycat_forward.8} parent=0 // pred_check_branch
    %1044 = sbr.rel (0) target = $region49
  $region48: #{kittycat_forward.8} parent=0 // pred_region
    _
  $region49: #{kittycat_forward.8} parent=0 // pred_fallthru
    _
  // Predicated region
  $region50: #{kittycat_forward.8} parent=0 // pred_check
    _
  $region51: #{kittycat_forward.8} parent=0 // pred_check_branch
    %1046 = sbr.rel (0) target = $region53
  $region52: #{kittycat_forward.8} parent=0 // pred_region
    _
  $region53: #{kittycat_forward.8} parent=0 // pred_fallthru
    _

// kernel: kittycat_forward.7
$region0: #{kittycat_forward.7}
  #allocation0 [shape = 'u32[]', space=smem, size = 0x4, offset = 0x4, fixed_abs, tag = 'smem constant byte address 0x4 - core index']
  #allocation1 [shape = 'u32[144,128]{1,0:T(1,128)}', space=vmem, size = 0x12000, scoped, tag = 'internal scratch']
  %s0 = inlined_call_operand.vmem [shape: f32[2,4,16], index: 0, kind: input, shape index: {}]
  %s1 = inlined_call_operand.vmem [shape: f32[3,4,4,1], index: 1, kind: input, shape index: {}]
  %s2 = inlined_call_operand.vmem [shape: f32[4,1], index: 2, kind: input, shape index: {}]
  %s3 = inlined_call_operand.vmem [shape: f32[4,1], index: 3, kind: input, shape index: {}]
  %s4 = inlined_call_operand.vmem [shape: f32[4,1], index: 4, kind: input, shape index: {}]
  %s5 = inlined_call_operand.vmem [shape: f32[9,4,4,1], index: 5, kind: input, shape index: {}]
  %s6 = inlined_call_operand.vmem [shape: f32[4,1], index: 6, kind: input, shape index: {}]
  %s7 = inlined_call_operand.vmem [shape: f32[4,1], index: 7, kind: input, shape index: {}]
  %s8 = inlined_call_operand.vmem [shape: f32[4,1], index: 8, kind: input, shape index: {}]
  %s9 = inlined_call_operand.vmem [shape: f32[2,4,8], index: 9, kind: output, shape index: {0}]
  %s10 = inlined_call_operand.vmem [shape: f32[2,4,8], index: 10, kind: output, shape index: {1}]
  %11 = xla_tuple %s9, %s10
  %s12 = sld [smem:[#allocation0]]
  $region54: #{kittycat_forward.7} parent=0
    _
  %s14 = ssub.s32 1, %s12
  %s15 = scalar_select 0, %s14, %s12
  // Predicated region
  $region2: #{kittycat_forward.7} parent=0 // pred_check
    _
  $region3: #{kittycat_forward.7} parent=0 // pred_check_branch
    %17 = sbr.rel (0) target = $region5
  $region4: #{kittycat_forward.7} parent=0 // pred_region
    _
  $region5: #{kittycat_forward.7} parent=0 // pred_fallthru
    _
  // Predicated region
  $region6: #{kittycat_forward.7} parent=0 // pred_check
    _
  $region7: #{kittycat_forward.7} parent=0 // pred_check_branch
    %19 = sbr.rel (0) target = $region9
  $region8: #{kittycat_forward.7} parent=0 // pred_region
    _
  $region9: #{kittycat_forward.7} parent=0 // pred_fallthru
    _
  // Predicated region
  $region10: #{kittycat_forward.7} parent=0 // pred_check
    _
  $region11: #{kittycat_forward.7} parent=0 // pred_check_branch
    %21 = sbr.rel (0) target = $region13
  $region12: #{kittycat_forward.7} parent=0 // pred_region
    _
  $region13: #{kittycat_forward.7} parent=0 // pred_fallthru
    _
  // Predicated region
  $region14: #{kittycat_forward.7} parent=0 // pred_check
    _
  $region15: #{kittycat_forward.7} parent=0 // pred_check_branch
    %23 = sbr.rel (0) target = $region17
  $region16: #{kittycat_forward.7} parent=0 // pred_region
    _
  $region17: #{kittycat_forward.7} parent=0 // pred_fallthru
    _
  // Predicated region
  $region18: #{kittycat_forward.7} parent=0 // pred_check
    _
  $region19: #{kittycat_forward.7} parent=0 // pred_check_branch
    %25 = sbr.rel (0) target = $region21
  $region20: #{kittycat_forward.7} parent=0 // pred_region
    _
  $region21: #{kittycat_forward.7} parent=0 // pred_fallthru
    _
  // Predicated region
  $region22: #{kittycat_forward.7} parent=0 // pred_check
    _
  $region23: #{kittycat_forward.7} parent=0 // pred_check_branch
    %27 = sbr.rel (0) target = $region25
  $region24: #{kittycat_forward.7} parent=0 // pred_region
    _
  $region25: #{kittycat_forward.7} parent=0 // pred_fallthru
    _
  // Predicated region
  $region26: #{kittycat_forward.7} parent=0 // pred_check
    _
  $region27: #{kittycat_forward.7} parent=0 // pred_check_branch
    %29 = sbr.rel (0) target = $region29
  $region28: #{kittycat_forward.7} parent=0 // pred_region
    _
  $region29: #{kittycat_forward.7} parent=0 // pred_fallthru
    _
  // Predicated region
  $region30: #{kittycat_forward.7} parent=0 // pred_check
    _
  $region31: #{kittycat_forward.7} parent=0 // pred_check_branch
    %31 = sbr.rel (0) target = $region33
  $region32: #{kittycat_forward.7} parent=0 // pred_region
    _
  $region33: #{kittycat_forward.7} parent=0 // pred_fallthru
    _
  // Predicated region
  $region34: #{kittycat_forward.7} parent=0 // pred_check
    _
  $region35: #{kittycat_forward.7} parent=0 // pred_check_branch
    %33 = sbr.rel (0) target = $region37
  $region36: #{kittycat_forward.7} parent=0 // pred_region
    _
  $region37: #{kittycat_forward.7} parent=0 // pred_fallthru
    _
  %v34 = vld [vmem:[%s0] sm:$0xf]
  %v35 = vld [vmem:[%s0 + $0x4] sm:$0xf]
  %v36 = vld [vmem:[%s1] sm:$0xf]
  %v37 = vld [vmem:[%s1 + $0x4] sm:$0xf]
  %v38 = vld [vmem:[%s1 + $0x8] sm:$0xf]
  %v39 = vld [vmem:[%s1 + $0xc] sm:$0xf]
  %v40 = vld [vmem:[%s1 + $0x10] sm:$0xf]
  %v41 = vld [vmem:[%s1 + $0x14] sm:$0xf]
  %v42 = vld [vmem:[%s1 + $0x18] sm:$0xf]
  %v43 = vld [vmem:[%s1 + $0x1c] sm:$0xf]
  %v44 = vld [vmem:[%s1 + $0x20] sm:$0xf]
  %v45 = vld [vmem:[%s1 + $0x24] sm:$0xf]
  %v46 = vld [vmem:[%s1 + $0x28] sm:$0xf]
  %v47 = vld [vmem:[%s1 + $0x2c] sm:$0xf]
  %49 = vset.pattern.permute.xlu0 0
  %50 = vperm.xlu0 %49, %v36
  %v51 = vpop.permute.xlu0 %50
  %v53 = vlaneseq
  %v54 = vshrl.u32 %v53, 7
  %v55 = vsub.s32 0, %v54
  %v56 = vrot.slane %v34, %v55
  %v57 = vlaneseq
  %v58 = vshrl.u32 %v57, 7
  %v59 = vsub.s32 0, %v58
  %v60 = vrot.slane %v35, %v59
  %v61 = vmul.f32 %v51, %v56
  %v62 = vmul.f32 %v51, %v60
  %v63 = vadd.f32 %v61, 0.0
  %v64 = vadd.f32 %v62, 0.0
  %66 = vset.pattern.permute.xlu0 0
  %67 = vperm.xlu0 %66, %v37
  %v68 = vpop.permute.xlu0 %67
  %v70 = vlaneseq
  %v71 = vshrl.u32 %v70, 7
  %v72 = vsub.s32 1, %v71
  %v73 = vrot.slane %v34, %v72
  %v74 = vlaneseq
  %v75 = vshrl.u32 %v74, 7
  %v76 = vsub.s32 1, %v75
  %v77 = vrot.slane %v35, %v76
  %v78 = vmul.f32 %v68, %v73
  %v79 = vmul.f32 %v68, %v77
  %v80 = vadd.f32 %v63, %v78
  %v81 = vadd.f32 %v64, %v79
  %83 = vset.pattern.permute.xlu0 0
  %84 = vperm.xlu0 %83, %v38
  %v85 = vpop.permute.xlu0 %84
  %v87 = vlaneseq
  %v88 = vshrl.u32 %v87, 7
  %v89 = vsub.s32 2, %v88
  %v90 = vrot.slane %v34, %v89
  %v91 = vlaneseq
  %v92 = vshrl.u32 %v91, 7
  %v93 = vsub.s32 2, %v92
  %v94 = vrot.slane %v35, %v93
  %v95 = vmul.f32 %v85, %v90
  %v96 = vmul.f32 %v85, %v94
  %v97 = vadd.f32 %v80, %v95
  %v98 = vadd.f32 %v81, %v96
  %100 = vset.pattern.permute.xlu0 0
  %101 = vperm.xlu0 %100, %v39
  %v102 = vpop.permute.xlu0 %101
  %v104 = vlaneseq
  %v105 = vshrl.u32 %v104, 7
  %v106 = vsub.s32 3, %v105
  %v107 = vrot.slane %v34, %v106
  %v108 = vlaneseq
  %v109 = vshrl.u32 %v108, 7
  %v110 = vsub.s32 3, %v109
  %v111 = vrot.slane %v35, %v110
  %v112 = vmul.f32 %v102, %v107
  %v113 = vmul.f32 %v102, %v111
  %v114 = vadd.f32 %v97, %v112
  %v115 = vadd.f32 %v98, %v113
  %117 = vset.pattern.permute.xlu0 0
  %118 = vperm.xlu0 %117, %v40
  %v119 = vpop.permute.xlu0 %118
  %v121 = vmul.f32 %v119, %v56
  %v122 = vmul.f32 %v119, %v60
  %125 = vrot.lane.b32.xlu0 %v121, 127
  %v126 = vpop.permute.xlu0 %125
  %127 = vrot.lane.b32.xlu0 %v122, 127
  %v128 = vpop.permute.xlu0 %127
  %v131 = vadd.f32 %v114, %v126
  %v132 = vadd.f32 %v115, %v128
  %134 = vset.pattern.permute.xlu0 0
  %135 = vperm.xlu0 %134, %v41
  %v136 = vpop.permute.xlu0 %135
  %v138 = vmul.f32 %v136, %v73
  %v139 = vmul.f32 %v136, %v77
  %142 = vrot.lane.b32.xlu0 %v138, 127
  %v143 = vpop.permute.xlu0 %142
  %144 = vrot.lane.b32.xlu0 %v139, 127
  %v145 = vpop.permute.xlu0 %144
  %v148 = vadd.f32 %v131, %v143
  %v149 = vadd.f32 %v132, %v145
  %151 = vset.pattern.permute.xlu0 0
  %152 = vperm.xlu0 %151, %v42
  %v153 = vpop.permute.xlu0 %152
  %v155 = vmul.f32 %v153, %v90
  %v156 = vmul.f32 %v153, %v94
  %159 = vrot.lane.b32.xlu0 %v155, 127
  %v160 = vpop.permute.xlu0 %159
  %161 = vrot.lane.b32.xlu0 %v156, 127
  %v162 = vpop.permute.xlu0 %161
  %v165 = vadd.f32 %v148, %v160
  %v166 = vadd.f32 %v149, %v162
  %168 = vset.pattern.permute.xlu0 0
  %169 = vperm.xlu0 %168, %v43
  %v170 = vpop.permute.xlu0 %169
  %v172 = vmul.f32 %v170, %v107
  %v173 = vmul.f32 %v170, %v111
  %176 = vrot.lane.b32.xlu0 %v172, 127
  %v177 = vpop.permute.xlu0 %176
  %178 = vrot.lane.b32.xlu0 %v173, 127
  %v179 = vpop.permute.xlu0 %178
  %v182 = vadd.f32 %v165, %v177
  %v183 = vadd.f32 %v166, %v179
  %185 = vset.pattern.permute.xlu0 0
  %186 = vperm.xlu0 %185, %v44
  %v187 = vpop.permute.xlu0 %186
  %v189 = vmul.f32 %v187, %v56
  %v190 = vmul.f32 %v187, %v60
  %193 = vrot.lane.b32.xlu0 %v189, 126
  %v194 = vpop.permute.xlu0 %193
  %195 = vrot.lane.b32.xlu0 %v190, 126
  %v196 = vpop.permute.xlu0 %195
  %v199 = vadd.f32 %v182, %v194
  %v200 = vadd.f32 %v183, %v196
  %202 = vset.pattern.permute.xlu0 0
  %203 = vperm.xlu0 %202, %v45
  %v204 = vpop.permute.xlu0 %203
  %v206 = vmul.f32 %v204, %v73
  %v207 = vmul.f32 %v204, %v77
  %210 = vrot.lane.b32.xlu0 %v206, 126
  %v211 = vpop.permute.xlu0 %210
  %212 = vrot.lane.b32.xlu0 %v207, 126
  %v213 = vpop.permute.xlu0 %212
  %v216 = vadd.f32 %v199, %v211
  %v217 = vadd.f32 %v200, %v213
  %219 = vset.pattern.permute.xlu0 0
  %220 = vperm.xlu0 %219, %v46
  %v221 = vpop.permute.xlu0 %220
  %v223 = vmul.f32 %v221, %v90
  %v224 = vmul.f32 %v221, %v94
  %227 = vrot.lane.b32.xlu0 %v223, 126
  %v228 = vpop.permute.xlu0 %227
  %229 = vrot.lane.b32.xlu0 %v224, 126
  %v230 = vpop.permute.xlu0 %229
  %v233 = vadd.f32 %v216, %v228
  %v234 = vadd.f32 %v217, %v230
  %236 = vset.pattern.permute.xlu0 0
  %237 = vperm.xlu0 %236, %v47
  %v238 = vpop.permute.xlu0 %237
  %v240 = vmul.f32 %v238, %v107
  %v241 = vmul.f32 %v238, %v111
  %244 = vrot.lane.b32.xlu0 %v240, 126
  %v245 = vpop.permute.xlu0 %244
  %246 = vrot.lane.b32.xlu0 %v241, 126
  %v247 = vpop.permute.xlu0 %246
  %v250 = vadd.f32 %v233, %v245
  %v251 = vadd.f32 %v234, %v247
  %v252 = vld [vmem:[%s2] sm:$0xf]
  %254 = vset.pattern.permute.xlu0 0
  %255 = vperm.xlu0 %254, %v252
  %v256 = vpop.permute.xlu0 %255
  %v258 = vadd.f32 %v250, %v256
  %v259 = vadd.f32 %v251, %v256
  %262 = vrot.lane.b32.xlu0 %v258, 125
  %v263 = vpop.permute.xlu0 %262
  %264 = vrot.lane.b32.xlu0 %v259, 125
  %v265 = vpop.permute.xlu0 %264
  %vm268 = vcmask 60416
  %v269 = vsel %vm268, %v263, 0.0
  %v270 = vsel %vm268, %v265, 0.0
  %v271 = vadd.f32 %v269, %v270
  %272 = vadd.xlane.f32.xlu0 %v271
  %v273 = vpop.xlane.xlu0 %272
  %v274 = vrcp.pop 16.0
  %v275 = vmul.f32 %v273, %v274
  %v276 = vsub.f32 %v258, %v275
  %v277 = vsub.f32 %v259, %v275
  %v278 = vmul.f32 %v276, %v276
  %v279 = vmul.f32 %v277, %v277
  %282 = vrot.lane.b32.xlu0 %v278, 125
  %v283 = vpop.permute.xlu0 %282
  %284 = vrot.lane.b32.xlu0 %v279, 125
  %v285 = vpop.permute.xlu0 %284
  %v288 = vsel %vm268, %v283, 0.0
  %v289 = vsel %vm268, %v285, 0.0
  %v290 = vadd.f32 %v288, %v289
  %291 = vadd.xlane.f32.xlu0 %v290
  %v292 = vpop.xlane.xlu0 %291
  %v293 = vmul.f32 %v292, %v274
  %v294 = vadd.f32 %v293, 1e-05
  %v295 = vrsqrt.pop %v294
  %v296 = vmul.f32 %v276, %v295
  %v297 = vmul.f32 %v277, %v295
  %v298 = vld [vmem:[%s3] sm:$0xf]
  %300 = vset.pattern.permute.xlu0 0
  %301 = vperm.xlu0 %300, %v298
  %v302 = vpop.permute.xlu0 %301
  %v304 = vmul.f32 %v296, %v302
  %v305 = vmul.f32 %v297, %v302
  %v306 = vld [vmem:[%s4] sm:$0xf]
  %308 = vset.pattern.permute.xlu0 0
  %309 = vperm.xlu0 %308, %v306
  %v310 = vpop.permute.xlu0 %309
  %v312 = vadd.f32 %v304, %v310
  %v313 = vadd.f32 %v305, %v310
  %vm314 = vcmask 85016
  %v315 = vsel %vm314, %v312, -inf
  %316 = vmax.xlane.f32.xlu0 %v315
  %v317 = vpop.xlane.xlu0 %316
  %v318 = vsel %vm314, %v313, -inf
  %319 = vmax.xlane.f32.xlu0 %v318
  %v320 = vpop.xlane.xlu0 %319
  %v321 = vsub.f32 %v312, %v317
  %v322 = vsub.f32 %v313, %v320
  %v323 = vmul.f32 %v321, 1.442695
  %v324 = vpow.pop %v323
  %v325 = vmul.f32 %v322, 1.442695
  %v326 = vpow.pop %v325
  %329 = vrot.lane.b32.xlu0 %v324, 125
  %v330 = vpop.permute.xlu0 %329
  %331 = vrot.lane.b32.xlu0 %v326, 125
  %v332 = vpop.permute.xlu0 %331
  %v335 = vsel %vm268, %v330, 0.0
  %336 = vadd.xlane.f32.xlu0 %v335
  %v337 = vpop.xlane.xlu0 %336
  %v338 = vsel %vm268, %v332, 0.0
  %339 = vadd.xlane.f32.xlu0 %v338
  %v340 = vpop.xlane.xlu0 %339
  %v341 = vrcp.pop %v337
  %v342 = vmul.f32 %v324, %v341
  %v343 = vrcp.pop %v340
  %v344 = vmul.f32 %v326, %v343
  %347 = vrot.lane.b32.xlu0 %v342, 125
  %v348 = vpop.permute.xlu0 %347
  %349 = vrot.lane.b32.xlu0 %v344, 125
  %v350 = vpop.permute.xlu0 %349
  %353 = vst.msk [vmem:[%s9] sm:$0xf] %vm268, %v348
  %354 = vst.msk [vmem:[%s9 + $0x4] sm:$0xf] %vm268, %v350
  %v355 = vld [vmem:[%s5] sm:$0xf]
  %v356 = vld [vmem:[%s5 + $0x4] sm:$0xf]
  %v357 = vld [vmem:[%s5 + $0x8] sm:$0xf]
  %v358 = vld [vmem:[%s5 + $0xc] sm:$0xf]
  %v359 = vld [vmem:[%s5 + $0x10] sm:$0xf]
  %v360 = vld [vmem:[%s5 + $0x14] sm:$0xf]
  %v361 = vld [vmem:[%s5 + $0x18] sm:$0xf]
  %v362 = vld [vmem:[%s5 + $0x1c] sm:$0xf]
  %v363 = vld [vmem:[%s5 + $0x20] sm:$0xf]
  %v364 = vld [vmem:[%s5 + $0x24] sm:$0xf]
  %v365 = vld [vmem:[%s5 + $0x28] sm:$0xf]
  %v366 = vld [vmem:[%s5 + $0x2c] sm:$0xf]
  %v367 = vld [vmem:[%s5 + $0x30] sm:$0xf]
  %v368 = vld [vmem:[%s5 + $0x34] sm:$0xf]
  %v369 = vld [vmem:[%s5 + $0x38] sm:$0xf]
  %v370 = vld [vmem:[%s5 + $0x3c] sm:$0xf]
  %v371 = vld [vmem:[%s5 + $0x40] sm:$0xf]
  %v372 = vld [vmem:[%s5 + $0x44] sm:$0xf]
  %v373 = vld [vmem:[%s5 + $0x48] sm:$0xf]
  %v374 = vld [vmem:[%s5 + $0x4c] sm:$0xf]
  %v375 = vld [vmem:[%s5 + $0x50] sm:$0xf]
  %v376 = vld [vmem:[%s5 + $0x54] sm:$0xf]
  %v377 = vld [vmem:[%s5 + $0x58] sm:$0xf]
  %v378 = vld [vmem:[%s5 + $0x5c] sm:$0xf]
  %v379 = vld [vmem:[%s5 + $0x60] sm:$0xf]
  %v380 = vld [vmem:[%s5 + $0x64] sm:$0xf]
  %v381 = vld [vmem:[%s5 + $0x68] sm:$0xf]
  %v382 = vld [vmem:[%s5 + $0x6c] sm:$0xf]
  %v383 = vld [vmem:[%s5 + $0x70] sm:$0xf]
  %v384 = vld [vmem:[%s5 + $0x74] sm:$0xf]
  %v385 = vld [vmem:[%s5 + $0x78] sm:$0xf]
  %v386 = vld [vmem:[%s5 + $0x7c] sm:$0xf]
  %v387 = vld [vmem:[%s5 + $0x80] sm:$0xf]
  %v388 = vld [vmem:[%s5 + $0x84] sm:$0xf]
  %v389 = vld [vmem:[%s5 + $0x88] sm:$0xf]
  %v390 = vld [vmem:[%s5 + $0x8c] sm:$0xf]
  %392 = vset.pattern.permute.xlu0 0
  %393 = vperm.xlu0 %392, %v355
  %v394 = vpop.permute.xlu0 %393
  %v396 = vmul.f32 %v394, %v56
  %v397 = vmul.f32 %v394, %v60
  %v398 = vadd.f32 %v396, 0.0
  %v399 = vadd.f32 %v397, 0.0
  %401 = vset.pattern.permute.xlu0 0
  %402 = vperm.xlu0 %401, %v356
  %v403 = vpop.permute.xlu0 %402
  %v405 = vmul.f32 %v403, %v73
  %v406 = vmul.f32 %v403, %v77
  %v407 = vadd.f32 %v398, %v405
  %v408 = vadd.f32 %v399, %v406
  %410 = vset.pattern.permute.xlu0 0
  %411 = vperm.xlu0 %410, %v357
  %v412 = vpop.permute.xlu0 %411
  %v414 = vmul.f32 %v412, %v90
  %v415 = vmul.f32 %v412, %v94
  %v416 = vadd.f32 %v407, %v414
  %v417 = vadd.f32 %v408, %v415
  %419 = vset.pattern.permute.xlu0 0
  %420 = vperm.xlu0 %419, %v358
  %v421 = vpop.permute.xlu0 %420
  %v423 = vmul.f32 %v421, %v107
  %v424 = vmul.f32 %v421, %v111
  %v425 = vadd.f32 %v416, %v423
  %v426 = vadd.f32 %v417, %v424
  %428 = vset.pattern.permute.xlu0 0
  %429 = vperm.xlu0 %428, %v359
  %v430 = vpop.permute.xlu0 %429
  %v432 = vmul.f32 %v430, %v56
  %v433 = vmul.f32 %v430, %v60
  %436 = vrot.lane.b32.xlu0 %v432, 127
  %v437 = vpop.permute.xlu0 %436
  %438 = vrot.lane.b32.xlu0 %v433, 127
  %v439 = vpop.permute.xlu0 %438
  %v442 = vadd.f32 %v425, %v437
  %v443 = vadd.f32 %v426, %v439
  %445 = vset.pattern.permute.xlu0 0
  %446 = vperm.xlu0 %445, %v360
  %v447 = vpop.permute.xlu0 %446
  %v449 = vmul.f32 %v447, %v73
  %v450 = vmul.f32 %v447, %v77
  %453 = vrot.lane.b32.xlu0 %v449, 127
  %v454 = vpop.permute.xlu0 %453
  %455 = vrot.lane.b32.xlu0 %v450, 127
  %v456 = vpop.permute.xlu0 %455
  %v459 = vadd.f32 %v442, %v454
  %v460 = vadd.f32 %v443, %v456
  %462 = vset.pattern.permute.xlu0 0
  %463 = vperm.xlu0 %462, %v361
  %v464 = vpop.permute.xlu0 %463
  %v466 = vmul.f32 %v464, %v90
  %v467 = vmul.f32 %v464, %v94
  %470 = vrot.lane.b32.xlu0 %v466, 127
  %v471 = vpop.permute.xlu0 %470
  %472 = vrot.lane.b32.xlu0 %v467, 127
  %v473 = vpop.permute.xlu0 %472
  %v476 = vadd.f32 %v459, %v471
  %v477 = vadd.f32 %v460, %v473
  %479 = vset.pattern.permute.xlu0 0
  %480 = vperm.xlu0 %479, %v362
  %v481 = vpop.permute.xlu0 %480
  %v483 = vmul.f32 %v481, %v107
  %v484 = vmul.f32 %v481, %v111
  %487 = vrot.lane.b32.xlu0 %v483, 127
  %v488 = vpop.permute.xlu0 %487
  %489 = vrot.lane.b32.xlu0 %v484, 127
  %v490 = vpop.permute.xlu0 %489
  %v493 = vadd.f32 %v476, %v488
  %v494 = vadd.f32 %v477, %v490
  %496 = vset.pattern.permute.xlu0 0
  %497 = vperm.xlu0 %496, %v363
  %v498 = vpop.permute.xlu0 %497
  %v500 = vmul.f32 %v498, %v56
  %v501 = vmul.f32 %v498, %v60
  %504 = vrot.lane.b32.xlu0 %v500, 126
  %v505 = vpop.permute.xlu0 %504
  %506 = vrot.lane.b32.xlu0 %v501, 126
  %v507 = vpop.permute.xlu0 %506
  %v510 = vadd.f32 %v493, %v505
  %v511 = vadd.f32 %v494, %v507
  %513 = vset.pattern.permute.xlu0 0
  %514 = vperm.xlu0 %513, %v364
  %v515 = vpop.permute.xlu0 %514
  %v517 = vmul.f32 %v515, %v73
  %v518 = vmul.f32 %v515, %v77
  %521 = vrot.lane.b32.xlu0 %v517, 126
  %v522 = vpop.permute.xlu0 %521
  %523 = vrot.lane.b32.xlu0 %v518, 126
  %v524 = vpop.permute.xlu0 %523
  %v527 = vadd.f32 %v510, %v522
  %v528 = vadd.f32 %v511, %v524
  %530 = vset.pattern.permute.xlu0 0
  %531 = vperm.xlu0 %530, %v365
  %v532 = vpop.permute.xlu0 %531
  %v534 = vmul.f32 %v532, %v90
  %v535 = vmul.f32 %v532, %v94
  %538 = vrot.lane.b32.xlu0 %v534, 126
  %v539 = vpop.permute.xlu0 %538
  %540 = vrot.lane.b32.xlu0 %v535, 126
  %v541 = vpop.permute.xlu0 %540
  %v544 = vadd.f32 %v527, %v539
  %v545 = vadd.f32 %v528, %v541
  %547 = vset.pattern.permute.xlu0 0
  %548 = vperm.xlu0 %547, %v366
  %v549 = vpop.permute.xlu0 %548
  %v551 = vmul.f32 %v549, %v107
  %v552 = vmul.f32 %v549, %v111
  %555 = vrot.lane.b32.xlu0 %v551, 126
  %v556 = vpop.permute.xlu0 %555
  %557 = vrot.lane.b32.xlu0 %v552, 126
  %v558 = vpop.permute.xlu0 %557
  %v561 = vadd.f32 %v544, %v556
  %v562 = vadd.f32 %v545, %v558
  %564 = vset.pattern.permute.xlu0 0
  %565 = vperm.xlu0 %564, %v367
  %v566 = vpop.permute.xlu0 %565
  %v568 = vmul.f32 %v566, %v56
  %v569 = vmul.f32 %v566, %v60
  %572 = vrot.lane.b32.xlu0 %v568, 125
  %v573 = vpop.permute.xlu0 %572
  %574 = vrot.lane.b32.xlu0 %v569, 125
  %v575 = vpop.permute.xlu0 %574
  %v578 = vadd.f32 %v561, %v573
  %v579 = vadd.f32 %v562, %v575
  %581 = vset.pattern.permute.xlu0 0
  %582 = vperm.xlu0 %581, %v368
  %v583 = vpop.permute.xlu0 %582
  %v585 = vmul.f32 %v583, %v73
  %v586 = vmul.f32 %v583, %v77
  %589 = vrot.lane.b32.xlu0 %v585, 125
  %v590 = vpop.permute.xlu0 %589
  %591 = vrot.lane.b32.xlu0 %v586, 125
  %v592 = vpop.permute.xlu0 %591
  %v595 = vadd.f32 %v578, %v590
  %v596 = vadd.f32 %v579, %v592
  %598 = vset.pattern.permute.xlu0 0
  %599 = vperm.xlu0 %598, %v369
  %v600 = vpop.permute.xlu0 %599
  %v602 = vmul.f32 %v600, %v90
  %v603 = vmul.f32 %v600, %v94
  %606 = vrot.lane.b32.xlu0 %v602, 125
  %v607 = vpop.permute.xlu0 %606
  %608 = vrot.lane.b32.xlu0 %v603, 125
  %v609 = vpop.permute.xlu0 %608
  %v612 = vadd.f32 %v595, %v607
  %v613 = vadd.f32 %v596, %v609
  %615 = vset.pattern.permute.xlu0 0
  %616 = vperm.xlu0 %615, %v370
  %v617 = vpop.permute.xlu0 %616
  %v619 = vmul.f32 %v617, %v107
  %v620 = vmul.f32 %v617, %v111
  %623 = vrot.lane.b32.xlu0 %v619, 125
  %v624 = vpop.permute.xlu0 %623
  %625 = vrot.lane.b32.xlu0 %v620, 125
  %v626 = vpop.permute.xlu0 %625
  %v629 = vadd.f32 %v612, %v624
  %v630 = vadd.f32 %v613, %v626
  %632 = vset.pattern.permute.xlu0 0
  %633 = vperm.xlu0 %632, %v371
  %v634 = vpop.permute.xlu0 %633
  %v636 = vmul.f32 %v634, %v56
  %v637 = vmul.f32 %v634, %v60
  %640 = vrot.lane.b32.xlu0 %v636, 124
  %v641 = vpop.permute.xlu0 %640
  %642 = vrot.lane.b32.xlu0 %v637, 124
  %v643 = vpop.permute.xlu0 %642
  %v646 = vadd.f32 %v629, %v641
  %v647 = vadd.f32 %v630, %v643
  %649 = vset.pattern.permute.xlu0 0
  %650 = vperm.xlu0 %649, %v372
  %v651 = vpop.permute.xlu0 %650
  %v653 = vmul.f32 %v651, %v73
  %v654 = vmul.f32 %v651, %v77
  %657 = vrot.lane.b32.xlu0 %v653, 124
  %v658 = vpop.permute.xlu0 %657
  %659 = vrot.lane.b32.xlu0 %v654, 124
  %v660 = vpop.permute.xlu0 %659
  %v663 = vadd.f32 %v646, %v658
  %v664 = vadd.f32 %v647, %v660
  %666 = vset.pattern.permute.xlu0 0
  %667 = vperm.xlu0 %666, %v373
  %v668 = vpop.permute.xlu0 %667
  %v670 = vmul.f32 %v668, %v90
  %v671 = vmul.f32 %v668, %v94
  %674 = vrot.lane.b32.xlu0 %v670, 124
  %v675 = vpop.permute.xlu0 %674
  %676 = vrot.lane.b32.xlu0 %v671, 124
  %v677 = vpop.permute.xlu0 %676
  %v680 = vadd.f32 %v663, %v675
  %v681 = vadd.f32 %v664, %v677
  %683 = vset.pattern.permute.xlu0 0
  %684 = vperm.xlu0 %683, %v374
  %v685 = vpop.permute.xlu0 %684
  %v687 = vmul.f32 %v685, %v107
  %v688 = vmul.f32 %v685, %v111
  %691 = vrot.lane.b32.xlu0 %v687, 124
  %v692 = vpop.permute.xlu0 %691
  %693 = vrot.lane.b32.xlu0 %v688, 124
  %v694 = vpop.permute.xlu0 %693
  %v697 = vadd.f32 %v680, %v692
  %v698 = vadd.f32 %v681, %v694
  %700 = vset.pattern.permute.xlu0 0
  %701 = vperm.xlu0 %700, %v375
  %v702 = vpop.permute.xlu0 %701
  %v704 = vmul.f32 %v702, %v56
  %v705 = vmul.f32 %v702, %v60
  %708 = vrot.lane.b32.xlu0 %v704, 123
  %v709 = vpop.permute.xlu0 %708
  %710 = vrot.lane.b32.xlu0 %v705, 123
  %v711 = vpop.permute.xlu0 %710
  %v714 = vadd.f32 %v697, %v709
  %v715 = vadd.f32 %v698, %v711
  %717 = vset.pattern.permute.xlu0 0
  %718 = vperm.xlu0 %717, %v376
  %v719 = vpop.permute.xlu0 %718
  %v721 = vmul.f32 %v719, %v73
  %v722 = vmul.f32 %v719, %v77
  %725 = vrot.lane.b32.xlu0 %v721, 123
  %v726 = vpop.permute.xlu0 %725
  %727 = vrot.lane.b32.xlu0 %v722, 123
  %v728 = vpop.permute.xlu0 %727
  %v731 = vadd.f32 %v714, %v726
  %v732 = vadd.f32 %v715, %v728
  %734 = vset.pattern.permute.xlu0 0
  %735 = vperm.xlu0 %734, %v377
  %v736 = vpop.permute.xlu0 %735
  %v738 = vmul.f32 %v736, %v90
  %v739 = vmul.f32 %v736, %v94
  %742 = vrot.lane.b32.xlu0 %v738, 123
  %v743 = vpop.permute.xlu0 %742
  %744 = vrot.lane.b32.xlu0 %v739, 123
  %v745 = vpop.permute.xlu0 %744
  %v748 = vadd.f32 %v731, %v743
  %v749 = vadd.f32 %v732, %v745
  %751 = vset.pattern.permute.xlu0 0
  %752 = vperm.xlu0 %751, %v378
  %v753 = vpop.permute.xlu0 %752
  %v755 = vmul.f32 %v753, %v107
  %v756 = vmul.f32 %v753, %v111
  %759 = vrot.lane.b32.xlu0 %v755, 123
  %v760 = vpop.permute.xlu0 %759
  %761 = vrot.lane.b32.xlu0 %v756, 123
  %v762 = vpop.permute.xlu0 %761
  %v765 = vadd.f32 %v748, %v760
  %v766 = vadd.f32 %v749, %v762
  %768 = vset.pattern.permute.xlu0 0
  %769 = vperm.xlu0 %768, %v379
  %v770 = vpop.permute.xlu0 %769
  %v772 = vmul.f32 %v770, %v56
  %v773 = vmul.f32 %v770, %v60
  %776 = vrot.lane.b32.xlu0 %v772, 122
  %v777 = vpop.permute.xlu0 %776
  %778 = vrot.lane.b32.xlu0 %v773, 122
  %v779 = vpop.permute.xlu0 %778
  %v782 = vadd.f32 %v765, %v777
  %v783 = vadd.f32 %v766, %v779
  %785 = vset.pattern.permute.xlu0 0
  %786 = vperm.xlu0 %785, %v380
  %v787 = vpop.permute.xlu0 %786
  %v789 = vmul.f32 %v787, %v73
  %v790 = vmul.f32 %v787, %v77
  %793 = vrot.lane.b32.xlu0 %v789, 122
  %v794 = vpop.permute.xlu0 %793
  %795 = vrot.lane.b32.xlu0 %v790, 122
  %v796 = vpop.permute.xlu0 %795
  %v799 = vadd.f32 %v782, %v794
  %v800 = vadd.f32 %v783, %v796
  %802 = vset.pattern.permute.xlu0 0
  %803 = vperm.xlu0 %802, %v381
  %v804 = vpop.permute.xlu0 %803
  %v806 = vmul.f32 %v804, %v90
  %v807 = vmul.f32 %v804, %v94
  %810 = vrot.lane.b32.xlu0 %v806, 122
  %v811 = vpop.permute.xlu0 %810
  %812 = vrot.lane.b32.xlu0 %v807, 122
  %v813 = vpop.permute.xlu0 %812
  %v816 = vadd.f32 %v799, %v811
  %v817 = vadd.f32 %v800, %v813
  %819 = vset.pattern.permute.xlu0 0
  %820 = vperm.xlu0 %819, %v382
  %v821 = vpop.permute.xlu0 %820
  %v823 = vmul.f32 %v821, %v107
  %v824 = vmul.f32 %v821, %v111
  %827 = vrot.lane.b32.xlu0 %v823, 122
  %v828 = vpop.permute.xlu0 %827
  %829 = vrot.lane.b32.xlu0 %v824, 122
  %v830 = vpop.permute.xlu0 %829
  %v833 = vadd.f32 %v816, %v828
  %v834 = vadd.f32 %v817, %v830
  %836 = vset.pattern.permute.xlu0 0
  %837 = vperm.xlu0 %836, %v383
  %v838 = vpop.permute.xlu0 %837
  %v840 = vmul.f32 %v838, %v56
  %v841 = vmul.f32 %v838, %v60
  %844 = vrot.lane.b32.xlu0 %v840, 121
  %v845 = vpop.permute.xlu0 %844
  %846 = vrot.lane.b32.xlu0 %v841, 121
  %v847 = vpop.permute.xlu0 %846
  %v850 = vadd.f32 %v833, %v845
  %v851 = vadd.f32 %v834, %v847
  %853 = vset.pattern.permute.xlu0 0
  %854 = vperm.xlu0 %853, %v384
  %v855 = vpop.permute.xlu0 %854
  %v857 = vmul.f32 %v855, %v73
  %v858 = vmul.f32 %v855, %v77
  %861 = vrot.lane.b32.xlu0 %v857, 121
  %v862 = vpop.permute.xlu0 %861
  %863 = vrot.lane.b32.xlu0 %v858, 121
  %v864 = vpop.permute.xlu0 %863
  %v867 = vadd.f32 %v850, %v862
  %v868 = vadd.f32 %v851, %v864
  %870 = vset.pattern.permute.xlu0 0
  %871 = vperm.xlu0 %870, %v385
  %v872 = vpop.permute.xlu0 %871
  %v874 = vmul.f32 %v872, %v90
  %v875 = vmul.f32 %v872, %v94
  %878 = vrot.lane.b32.xlu0 %v874, 121
  %v879 = vpop.permute.xlu0 %878
  %880 = vrot.lane.b32.xlu0 %v875, 121
  %v881 = vpop.permute.xlu0 %880
  %v884 = vadd.f32 %v867, %v879
  %v885 = vadd.f32 %v868, %v881
  %887 = vset.pattern.permute.xlu0 0
  %888 = vperm.xlu0 %887, %v386
  %v889 = vpop.permute.xlu0 %888
  %v891 = vmul.f32 %v889, %v107
  %v892 = vmul.f32 %v889, %v111
  %895 = vrot.lane.b32.xlu0 %v891, 121
  %v896 = vpop.permute.xlu0 %895
  %897 = vrot.lane.b32.xlu0 %v892, 121
  %v898 = vpop.permute.xlu0 %897
  %v901 = vadd.f32 %v884, %v896
  %v902 = vadd.f32 %v885, %v898
  %904 = vset.pattern.permute.xlu0 0
  %905 = vperm.xlu0 %904, %v387
  %v906 = vpop.permute.xlu0 %905
  %v908 = vmul.f32 %v906, %v56
  %v909 = vmul.f32 %v906, %v60
  %912 = vrot.lane.b32.xlu0 %v908, 120
  %v913 = vpop.permute.xlu0 %912
  %914 = vrot.lane.b32.xlu0 %v909, 120
  %v915 = vpop.permute.xlu0 %914
  %v918 = vadd.f32 %v901, %v913
  %v919 = vadd.f32 %v902, %v915
  %921 = vset.pattern.permute.xlu0 0
  %922 = vperm.xlu0 %921, %v388
  %v923 = vpop.permute.xlu0 %922
  %v925 = vmul.f32 %v923, %v73
  %v926 = vmul.f32 %v923, %v77
  %929 = vrot.lane.b32.xlu0 %v925, 120
  %v930 = vpop.permute.xlu0 %929
  %931 = vrot.lane.b32.xlu0 %v926, 120
  %v932 = vpop.permute.xlu0 %931
  %v935 = vadd.f32 %v918, %v930
  %v936 = vadd.f32 %v919, %v932
  %938 = vset.pattern.permute.xlu0 0
  %939 = vperm.xlu0 %938, %v389
  %v940 = vpop.permute.xlu0 %939
  %v942 = vmul.f32 %v940, %v90
  %v943 = vmul.f32 %v940, %v94
  %946 = vrot.lane.b32.xlu0 %v942, 120
  %v947 = vpop.permute.xlu0 %946
  %948 = vrot.lane.b32.xlu0 %v943, 120
  %v949 = vpop.permute.xlu0 %948
  %v952 = vadd.f32 %v935, %v947
  %v953 = vadd.f32 %v936, %v949
  %955 = vset.pattern.permute.xlu0 0
  %956 = vperm.xlu0 %955, %v390
  %v957 = vpop.permute.xlu0 %956
  %v959 = vmul.f32 %v957, %v107
  %v960 = vmul.f32 %v957, %v111
  %963 = vrot.lane.b32.xlu0 %v959, 120
  %v964 = vpop.permute.xlu0 %963
  %965 = vrot.lane.b32.xlu0 %v960, 120
  %v966 = vpop.permute.xlu0 %965
  %v969 = vadd.f32 %v952, %v964
  %v970 = vadd.f32 %v953, %v966
  %v971 = vld [vmem:[%s6] sm:$0xf]
  %973 = vset.pattern.permute.xlu0 0
  %974 = vperm.xlu0 %973, %v971
  %v975 = vpop.permute.xlu0 %974
  %v977 = vadd.f32 %v969, %v975
  %v978 = vadd.f32 %v970, %v975
  %v979 = vsel %vm268, %v977, 0.0
  %v980 = vsel %vm268, %v978, 0.0
  %v981 = vadd.f32 %v979, %v980
  %982 = vadd.xlane.f32.xlu0 %v981
  %v983 = vpop.xlane.xlu0 %982
  %v984 = vmul.f32 %v983, %v274
  %v985 = vsub.f32 %v977, %v984
  %v986 = vsub.f32 %v978, %v984
  %v987 = vmul.f32 %v985, %v985
  %v988 = vmul.f32 %v986, %v986
  %v989 = vsel %vm268, %v987, 0.0
  %v990 = vsel %vm268, %v988, 0.0
  %v991 = vadd.f32 %v989, %v990
  %992 = vadd.xlane.f32.xlu0 %v991
  %v993 = vpop.xlane.xlu0 %992
  %v994 = vmul.f32 %v993, %v274
  %v995 = vadd.f32 %v994, 1e-05
  %v996 = vrsqrt.pop %v995
  %v997 = vmul.f32 %v985, %v996
  %v998 = vmul.f32 %v986, %v996
  %v999 = vld [vmem:[%s7] sm:$0xf]
  %1001 = vset.pattern.permute.xlu0 0
  %1002 = vperm.xlu0 %1001, %v999
  %v1003 = vpop.permute.xlu0 %1002
  %v1005 = vmul.f32 %v997, %v1003
  %v1006 = vmul.f32 %v998, %v1003
  %v1007 = vld [vmem:[%s8] sm:$0xf]
  %1009 = vset.pattern.permute.xlu0 0
  %1010 = vperm.xlu0 %1009, %v1007
  %v1011 = vpop.permute.xlu0 %1010
  %v1013 = vadd.f32 %v1005, %v1011
  %v1014 = vadd.f32 %v1006, %v1011
  %v1015 = vsel %vm268, %v1013, -inf
  %1016 = vmax.xlane.f32.xlu0 %v1015
  %v1017 = vpop.xlane.xlu0 %1016
  %v1018 = vsel %vm268, %v1014, -inf
  %1019 = vmax.xlane.f32.xlu0 %v1018
  %v1020 = vpop.xlane.xlu0 %1019
  %v1021 = vsub.f32 %v1013, %v1017
  %v1022 = vsub.f32 %v1014, %v1020
  %v1023 = vmul.f32 %v1021, 1.442695
  %v1024 = vpow.pop %v1023
  %v1025 = vmul.f32 %v1022, 1.442695
  %v1026 = vpow.pop %v1025
  %v1027 = vsel %vm268, %v1024, 0.0
  %1028 = vadd.xlane.f32.xlu0 %v1027
  %v1029 = vpop.xlane.xlu0 %1028
  %v1030 = vsel %vm268, %v1026, 0.0
  %1031 = vadd.xlane.f32.xlu0 %v1030
  %v1032 = vpop.xlane.xlu0 %1031
  %v1033 = vrcp.pop %v1029
  %v1034 = vmul.f32 %v1024, %v1033
  %v1035 = vrcp.pop %v1032
  %v1036 = vmul.f32 %v1026, %v1035
  %1037 = vst.msk [vmem:[%s10] sm:$0xf] %vm268, %v1034
  %1038 = vst.msk [vmem:[%s10 + $0x4] sm:$0xf] %vm268, %v1036
  // Predicated region
  $region38: #{kittycat_forward.7} parent=0 // pred_check
    _
  $region39: #{kittycat_forward.7} parent=0 // pred_check_branch
    %1040 = sbr.rel (0) target = $region41
  $region40: #{kittycat_forward.7} parent=0 // pred_region
    _
  $region41: #{kittycat_forward.7} parent=0 // pred_fallthru
    _
  // Predicated region
  $region42: #{kittycat_forward.7} parent=0 // pred_check
    _
  $region43: #{kittycat_forward.7} parent=0 // pred_check_branch
    %1042 = sbr.rel (0) target = $region45
  $region44: #{kittycat_forward.7} parent=0 // pred_region
    _
  $region45: #{kittycat_forward.7} parent=0 // pred_fallthru
    _
  // Predicated region
  $region46: #{kittycat_forward.7} parent=0 // pred_check
    _
  $region47: #{kittycat_forward.7} parent=0 // pred_check_branch
    %1044 = sbr.rel (0) target = $region49
  $region48: #{kittycat_forward.7} parent=0 // pred_region
    _
  $region49: #{kittycat_forward.7} parent=0 // pred_fallthru
    _
  // Predicated region
  $region50: #{kittycat_forward.7} parent=0 // pred_check
    _
  $region51: #{kittycat_forward.7} parent=0 // pred_check_branch
    %1046 = sbr.rel (0) target = $region53
  $region52: #{kittycat_forward.7} parent=0 // pred_region
    _
  $region53: #{kittycat_forward.7} parent=0 // pred_fallthru
    _

// kernel: kittycat_forward.9
$region0: #{kittycat_forward.9}
  #allocation0 [shape = 'u32[]', space=smem, size = 0x4, offset = 0x4, fixed_abs, tag = 'smem constant byte address 0x4 - core index']
  #allocation1 [shape = 'u32[144,128]{1,0:T(1,128)}', space=vmem, size = 0x12000, scoped, tag = 'internal scratch']
  #allocation2 [shape = 'f32[1]{0:T(128)S(6)}', space=smem, size = 0x200, scoped, tag = 'scoped memory for kittycat_forward.9']
  %s0 = inlined_call_operand.<no memory space> [shape: f32[1], index: 0, kind: input, shape index: {}]
  %s1 = inlined_call_operand.vmem [shape: f32[8,8], index: 1, kind: input, shape index: {}]
  %s2 = inlined_call_operand.vmem [shape: f32[8,16], index: 2, kind: input, shape index: {}]
  %s3 = inlined_call_operand.vmem [shape: f32[8,16,32], index: 3, kind: input, shape index: {}]
  %s4 = inlined_call_operand.hbm [shape: f32[8,8,32], index: 4, kind: output, shape index: {0}]
  %s5 = inlined_call_operand.hbm [shape: f32[8,8,16], index: 5, kind: output, shape index: {1}]
  %6 = xla_tuple %s4, %s5
  %s7 = sld [smem:[#allocation0]]
  $region34: #{kittycat_forward.9} parent=0
    _
  %s9 = ssub.s32 1, %s7
  %s10 = scalar_select 0, %s9, %s7
  %11 = sst [smem:[#allocation2]] %s0
  $region1: #{kittycat_forward.9} parent=0
    #allocation3 [shape = 'u8[32768]{0}', space=vmem, size = 0x8000, scoped, tag = 'output window, operand 0, single buffered']
    #allocation4 [shape = 's32[1]{0}', space=sflag, size = 0x4, scoped, tag = 'scoped memory for kittycat_forward.9']
    #allocation5 [shape = 'u8[32768]{0}', space=vmem, size = 0x8000, scoped, tag = 'output window, operand 1, single buffered']
    #allocation6 [shape = 's32[1]{0}', space=sflag, size = 0x4, scoped, tag = 'scoped memory for kittycat_forward.9']
    %12 = vsyncpa [#allocation4], 0
    %13 = vsyncpa [#allocation6], 0
    // Predicated region
    $region2: #{kittycat_forward.9} parent=1 // pred_check
      _
    $region3: #{kittycat_forward.9} parent=1 // pred_check_branch
      %15 = sbr.rel (0) target = $region5
    $region4: #{kittycat_forward.9} parent=1 // pred_region
      _
    $region5: #{kittycat_forward.9} parent=1 // pred_fallthru
      _
    // Predicated region
    $region6: #{kittycat_forward.9} parent=1 // pred_check
      _
    $region7: #{kittycat_forward.9} parent=1 // pred_check_branch
      %17 = sbr.rel (0) target = $region9
    $region8: #{kittycat_forward.9} parent=1 // pred_region
      _
    $region9: #{kittycat_forward.9} parent=1 // pred_fallthru
      _
    // Predicated region
    $region10: #{kittycat_forward.9} parent=1 // pred_check
      _
    $region11: #{kittycat_forward.9} parent=1 // pred_check_branch
      %19 = sbr.rel (0) target = $region13
    $region12: #{kittycat_forward.9} parent=1 // pred_region
      _
    $region13: #{kittycat_forward.9} parent=1 // pred_fallthru
      _
    // Predicated region
    $region14: #{kittycat_forward.9} parent=1 // pred_check
      _
    $region15: #{kittycat_forward.9} parent=1 // pred_check_branch
      %21 = sbr.rel (0) target = $region17
    $region16: #{kittycat_forward.9} parent=1 // pred_region
      _
    $region17: #{kittycat_forward.9} parent=1 // pred_fallthru
      _
    %s23 = sld [smem:[#allocation2]]
    %v24 = vld [vmem:[%s1] sm:$0xff]
    %v25 = vld [vmem:[%s2] sm:$0xff]
    %v26 = vstv %s23
    %v27 = vmul.f32 %v26, %v24
    %v28 = vlaneseq
    %v29 = vshrl.u32 %v28, 7
    %v30 = vsub.s32 0, %v29
    %v31 = vrot.slane %v27, %v30
    %33 = vbcast.lane.b32.xlu0 %v31, 256
    %v34 = vpop.permute.xlu0 %33
    %v35 = vlaneseq
    %v36 = vshrl.u32 %v35, 7
    %v37 = vsub.s32 1, %v36
    %v38 = vrot.slane %v27, %v37
    %40 = vbcast.lane.b32.xlu0 %v38, 256
    %v41 = vpop.permute.xlu0 %40
    %v42 = vlaneseq
    %v43 = vshrl.u32 %v42, 7
    %v44 = vsub.s32 2, %v43
    %v45 = vrot.slane %v27, %v44
    %47 = vbcast.lane.b32.xlu0 %v45, 256
    %v48 = vpop.permute.xlu0 %47
    %v49 = vlaneseq
    %v50 = vshrl.u32 %v49, 7
    %v51 = vsub.s32 3, %v50
    %v52 = vrot.slane %v27, %v51
    %54 = vbcast.lane.b32.xlu0 %v52, 256
    %v55 = vpop.permute.xlu0 %54
    %v56 = vlaneseq
    %v57 = vshrl.u32 %v56, 7
    %v58 = vsub.s32 4, %v57
    %v59 = vrot.slane %v27, %v58
    %61 = vbcast.lane.b32.xlu0 %v59, 256
    %v62 = vpop.permute.xlu0 %61
    %v63 = vlaneseq
    %v64 = vshrl.u32 %v63, 7
    %v65 = vsub.s32 5, %v64
    %v66 = vrot.slane %v27, %v65
    %68 = vbcast.lane.b32.xlu0 %v66, 256
    %v69 = vpop.permute.xlu0 %68
    %v70 = vlaneseq
    %v71 = vshrl.u32 %v70, 7
    %v72 = vsub.s32 6, %v71
    %v73 = vrot.slane %v27, %v72
    %75 = vbcast.lane.b32.xlu0 %v73, 256
    %v76 = vpop.permute.xlu0 %75
    %v77 = vlaneseq
    %v78 = vshrl.u32 %v77, 7
    %v79 = vsub.s32 7, %v78
    %v80 = vrot.slane %v27, %v79
    %82 = vbcast.lane.b32.xlu0 %v80, 256
    %v83 = vpop.permute.xlu0 %82
    %v85 = vcombine.high %v25, %v25
    %v87 = vunpack.c.l.s4 1966171168
    %v88 = vunpack.c.0.s8 %v87
    %v89 = vlaneseq
    %v90 = vshrl.u32 %v89, 7
    %v91 = vsub.s32 %v88, %v90
    %v92 = vrot.slane %v25, %v91
    %v94 = vunpack.c.l.s4 1966171168
    %v95 = vunpack.c.0.s8 %v94
    %v96 = vlaneseq
    %v97 = vshrl.u32 %v96, 7
    %v98 = vsub.s32 %v95, %v97
    %v99 = vrot.slane %v85, %v98
    %v100 = vcombine.high %v92, %v92
    %v101 = vcombine.high %v99, %v99
    %v103 = vunpack.c.l.s4 1966171168
    %v104 = vunpack.c.0.s8 %v103
    %v105 = vlaneseq
    %v106 = vshrl.u32 %v105, 7
    %v107 = vsub.s32 %v104, %v106
    %v108 = vrot.slane %v92, %v107
    %v110 = vunpack.c.l.s4 1966171168
    %v111 = vunpack.c.0.s8 %v110
    %v112 = vlaneseq
    %v113 = vshrl.u32 %v112, 7
    %v114 = vsub.s32 %v111, %v113
    %v115 = vrot.slane %v99, %v114
    %v117 = vunpack.c.l.s4 1966171168
    %v118 = vunpack.c.0.s8 %v117
    %v119 = vlaneseq
    %v120 = vshrl.u32 %v119, 7
    %v121 = vsub.s32 %v118, %v120
    %v122 = vrot.slane %v100, %v121
    %v124 = vunpack.c.l.s4 1966171168
    %v125 = vunpack.c.0.s8 %v124
    %v126 = vlaneseq
    %v127 = vshrl.u32 %v126, 7
    %v128 = vsub.s32 %v125, %v127
    %v129 = vrot.slane %v101, %v128
    %v130 = vcombine.high %v108, %v108
    %v131 = vcombine.high %v115, %v115
    %v132 = vcombine.high %v122, %v122
    %v133 = vcombine.high %v129, %v129
    %v134 = vlaneseq
    %v135 = vshrl.u32 %v134, 7
    %v136 = vsub.s32 0, %v135
    %v137 = vrot.slane %v108, %v136
    %v138 = vlaneseq
    %v139 = vshrl.u32 %v138, 7
    %v140 = vsub.s32 0, %v139
    %v141 = vrot.slane %v122, %v140
    %v142 = vlaneseq
    %v143 = vshrl.u32 %v142, 7
    %v144 = vsub.s32 0, %v143
    %v145 = vrot.slane %v130, %v144
    %v146 = vlaneseq
    %v147 = vshrl.u32 %v146, 7
    %v148 = vsub.s32 0, %v147
    %v149 = vrot.slane %v132, %v148
    %v150 = vlaneseq
    %v151 = vshrl.u32 %v150, 7
    %v152 = vsub.s32 0, %v151
    %v153 = vrot.slane %v115, %v152
    %v154 = vlaneseq
    %v155 = vshrl.u32 %v154, 7
    %v156 = vsub.s32 0, %v155
    %v157 = vrot.slane %v129, %v156
    %v158 = vlaneseq
    %v159 = vshrl.u32 %v158, 7
    %v160 = vsub.s32 0, %v159
    %v161 = vrot.slane %v131, %v160
    %v162 = vlaneseq
    %v163 = vshrl.u32 %v162, 7
    %v164 = vsub.s32 0, %v163
    %v165 = vrot.slane %v133, %v164
    %v174 = vmul.f32 %v34, %v137
    %v175 = vmul.f32 %v41, %v141
    %v176 = vmul.f32 %v48, %v145
    %v177 = vmul.f32 %v55, %v149
    %v178 = vmul.f32 %v62, %v153
    %v179 = vmul.f32 %v69, %v157
    %v180 = vmul.f32 %v76, %v161
    %v181 = vmul.f32 %v83, %v165
    %vm182 = vcmask 130048
    %v183 = vsel %vm182, %v174, -inf
    %184 = vmax.xlane.f32.xlu0 %v183
    %v185 = vpop.xlane.xlu0 %184
    %v186 = vsel %vm182, %v175, -inf
    %187 = vmax.xlane.f32.xlu0 %v186
    %v188 = vpop.xlane.xlu0 %187
    %v189 = vsel %vm182, %v176, -inf
    %190 = vmax.xlane.f32.xlu0 %v189
    %v191 = vpop.xlane.xlu0 %190
    %v192 = vsel %vm182, %v177, -inf
    %193 = vmax.xlane.f32.xlu0 %v192
    %v194 = vpop.xlane.xlu0 %193
    %v195 = vsel %vm182, %v178, -inf
    %196 = vmax.xlane.f32.xlu0 %v195
    %v197 = vpop.xlane.xlu0 %196
    %v198 = vsel %vm182, %v179, -inf
    %199 = vmax.xlane.f32.xlu0 %v198
    %v200 = vpop.xlane.xlu0 %199
    %v201 = vsel %vm182, %v180, -inf
    %202 = vmax.xlane.f32.xlu0 %v201
    %v203 = vpop.xlane.xlu0 %202
    %v204 = vsel %vm182, %v181, -inf
    %205 = vmax.xlane.f32.xlu0 %v204
    %v206 = vpop.xlane.xlu0 %205
    %v207 = vsub.f32 %v174, %v185
    %v208 = vsub.f32 %v175, %v188
    %v209 = vsub.f32 %v176, %v191
    %v210 = vsub.f32 %v177, %v194
    %v211 = vsub.f32 %v178, %v197
    %v212 = vsub.f32 %v179, %v200
    %v213 = vsub.f32 %v180, %v203
    %v214 = vsub.f32 %v181, %v206
    %v215 = vmul.f32 %v207, 1.442695
    %v216 = vpow.pop %v215
    %v217 = vmul.f32 %v208, 1.442695
    %v218 = vpow.pop %v217
    %v219 = vmul.f32 %v209, 1.442695
    %v220 = vpow.pop %v219
    %v221 = vmul.f32 %v210, 1.442695
    %v222 = vpow.pop %v221
    %v223 = vmul.f32 %v211, 1.442695
    %v224 = vpow.pop %v223
    %v225 = vmul.f32 %v212, 1.442695
    %v226 = vpow.pop %v225
    %v227 = vmul.f32 %v213, 1.442695
    %v228 = vpow.pop %v227
    %v229 = vmul.f32 %v214, 1.442695
    %v230 = vpow.pop %v229
    %v231 = vsel %vm182, %v216, 0.0
    %232 = vadd.xlane.f32.xlu0 %v231
    %v233 = vpop.xlane.xlu0 %232
    %v234 = vsel %vm182, %v218, 0.0
    %235 = vadd.xlane.f32.xlu0 %v234
    %v236 = vpop.xlane.xlu0 %235
    %v237 = vsel %vm182, %v220, 0.0
    %238 = vadd.xlane.f32.xlu0 %v237
    %v239 = vpop.xlane.xlu0 %238
    %v240 = vsel %vm182, %v222, 0.0
    %241 = vadd.xlane.f32.xlu0 %v240
    %v242 = vpop.xlane.xlu0 %241
    %v243 = vsel %vm182, %v224, 0.0
    %244 = vadd.xlane.f32.xlu0 %v243
    %v245 = vpop.xlane.xlu0 %244
    %v246 = vsel %vm182, %v226, 0.0
    %247 = vadd.xlane.f32.xlu0 %v246
    %v248 = vpop.xlane.xlu0 %247
    %v249 = vsel %vm182, %v228, 0.0
    %250 = vadd.xlane.f32.xlu0 %v249
    %v251 = vpop.xlane.xlu0 %250
    %v252 = vsel %vm182, %v230, 0.0
    %253 = vadd.xlane.f32.xlu0 %v252
    %v254 = vpop.xlane.xlu0 %253
    %v255 = vrcp.pop %v233
    %v256 = vmul.f32 %v216, %v255
    %v257 = vrcp.pop %v236
    %v258 = vmul.f32 %v218, %v257
    %v259 = vrcp.pop %v239
    %v260 = vmul.f32 %v220, %v259
    %v261 = vrcp.pop %v242
    %v262 = vmul.f32 %v222, %v261
    %v263 = vrcp.pop %v245
    %v264 = vmul.f32 %v224, %v263
    %v265 = vrcp.pop %v248
    %v266 = vmul.f32 %v226, %v265
    %v267 = vrcp.pop %v251
    %v268 = vmul.f32 %v228, %v267
    %v269 = vrcp.pop %v254
    %v270 = vmul.f32 %v230, %v269
    %271 = vst.msk [vmem:[#allocation5] sm:$0xff] %vm182, %v256
    %272 = vst.msk [vmem:[#allocation5 + $0x8] sm:$0xff] %vm182, %v258
    %273 = vst.msk [vmem:[#allocation5 + $0x10] sm:$0xff] %vm182, %v260
    %274 = vst.msk [vmem:[#allocation5 + $0x18] sm:$0xff] %vm182, %v262
    %275 = vst.msk [vmem:[#allocation5 + $0x20] sm:$0xff] %vm182, %v264
    %276 = vst.msk [vmem:[#allocation5 + $0x28] sm:$0xff] %vm182, %v266
    %277 = vst.msk [vmem:[#allocation5 + $0x30] sm:$0xff] %vm182, %v268
    %278 = vst.msk [vmem:[#allocation5 + $0x38] sm:$0xff] %vm182, %v270
    %v279 = vpack.c.bf16 %v256, %v256
    %v280 = vpack.c.bf16 %v258, %v258
    %v281 = vpack.c.bf16 %v260, %v260
    %v282 = vpack.c.bf16 %v262, %v262
    %v283 = vpack.c.bf16 %v264, %v264
    %v284 = vpack.c.bf16 %v266, %v266
    %v285 = vpack.c.bf16 %v268, %v268
    %v286 = vpack.c.bf16 %v270, %v270
    %v287 = vld [vmem:[%s3] sm:$0xff]
    %v288 = vld [vmem:[%s3 + $0x8] sm:$0xff]
    %v289 = vld [vmem:[%s3 + $0x10] sm:$0xff]
    %v290 = vld [vmem:[%s3 + $0x18] sm:$0xff]
    %v291 = vld [vmem:[%s3 + $0x20] sm:$0xff]
    %v292 = vld [vmem:[%s3 + $0x28] sm:$0xff]
    %v293 = vld [vmem:[%s3 + $0x30] sm:$0xff]
    %v294 = vld [vmem:[%s3 + $0x38] sm:$0xff]
    %v295 = vld [vmem:[%s3 + $0x40] sm:$0xff]
    %v296 = vld [vmem:[%s3 + $0x48] sm:$0xff]
    %v297 = vld [vmem:[%s3 + $0x50] sm:$0xff]
    %v298 = vld [vmem:[%s3 + $0x58] sm:$0xff]
    %v299 = vld [vmem:[%s3 + $0x60] sm:$0xff]
    %v300 = vld [vmem:[%s3 + $0x68] sm:$0xff]
    %v301 = vld [vmem:[%s3 + $0x70] sm:$0xff]
    %v302 = vld [vmem:[%s3 + $0x78] sm:$0xff]
    %v303 = vpack.c.bf16 %v288, %v287
    %v304 = vpack.c.bf16 %v290, %v289
    %v305 = vpack.c.bf16 %v292, %v291
    %v306 = vpack.c.bf16 %v294, %v293
    %v307 = vpack.c.bf16 %v296, %v295
    %v308 = vpack.c.bf16 %v298, %v297
    %v309 = vpack.c.bf16 %v300, %v299
    %v310 = vpack.c.bf16 %v302, %v301
    %v312 = vsel %vm182, %v279, 0
    %314 = vmatprep.subr.bf16.mxu0 0
    %315 = vmatpush1.bf16.msra.mxu0 %v303
    %316 = vmatprep.subr.bf16.mxu0 0
    %317 = vmatpush1.bf16.msra.mxu0 0
    %318 = vmatprep.subr.bf16.mxu0 0
    %319 = vmatpush1.bf16.msra.mxu0 0
    %320 = vmatprep.subr.bf16.mxu0 0
    %321 = vmatpush1.bf16.msra.mxu0 0
    %322 = vmatprep.subr.bf16.mxu0 0
    %323 = vmatpush1.bf16.msra.mxu0 0
    %324 = vmatprep.subr.bf16.mxu0 0
    %325 = vmatpush1.bf16.msra.mxu0 0
    %326 = vmatprep.subr.bf16.mxu0 0
    %327 = vmatpush1.bf16.msra.mxu0 0
    %328 = vmatprep.subr.bf16.mxu0 0
    %329 = vmatpush1.bf16.msra.mxu0 0
    %330 = vmatprep.subr.bf16.mxu0 0
    %331 = vmatpush1.bf16.msra.mxu0 0
    %332 = vmatprep.subr.bf16.mxu0 0
    %333 = vmatpush1.bf16.msra.mxu0 0
    %334 = vmatprep.subr.bf16.mxu0 0
    %335 = vmatpush1.bf16.msra.mxu0 0
    %336 = vmatprep.subr.bf16.mxu0 0
    %337 = vmatpush1.bf16.msra.mxu0 0
    %338 = vmatprep.subr.bf16.mxu0 0
    %339 = vmatpush1.bf16.msra.mxu0 0
    %340 = vmatprep.subr.bf16.mxu0 0
    %341 = vmatpush1.bf16.msra.mxu0 0
    %342 = vmatprep.subr.bf16.mxu0 0
    %343 = vmatpush1.bf16.msra.mxu0 0
    %344 = vmatprep.subr.bf16.mxu0 0
    %345 = vmatpush1.bf16.msra.mxu0 0
    %346 = vmatprep.mubr.bf16.mxu0 0
    %347 = vmatmul.mubr.bf16.gmra.mrb[0].mxu0 %v312
    %v348 = vpop.f32.mrb[0].mxu0
    %v349 = vadd.f32 0.0, %v348
    %v350 = vpop.f32.mrb[0].mxu0
    %v351 = vpop.f32.mrb[0].mxu0
    %v352 = vpop.f32.mrb[0].mxu0
    %353 = vdwg.mxu0
    %v355 = vsel %vm182, %v280, 0
    %357 = vmatprep.subr.bf16.mxu0 0
    %358 = vmatpush1.bf16.msra.mxu0 %v304
    %359 = vmatprep.subr.bf16.mxu0 0
    %360 = vmatpush1.bf16.msra.mxu0 0
    %361 = vmatprep.subr.bf16.mxu0 0
    %362 = vmatpush1.bf16.msra.mxu0 0
    %363 = vmatprep.subr.bf16.mxu0 0
    %364 = vmatpush1.bf16.msra.mxu0 0
    %365 = vmatprep.subr.bf16.mxu0 0
    %366 = vmatpush1.bf16.msra.mxu0 0
    %367 = vmatprep.subr.bf16.mxu0 0
    %368 = vmatpush1.bf16.msra.mxu0 0
    %369 = vmatprep.subr.bf16.mxu0 0
    %370 = vmatpush1.bf16.msra.mxu0 0
    %371 = vmatprep.subr.bf16.mxu0 0
    %372 = vmatpush1.bf16.msra.mxu0 0
    %373 = vmatprep.subr.bf16.mxu0 0
    %374 = vmatpush1.bf16.msra.mxu0 0
    %375 = vmatprep.subr.bf16.mxu0 0
    %376 = vmatpush1.bf16.msra.mxu0 0
    %377 = vmatprep.subr.bf16.mxu0 0
    %378 = vmatpush1.bf16.msra.mxu0 0
    %379 = vmatprep.subr.bf16.mxu0 0
    %380 = vmatpush1.bf16.msra.mxu0 0
    %381 = vmatprep.subr.bf16.mxu0 0
    %382 = vmatpush1.bf16.msra.mxu0 0
    %383 = vmatprep.subr.bf16.mxu0 0
    %384 = vmatpush1.bf16.msra.mxu0 0
    %385 = vmatprep.subr.bf16.mxu0 0
    %386 = vmatpush1.bf16.msra.mxu0 0
    %387 = vmatprep.subr.bf16.mxu0 0
    %388 = vmatpush1.bf16.msra.mxu0 0
    %389 = vmatprep.mubr.bf16.mxu0 0
    %390 = vmatmul.mubr.bf16.gmra.mrb[0].mxu0 %v355
    %v391 = vpop.f32.mrb[0].mxu0
    %v392 = vadd.f32 0.0, %v391
    %v393 = vpop.f32.mrb[0].mxu0
    %v394 = vpop.f32.mrb[0].mxu0
    %v395 = vpop.f32.mrb[0].mxu0
    %396 = vdwg.mxu0
    %v398 = vsel %vm182, %v281, 0
    %400 = vmatprep.subr.bf16.mxu0 0
    %401 = vmatpush1.bf16.msra.mxu0 %v305
    %402 = vmatprep.subr.bf16.mxu0 0
    %403 = vmatpush1.bf16.msra.mxu0 0
    %404 = vmatprep.subr.bf16.mxu0 0
    %405 = vmatpush1.bf16.msra.mxu0 0
    %406 = vmatprep.subr.bf16.mxu0 0
    %407 = vmatpush1.bf16.msra.mxu0 0
    %408 = vmatprep.subr.bf16.mxu0 0
    %409 = vmatpush1.bf16.msra.mxu0 0
    %410 = vmatprep.subr.bf16.mxu0 0
    %411 = vmatpush1.bf16.msra.mxu0 0
    %412 = vmatprep.subr.bf16.mxu0 0
    %413 = vmatpush1.bf16.msra.mxu0 0
    %414 = vmatprep.subr.bf16.mxu0 0
    %415 = vmatpush1.bf16.msra.mxu0 0
    %416 = vmatprep.subr.bf16.mxu0 0
    %417 = vmatpush1.bf16.msra.mxu0 0
    %418 = vmatprep.subr.bf16.mxu0 0
    %419 = vmatpush1.bf16.msra.mxu0 0
    %420 = vmatprep.subr.bf16.mxu0 0
    %421 = vmatpush1.bf16.msra.mxu0 0
    %422 = vmatprep.subr.bf16.mxu0 0
    %423 = vmatpush1.bf16.msra.mxu0 0
    %424 = vmatprep.subr.bf16.mxu0 0
    %425 = vmatpush1.bf16.msra.mxu0 0
    %426 = vmatprep.subr.bf16.mxu0 0
    %427 = vmatpush1.bf16.msra.mxu0 0
    %428 = vmatprep.subr.bf16.mxu0 0
    %429 = vmatpush1.bf16.msra.mxu0 0
    %430 = vmatprep.subr.bf16.mxu0 0
    %431 = vmatpush1.bf16.msra.mxu0 0
    %432 = vmatprep.mubr.bf16.mxu0 0
    %433 = vmatmul.mubr.bf16.gmra.mrb[0].mxu0 %v398
    %v434 = vpop.f32.mrb[0].mxu0
    %v435 = vadd.f32 0.0, %v434
    %v436 = vpop.f32.mrb[0].mxu0
    %v437 = vpop.f32.mrb[0].mxu0
    %v438 = vpop.f32.mrb[0].mxu0
    %439 = vdwg.mxu0
    %v441 = vsel %vm182, %v282, 0
    %443 = vmatprep.subr.bf16.mxu0 0
    %444 = vmatpush1.bf16.msra.mxu0 %v306
    %445 = vmatprep.subr.bf16.mxu0 0
    %446 = vmatpush1.bf16.msra.mxu0 0
    %447 = vmatprep.subr.bf16.mxu0 0
    %448 = vmatpush1.bf16.msra.mxu0 0
    %449 = vmatprep.subr.bf16.mxu0 0
    %450 = vmatpush1.bf16.msra.mxu0 0
    %451 = vmatprep.subr.bf16.mxu0 0
    %452 = vmatpush1.bf16.msra.mxu0 0
    %453 = vmatprep.subr.bf16.mxu0 0
    %454 = vmatpush1.bf16.msra.mxu0 0
    %455 = vmatprep.subr.bf16.mxu0 0
    %456 = vmatpush1.bf16.msra.mxu0 0
    %457 = vmatprep.subr.bf16.mxu0 0
    %458 = vmatpush1.bf16.msra.mxu0 0
    %459 = vmatprep.subr.bf16.mxu0 0
    %460 = vmatpush1.bf16.msra.mxu0 0
    %461 = vmatprep.subr.bf16.mxu0 0
    %462 = vmatpush1.bf16.msra.mxu0 0
    %463 = vmatprep.subr.bf16.mxu0 0
    %464 = vmatpush1.bf16.msra.mxu0 0
    %465 = vmatprep.subr.bf16.mxu0 0
    %466 = vmatpush1.bf16.msra.mxu0 0
    %467 = vmatprep.subr.bf16.mxu0 0
    %468 = vmatpush1.bf16.msra.mxu0 0
    %469 = vmatprep.subr.bf16.mxu0 0
    %470 = vmatpush1.bf16.msra.mxu0 0
    %471 = vmatprep.subr.bf16.mxu0 0
    %472 = vmatpush1.bf16.msra.mxu0 0
    %473 = vmatprep.subr.bf16.mxu0 0
    %474 = vmatpush1.bf16.msra.mxu0 0
    %475 = vmatprep.mubr.bf16.mxu0 0
    %476 = vmatmul.mubr.bf16.gmra.mrb[0].mxu0 %v441
    %v477 = vpop.f32.mrb[0].mxu0
    %v478 = vadd.f32 0.0, %v477
    %v479 = vpop.f32.mrb[0].mxu0
    %v480 = vpop.f32.mrb[0].mxu0
    %v481 = vpop.f32.mrb[0].mxu0
    %482 = vdwg.mxu0
    %v484 = vsel %vm182, %v283, 0
    %486 = vmatprep.subr.bf16.mxu0 0
    %487 = vmatpush1.bf16.msra.mxu0 %v307
    %488 = vmatprep.subr.bf16.mxu0 0
    %489 = vmatpush1.bf16.msra.mxu0 0
    %490 = vmatprep.subr.bf16.mxu0 0
    %491 = vmatpush1.bf16.msra.mxu0 0
    %492 = vmatprep.subr.bf16.mxu0 0
    %493 = vmatpush1.bf16.msra.mxu0 0
    %494 = vmatprep.subr.bf16.mxu0 0
    %495 = vmatpush1.bf16.msra.mxu0 0
    %496 = vmatprep.subr.bf16.mxu0 0
    %497 = vmatpush1.bf16.msra.mxu0 0
    %498 = vmatprep.subr.bf16.mxu0 0
    %499 = vmatpush1.bf16.msra.mxu0 0
    %500 = vmatprep.subr.bf16.mxu0 0
    %501 = vmatpush1.bf16.msra.mxu0 0
    %502 = vmatprep.subr.bf16.mxu0 0
    %503 = vmatpush1.bf16.msra.mxu0 0
    %504 = vmatprep.subr.bf16.mxu0 0
    %505 = vmatpush1.bf16.msra.mxu0 0
    %506 = vmatprep.subr.bf16.mxu0 0
    %507 = vmatpush1.bf16.msra.mxu0 0
    %508 = vmatprep.subr.bf16.mxu0 0
    %509 = vmatpush1.bf16.msra.mxu0 0
    %510 = vmatprep.subr.bf16.mxu0 0
    %511 = vmatpush1.bf16.msra.mxu0 0
    %512 = vmatprep.subr.bf16.mxu0 0
    %513 = vmatpush1.bf16.msra.mxu0 0
    %514 = vmatprep.subr.bf16.mxu0 0
    %515 = vmatpush1.bf16.msra.mxu0 0
    %516 = vmatprep.subr.bf16.mxu0 0
    %517 = vmatpush1.bf16.msra.mxu0 0
    %518 = vmatprep.mubr.bf16.mxu0 0
    %519 = vmatmul.mubr.bf16.gmra.mrb[0].mxu0 %v484
    %v520 = vpop.f32.mrb[0].mxu0
    %v521 = vadd.f32 0.0, %v520
    %v522 = vpop.f32.mrb[0].mxu0
    %v523 = vpop.f32.mrb[0].mxu0
    %v524 = vpop.f32.mrb[0].mxu0
    %525 = vdwg.mxu0
    %v527 = vsel %vm182, %v284, 0
    %529 = vmatprep.subr.bf16.mxu0 0
    %530 = vmatpush1.bf16.msra.mxu0 %v308
    %531 = vmatprep.subr.bf16.mxu0 0
    %532 = vmatpush1.bf16.msra.mxu0 0
    %533 = vmatprep.subr.bf16.mxu0 0
    %534 = vmatpush1.bf16.msra.mxu0 0
    %535 = vmatprep.subr.bf16.mxu0 0
    %536 = vmatpush1.bf16.msra.mxu0 0
    %537 = vmatprep.subr.bf16.mxu0 0
    %538 = vmatpush1.bf16.msra.mxu0 0
    %539 = vmatprep.subr.bf16.mxu0 0
    %540 = vmatpush1.bf16.msra.mxu0 0
    %541 = vmatprep.subr.bf16.mxu0 0
    %542 = vmatpush1.bf16.msra.mxu0 0
    %543 = vmatprep.subr.bf16.mxu0 0
    %544 = vmatpush1.bf16.msra.mxu0 0
    %545 = vmatprep.subr.bf16.mxu0 0
    %546 = vmatpush1.bf16.msra.mxu0 0
    %547 = vmatprep.subr.bf16.mxu0 0
    %548 = vmatpush1.bf16.msra.mxu0 0
    %549 = vmatprep.subr.bf16.mxu0 0
    %550 = vmatpush1.bf16.msra.mxu0 0
    %551 = vmatprep.subr.bf16.mxu0 0
    %552 = vmatpush1.bf16.msra.mxu0 0
    %553 = vmatprep.subr.bf16.mxu0 0
    %554 = vmatpush1.bf16.msra.mxu0 0
    %555 = vmatprep.subr.bf16.mxu0 0
    %556 = vmatpush1.bf16.msra.mxu0 0
    %557 = vmatprep.subr.bf16.mxu0 0
    %558 = vmatpush1.bf16.msra.mxu0 0
    %559 = vmatprep.subr.bf16.mxu0 0
    %560 = vmatpush1.bf16.msra.mxu0 0
    %561 = vmatprep.mubr.bf16.mxu0 0
    %562 = vmatmul.mubr.bf16.gmra.mrb[0].mxu0 %v527
    %v563 = vpop.f32.mrb[0].mxu0
    %v564 = vadd.f32 0.0, %v563
    %v565 = vpop.f32.mrb[0].mxu0
    %v566 = vpop.f32.mrb[0].mxu0
    %v567 = vpop.f32.mrb[0].mxu0
    %568 = vdwg.mxu0
    %v570 = vsel %vm182, %v285, 0
    %572 = vmatprep.subr.bf16.mxu0 0
    %573 = vmatpush1.bf16.msra.mxu0 %v309
    %574 = vmatprep.subr.bf16.mxu0 0
    %575 = vmatpush1.bf16.msra.mxu0 0
    %576 = vmatprep.subr.bf16.mxu0 0
    %577 = vmatpush1.bf16.msra.mxu0 0
    %578 = vmatprep.subr.bf16.mxu0 0
    %579 = vmatpush1.bf16.msra.mxu0 0
    %580 = vmatprep.subr.bf16.mxu0 0
    %581 = vmatpush1.bf16.msra.mxu0 0
    %582 = vmatprep.subr.bf16.mxu0 0
    %583 = vmatpush1.bf16.msra.mxu0 0
    %584 = vmatprep.subr.bf16.mxu0 0
    %585 = vmatpush1.bf16.msra.mxu0 0
    %586 = vmatprep.subr.bf16.mxu0 0
    %587 = vmatpush1.bf16.msra.mxu0 0
    %588 = vmatprep.subr.bf16.mxu0 0
    %589 = vmatpush1.bf16.msra.mxu0 0
    %590 = vmatprep.subr.bf16.mxu0 0
    %591 = vmatpush1.bf16.msra.mxu0 0
    %592 = vmatprep.subr.bf16.mxu0 0
    %593 = vmatpush1.bf16.msra.mxu0 0
    %594 = vmatprep.subr.bf16.mxu0 0
    %595 = vmatpush1.bf16.msra.mxu0 0
    %596 = vmatprep.subr.bf16.mxu0 0
    %597 = vmatpush1.bf16.msra.mxu0 0
    %598 = vmatprep.subr.bf16.mxu0 0
    %599 = vmatpush1.bf16.msra.mxu0 0
    %600 = vmatprep.subr.bf16.mxu0 0
    %601 = vmatpush1.bf16.msra.mxu0 0
    %602 = vmatprep.subr.bf16.mxu0 0
    %603 = vmatpush1.bf16.msra.mxu0 0
    %604 = vmatprep.mubr.bf16.mxu0 0
    %605 = vmatmul.mubr.bf16.gmra.mrb[0].mxu0 %v570
    %v606 = vpop.f32.mrb[0].mxu0
    %v607 = vadd.f32 0.0, %v606
    %v608 = vpop.f32.mrb[0].mxu0
    %v609 = vpop.f32.mrb[0].mxu0
    %v610 = vpop.f32.mrb[0].mxu0
    %611 = vdwg.mxu0
    %v613 = vsel %vm182, %v286, 0
    %615 = vmatprep.subr.bf16.mxu0 0
    %616 = vmatpush1.bf16.msra.mxu0 %v310
    %617 = vmatprep.subr.bf16.mxu0 0
    %618 = vmatpush1.bf16.msra.mxu0 0
    %619 = vmatprep.subr.bf16.mxu0 0
    %620 = vmatpush1.bf16.msra.mxu0 0
    %621 = vmatprep.subr.bf16.mxu0 0
    %622 = vmatpush1.bf16.msra.mxu0 0
    %623 = vmatprep.subr.bf16.mxu0 0
    %624 = vmatpush1.bf16.msra.mxu0 0
    %625 = vmatprep.subr.bf16.mxu0 0
    %626 = vmatpush1.bf16.msra.mxu0 0
    %627 = vmatprep.subr.bf16.mxu0 0
    %628 = vmatpush1.bf16.msra.mxu0 0
    %629 = vmatprep.subr.bf16.mxu0 0
    %630 = vmatpush1.bf16.msra.mxu0 0
    %631 = vmatprep.subr.bf16.mxu0 0
    %632 = vmatpush1.bf16.msra.mxu0 0
    %633 = vmatprep.subr.bf16.mxu0 0
    %634 = vmatpush1.bf16.msra.mxu0 0
    %635 = vmatprep.subr.bf16.mxu0 0
    %636 = vmatpush1.bf16.msra.mxu0 0
    %637 = vmatprep.subr.bf16.mxu0 0
    %638 = vmatpush1.bf16.msra.mxu0 0
    %639 = vmatprep.subr.bf16.mxu0 0
    %640 = vmatpush1.bf16.msra.mxu0 0
    %641 = vmatprep.subr.bf16.mxu0 0
    %642 = vmatpush1.bf16.msra.mxu0 0
    %643 = vmatprep.subr.bf16.mxu0 0
    %644 = vmatpush1.bf16.msra.mxu0 0
    %645 = vmatprep.subr.bf16.mxu0 0
    %646 = vmatpush1.bf16.msra.mxu0 0
    %647 = vmatprep.mubr.bf16.mxu0 0
    %648 = vmatmul.mubr.bf16.gmra.mrb[0].mxu0 %v613
    %v649 = vpop.f32.mrb[0].mxu0
    %v650 = vadd.f32 0.0, %v649
    %v651 = vpop.f32.mrb[0].mxu0
    %v652 = vpop.f32.mrb[0].mxu0
    %v653 = vpop.f32.mrb[0].mxu0
    %654 = vdwg.mxu0
    %vm655 = vcmask 261120
    %656 = vst.msk [vmem:[#allocation3] sm:$0xff] %vm655, %v349
    %657 = vst.msk [vmem:[#allocation3 + $0x8] sm:$0xff] %vm655, %v392
    %658 = vst.msk [vmem:[#allocation3 + $0x10] sm:$0xff] %vm655, %v435
    %659 = vst.msk [vmem:[#allocation3 + $0x18] sm:$0xff] %vm655, %v478
    %660 = vst.msk [vmem:[#allocation3 + $0x20] sm:$0xff] %vm655, %v521
    %661 = vst.msk [vmem:[#allocation3 + $0x28] sm:$0xff] %vm655, %v564
    %662 = vst.msk [vmem:[#allocation3 + $0x30] sm:$0xff] %vm655, %v607
    %663 = vst.msk [vmem:[#allocation3 + $0x38] sm:$0xff] %vm655, %v650
    // Predicated region
    $region18: #{kittycat_forward.9} parent=1 // pred_check
      _
    $region19: #{kittycat_forward.9} parent=1 // pred_check_branch
      %665 = sbr.rel (0) target = $region21
    $region20: #{kittycat_forward.9} parent=1 // pred_region
      %s667 = ssub.s32 1024, 1024
      %668 = vsyncadd [#allocation4], %s667
      %s669 = sshll.u32 [#allocation3], 4
      %s670 = int_to_ptr.vmem [resolvable:$true] %s669
      %675 = dma.vmem_to_hbm [thread:$0]  %s670, 1024, %s4, [#allocation4], 128, 128, 8
    $region21: #{kittycat_forward.9} parent=1 // pred_fallthru
      _
    // Predicated region
    $region22: #{kittycat_forward.9} parent=1 // pred_check
      _
    $region23: #{kittycat_forward.9} parent=1 // pred_check_branch
      %677 = sbr.rel (0) target = $region25
    $region24: #{kittycat_forward.9} parent=1 // pred_region
      %s679 = ssub.s32 1024, 1024
      %680 = vsyncadd [#allocation6], %s679
      %s681 = sshll.u32 [#allocation5], 4
      %s682 = int_to_ptr.vmem [resolvable:$true] %s681
      %687 = dma.vmem_to_hbm [thread:$0]  %s682, 1024, %s5, [#allocation6], 128, 128, 8
    $region25: #{kittycat_forward.9} parent=1 // pred_fallthru
      _
    // Predicated region
    $region26: #{kittycat_forward.9} parent=1 // pred_check
      _
    $region27: #{kittycat_forward.9} parent=1 // pred_check_branch
      %689 = sbr.rel (0) target = $region29
    $region28: #{kittycat_forward.9} parent=1 // pred_region
      %690 = dma.done [#allocation4], 1024
    $region29: #{kittycat_forward.9} parent=1 // pred_fallthru
      _
    // Predicated region
    $region30: #{kittycat_forward.9} parent=1 // pred_check
      _
    $region31: #{kittycat_forward.9} parent=1 // pred_check_branch
      %692 = sbr.rel (0) target = $region33
    $region32: #{kittycat_forward.9} parent=1 // pred_region
      %693 = dma.done [#allocation6], 1024
    $region33: #{kittycat_forward.9} parent=1 // pred_fallthru
      _
    %694 = vsyncpa [#allocation4], 1
    %695 = vsyncpa [#allocation6], 1

</llo_original>
